<compile_context>
chip_gen: v7x
topology: tpu7x:2x2x1
jax: 0.10.0
libtpu: 0.0.40
codegen_flags: <defaults>
</compile_context>

<pallas_src>
import functools

import jax
import jax.numpy as jnp
from jax import lax
from jax.experimental import pallas as pl
from jax.experimental.pallas import tpu as pltpu


_DEC_PAD = 128  # lane-dense decoder output width (true output is 2 columns)


# ----------------------------- helpers -----------------------------

def _sigmoid(x):
    # One EUP op (tanh) instead of exp + reciprocal.
    return 0.5 * (jnp.tanh(0.5 * x) + 1.0)


def _round_up(x, m):
    return ((x + m - 1) // m) * m


# ----------------------------- input-projection kernel -----------------------------

def _proj_kernel(x_ref, wf_ref, wb_ref, bf_ref, bb_ref, gxf_ref, gxb_ref):
    """gx = x @ W_ih + (b_ih + b_hh) for both directions, hoisted out of the recurrence.

    x_ref:        (T*B, D)
    wf/wb_ref:    (D, 4H)     input->gates weights (pre-transposed)
    bf/bb_ref:    (1, 4H)     combined biases
    gxf/gxb_ref:  (T*B, 4H)   lane-dense outputs
    """
    x = x_ref[...]
    gxf_ref[...] = (
        jnp.dot(x, wf_ref[...], preferred_element_type=jnp.float32) + bf_ref[...]
    )
    gxb_ref[...] = (
        jnp.dot(x, wb_ref[...], preferred_element_type=jnp.float32) + bb_ref[...]
    )


# ----------------------------- fused bidirectional recurrence kernel -----------------------------

def _bilstm_kernel(gxf_ref, gxb_ref, whhf_ref, whhb_ref, out_ref,
                   h_f, c_f, h_b, c_b):
    """Fused forward+backward LSTM recurrence over the whole sequence (time in VMEM).

    gxf_ref, gxb_ref:   (T, B, 4H)  precomputed x @ W_ih + bias, per direction
    whhf_ref, whhb_ref: (H, 4H)     hidden->gates weights (pre-transposed)
    out_ref:            (T, B, 2H)  out[t,:,:H] = h_fwd(t), out[t,:,H:] = h_bwd(t)
    h_f, c_f, h_b, c_b: (B, H)      f32 VMEM state scratch
    Gate order follows PyTorch: i, f, g, o.
    """
    T = gxf_ref.shape[0]
    H = whhf_ref.shape[0]

    h_f[...] = jnp.zeros_like(h_f)
    c_f[...] = jnp.zeros_like(c_f)
    h_b[...] = jnp.zeros_like(h_b)
    c_b[...] = jnp.zeros_like(c_b)

    # Hoist weight loads out of the time loop.
    w_f = whhf_ref[...]
    w_b = whhb_ref[...]

    def cell(gates, c_prev):
        i_g = _sigmoid(gates[:, 0 * H:1 * H])
        f_g = _sigmoid(gates[:, 1 * H:2 * H])
        g_g = jnp.tanh(gates[:, 2 * H:3 * H])
        o_g = _sigmoid(gates[:, 3 * H:4 * H])
        c_new = f_g * c_prev + i_g * g_g
        h_new = o_g * jnp.tanh(c_new)
        return h_new, c_new

    def step(t, carry):
        # forward direction: time t
        gates_f = (
            jnp.dot(h_f[...], w_f, preferred_element_type=jnp.float32) + gxf_ref[t]
        )
        hf_new, cf_new = cell(gates_f, c_f[...])
        h_f[...] = hf_new
        c_f[...] = cf_new
        out_ref[t, :, 0:H] = hf_new

        # backward direction: time T-1-t (reversal is pure VMEM addressing)
        tb = T - 1 - t
        gates_b = (
            jnp.dot(h_b[...], w_b, preferred_element_type=jnp.float32) + gxb_ref[tb]
        )
        hb_new, cb_new = cell(gates_b, c_b[...])
        h_b[...] = hb_new
        c_b[...] = cb_new
        out_ref[tb, :, H:2 * H] = hb_new
        return carry

    lax.fori_loop(0, T, step, 0, unroll=True)


# ----------------------------- decoder kernel -----------------------------

def _decoder_kernel(x0_ref, xl_ref, w0_ref, w1_ref, b_ref, o_ref):
    """logits = concat(outputs[0], outputs[-1]) @ W_dec + b_dec, with W split so no concat.

    x0/xl_ref: (B, 2H); w0/w1_ref: (2H, 128); b_ref: (1, 128); o_ref: (B, 128) lane-dense.
    """
    o_ref[...] = (
        jnp.dot(x0_ref[...], w0_ref[...], preferred_element_type=jnp.float32)
        + jnp.dot(xl_ref[...], w1_ref[...], preferred_element_type=jnp.float32)
        + b_ref[...]
    )


# ----------------------------- layer / forward wrappers -----------------------------

def bilstm_layer(x, fwd, bwd):
    """x: (T, B, D) f32 -> (T, B, 2H) f32 (one bidirectional LSTM layer)."""
    T, B, D = x.shape
    H = fwd["w_hh"].shape[0]

    # Hoisted input projection: one big matmul per direction (shared x load).
    gxf, gxb = pl.pallas_call(
        _proj_kernel,
        out_shape=(
            jax.ShapeDtypeStruct((T * B, 4 * H), jnp.float32),
            jax.ShapeDtypeStruct((T * B, 4 * H), jnp.float32),
        ),
    )(x.reshape(T * B, D), fwd["w_ih"], bwd["w_ih"], fwd["b"], bwd["b"])

    gxf = gxf.reshape(T, B, 4 * H)
    gxb = gxb.reshape(T, B, 4 * H)

    # Fused forward+backward recurrence; writes the (T, B, 2H) output directly.
    return pl.pallas_call(
        _bilstm_kernel,
        out_shape=jax.ShapeDtypeStruct((T, B, 2 * H), jnp.float32),
        scratch_shapes=[
            pltpu.VMEM((B, H), jnp.float32),
            pltpu.VMEM((B, H), jnp.float32),
            pltpu.VMEM((B, H), jnp.float32),
            pltpu.VMEM((B, H), jnp.float32),
        ],
    )(gxf, gxb, fwd["w_hh"], bwd["w_hh"])


def birnn_forward(params, inputs, num_layers):
    """inputs: (batch, seq) int32 token ids -> (batch, 2) logits."""
    batch, _ = inputs.shape
    b_pad = max(8, _round_up(batch, 8))  # sublane-align the batch
    if b_pad != batch:
        inputs = jnp.pad(inputs, ((0, b_pad - batch), (0, 0)))

    # embeddings = embedding(inputs.permute(1, 0)) -> (T, B, E)   (glue: gather in XLA)
    x = params["embedding"][inputs.T]

    for layer in range(num_layers):
        x = bilstm_layer(x, params["lstm"][layer]["fwd"], params["lstm"][layer]["bwd"])

    # encoding = cat(outputs[0], outputs[-1], -1); decoder consumes the halves directly.
    logits = pl.pallas_call(
        _decoder_kernel,
        out_shape=jax.ShapeDtypeStruct((b_pad, _DEC_PAD), jnp.float32),
    )(x[0], x[-1], params["dec_w0"], params["dec_w1"], params["dec_b"])

    return logits[:batch, :2]


# ----------------------------- parameter init -----------------------------

def init_params(key, vocab_size, embed_size, num_hiddens, num_layers):
    params = {}
    k_emb, key = jax.random.split(key)
    params["embedding"] = (
        jax.random.normal(k_emb, (vocab_size, embed_size), jnp.float32) * 0.1
    )

    H = num_hiddens
    scale = 1.0 / jnp.sqrt(H)
    lstm = []
    for layer in range(num_layers):
        in_size = embed_size if layer == 0 else 2 * H
        layer_params = {}
        for direction in ("fwd", "bwd"):
            key, k1, k2, k3, k4 = jax.random.split(key, 5)
            w_ih = jax.random.uniform(k1, (in_size, 4 * H), jnp.float32, -scale, scale)
            w_hh = jax.random.uniform(k2, (H, 4 * H), jnp.float32, -scale, scale)
            # PyTorch has two biases (b_ih + b_hh); store their sum.
            b = (
                jax.random.uniform(k3, (1, 4 * H), jnp.float32, -scale, scale)
                + jax.random.uniform(k4, (1, 4 * H), jnp.float32, -scale, scale)
            )
            layer_params[direction] = {"w_ih": w_ih, "w_hh": w_hh, "b": b}
        lstm.append(layer_params)
    params["lstm"] = lstm

    key, k_w, k_b = jax.random.split(key, 3)
    dscale = 1.0 / jnp.sqrt(4 * H)
    dec_w = jax.random.uniform(k_w, (4 * H, 2), jnp.float32, -dscale, dscale)
    dec_b = jax.random.uniform(k_b, (1, 2), jnp.float32, -dscale, dscale)
    # Pad the 2-column decoder to a lane-dense width and split it so the kernel can
    # consume outputs[0] / outputs[-1] without a concat.
    dec_w_pad = jnp.zeros((4 * H, _DEC_PAD), jnp.float32).at[:, :2].set(dec_w)
    params["dec_w0"] = dec_w_pad[: 2 * H]
    params["dec_w1"] = dec_w_pad[2 * H:]
    params["dec_b"] = jnp.zeros((1, _DEC_PAD), jnp.float32).at[:, :2].set(dec_b)
    return params


# ----------------------------- main -----------------------------

if __name__ == "__main__":
    vocab_size = 50
    embed_size = 32
    num_hiddens = 32
    num_layers = 2
    batch = 2
    seq = 8

    key = jax.random.PRNGKey(0)
    k_params, k_inputs = jax.random.split(key)

    params = init_params(k_params, vocab_size, embed_size, num_hiddens, num_layers)
    inputs = jax.random.randint(k_inputs, (batch, seq), 0, vocab_size, jnp.int32)

    forward = jax.jit(functools.partial(birnn_forward, num_layers=num_layers))
    logits = forward(params, inputs)
    jax.block_until_ready(logits)
    assert logits.shape == (batch, 2)
    print("KERNEL_OK")
</pallas_src>

<mosaic_0001>
module attributes {stable_mosaic.version = 11 : i64} {
  func.func @_proj_kernel(%arg0: memref<64x32xf32, #tpu.memory_space<vmem>>, %arg1: memref<32x128xf32, #tpu.memory_space<vmem>>, %arg2: memref<32x128xf32, #tpu.memory_space<vmem>>, %arg3: memref<1x128xf32, #tpu.memory_space<vmem>>, %arg4: memref<1x128xf32, #tpu.memory_space<vmem>>, %arg5: memref<64x128xf32, #tpu.memory_space<vmem>>, %arg6: memref<64x128xf32, #tpu.memory_space<vmem>>) attributes {dimension_semantics = [], scalar_prefetch = 0 : i64, scratch_operands = 0 : i64, tpu.core_type = #tpu.core_type<tc>} {
    %c0 = arith.constant 0 : index
    %c0_0 = arith.constant 0 : index
    %0 = vector.load %arg0[%c0, %c0_0] : memref<64x32xf32, #tpu.memory_space<vmem>>, vector<64x32xf32>
    %c0_1 = arith.constant 0 : index
    %c0_2 = arith.constant 0 : index
    %1 = vector.load %arg1[%c0_1, %c0_2] : memref<32x128xf32, #tpu.memory_space<vmem>>, vector<32x128xf32>
    %cst = arith.constant dense<0.000000e+00> : vector<64x128xf32>
    %2 = tpu.matmul %0, %1, %cst {dimension_numbers = #tpu.dot_dimension_numbers<[1], [0], [0], [1], [0, 0, 1, 1], [], []>} : vector<64x32xf32>, vector<32x128xf32>, vector<64x128xf32> -> vector<64x128xf32>
    %c0_3 = arith.constant 0 : index
    %c0_4 = arith.constant 0 : index
    %3 = vector.load %arg3[%c0_3, %c0_4] : memref<1x128xf32, #tpu.memory_space<vmem>>, vector<1x128xf32>
    %4 = vector.broadcast %3 : vector<1x128xf32> to vector<64x128xf32>
    %5 = arith.addf %2, %4 : vector<64x128xf32>
    %c0_5 = arith.constant 0 : index
    %c0_6 = arith.constant 0 : index
    %6 = vector.load %arg5[%c0_5, %c0_6] : memref<64x128xf32, #tpu.memory_space<vmem>>, vector<64x128xf32>
    tpu.vector_store %arg5[%c0_5, %c0_6], %5 {strides = array<i32>} : memref<64x128xf32, #tpu.memory_space<vmem>>, vector<64x128xf32>,
    %c0_7 = arith.constant 0 : index
    %c0_8 = arith.constant 0 : index
    %7 = vector.load %arg2[%c0_7, %c0_8] : memref<32x128xf32, #tpu.memory_space<vmem>>, vector<32x128xf32>
    %cst_9 = arith.constant dense<0.000000e+00> : vector<64x128xf32>
    %8 = tpu.matmul %0, %7, %cst_9 {dimension_numbers = #tpu.dot_dimension_numbers<[1], [0], [0], [1], [0, 0, 1, 1], [], []>} : vector<64x32xf32>, vector<32x128xf32>, vector<64x128xf32> -> vector<64x128xf32>
    %c0_10 = arith.constant 0 : index
    %c0_11 = arith.constant 0 : index
    %9 = vector.load %arg4[%c0_10, %c0_11] : memref<1x128xf32, #tpu.memory_space<vmem>>, vector<1x128xf32>
    %10 = vector.broadcast %9 : vector<1x128xf32> to vector<64x128xf32>
    %11 = arith.addf %8, %10 : vector<64x128xf32>
    %c0_12 = arith.constant 0 : index
    %c0_13 = arith.constant 0 : index
    %12 = vector.load %arg6[%c0_12, %c0_13] : memref<64x128xf32, #tpu.memory_space<vmem>>, vector<64x128xf32>
    tpu.vector_store %arg6[%c0_12, %c0_13], %11 {strides = array<i32>} : memref<64x128xf32, #tpu.memory_space<vmem>>, vector<64x128xf32>,
    return
  }
}

module attributes {stable_mosaic.version = 11 : i64} {
  func.func @_proj_kernel(%arg0: memref<64x64xf32, #tpu.memory_space<vmem>>, %arg1: memref<64x128xf32, #tpu.memory_space<vmem>>, %arg2: memref<64x128xf32, #tpu.memory_space<vmem>>, %arg3: memref<1x128xf32, #tpu.memory_space<vmem>>, %arg4: memref<1x128xf32, #tpu.memory_space<vmem>>, %arg5: memref<64x128xf32, #tpu.memory_space<vmem>>, %arg6: memref<64x128xf32, #tpu.memory_space<vmem>>) attributes {dimension_semantics = [], scalar_prefetch = 0 : i64, scratch_operands = 0 : i64, tpu.core_type = #tpu.core_type<tc>} {
    %c0 = arith.constant 0 : index
    %c0_0 = arith.constant 0 : index
    %0 = vector.load %arg0[%c0, %c0_0] : memref<64x64xf32, #tpu.memory_space<vmem>>, vector<64x64xf32>
    %c0_1 = arith.constant 0 : index
    %c0_2 = arith.constant 0 : index
    %1 = vector.load %arg1[%c0_1, %c0_2] : memref<64x128xf32, #tpu.memory_space<vmem>>, vector<64x128xf32>
    %cst = arith.constant dense<0.000000e+00> : vector<64x128xf32>
    %2 = tpu.matmul %0, %1, %cst {dimension_numbers = #tpu.dot_dimension_numbers<[1], [0], [0], [1], [0, 0, 1, 1], [], []>} : vector<64x64xf32>, vector<64x128xf32>, vector<64x128xf32> -> vector<64x128xf32>
    %c0_3 = arith.constant 0 : index
    %c0_4 = arith.constant 0 : index
    %3 = vector.load %arg3[%c0_3, %c0_4] : memref<1x128xf32, #tpu.memory_space<vmem>>, vector<1x128xf32>
    %4 = vector.broadcast %3 : vector<1x128xf32> to vector<64x128xf32>
    %5 = arith.addf %2, %4 : vector<64x128xf32>
    %c0_5 = arith.constant 0 : index
    %c0_6 = arith.constant 0 : index
    %6 = vector.load %arg5[%c0_5, %c0_6] : memref<64x128xf32, #tpu.memory_space<vmem>>, vector<64x128xf32>
    tpu.vector_store %arg5[%c0_5, %c0_6], %5 {strides = array<i32>} : memref<64x128xf32, #tpu.memory_space<vmem>>, vector<64x128xf32>,
    %c0_7 = arith.constant 0 : index
    %c0_8 = arith.constant 0 : index
    %7 = vector.load %arg2[%c0_7, %c0_8] : memref<64x128xf32, #tpu.memory_space<vmem>>, vector<64x128xf32>
    %cst_9 = arith.constant dense<0.000000e+00> : vector<64x128xf32>
    %8 = tpu.matmul %0, %7, %cst_9 {dimension_numbers = #tpu.dot_dimension_numbers<[1], [0], [0], [1], [0, 0, 1, 1], [], []>} : vector<64x64xf32>, vector<64x128xf32>, vector<64x128xf32> -> vector<64x128xf32>
    %c0_10 = arith.constant 0 : index
    %c0_11 = arith.constant 0 : index
    %9 = vector.load %arg4[%c0_10, %c0_11] : memref<1x128xf32, #tpu.memory_space<vmem>>, vector<1x128xf32>
    %10 = vector.broadcast %9 : vector<1x128xf32> to vector<64x128xf32>
    %11 = arith.addf %8, %10 : vector<64x128xf32>
    %c0_12 = arith.constant 0 : index
    %c0_13 = arith.constant 0 : index
    %12 = vector.load %arg6[%c0_12, %c0_13] : memref<64x128xf32, #tpu.memory_space<vmem>>, vector<64x128xf32>
    tpu.vector_store %arg6[%c0_12, %c0_13], %11 {strides = array<i32>} : memref<64x128xf32, #tpu.memory_space<vmem>>, vector<64x128xf32>,
    return
  }
}

module attributes {stable_mosaic.version = 11 : i64} {
  func.func @_bilstm_kernel(%arg0: memref<8x8x128xf32, #tpu.memory_space<vmem>>, %arg1: memref<8x8x128xf32, #tpu.memory_space<vmem>>, %arg2: memref<32x128xf32, #tpu.memory_space<vmem>>, %arg3: memref<32x128xf32, #tpu.memory_space<vmem>>, %arg4: memref<8x8x64xf32, #tpu.memory_space<vmem>>, %arg5: memref<8x32xf32, #tpu.memory_space<vmem>>, %arg6: memref<8x32xf32, #tpu.memory_space<vmem>>, %arg7: memref<8x32xf32, #tpu.memory_space<vmem>>, %arg8: memref<8x32xf32, #tpu.memory_space<vmem>>) attributes {dimension_semantics = [], scalar_prefetch = 0 : i64, scratch_operands = 4 : i64, tpu.core_type = #tpu.core_type<tc>} {
    %cst = arith.constant 0.000000e+00 : f32
    %0 = vector.broadcast %cst : f32 to vector<8x32xf32>
    %c0 = arith.constant 0 : index
    %c0_0 = arith.constant 0 : index
    %1 = vector.load %arg5[%c0, %c0_0] : memref<8x32xf32, #tpu.memory_space<vmem>>, vector<8x32xf32>
    tpu.vector_store %arg5[%c0, %c0_0], %0 {strides = array<i32>} : memref<8x32xf32, #tpu.memory_space<vmem>>, vector<8x32xf32>,
    %cst_1 = arith.constant 0.000000e+00 : f32
    %2 = vector.broadcast %cst_1 : f32 to vector<8x32xf32>
    %c0_2 = arith.constant 0 : index
    %c0_3 = arith.constant 0 : index
    %3 = vector.load %arg6[%c0_2, %c0_3] : memref<8x32xf32, #tpu.memory_space<vmem>>, vector<8x32xf32>
    tpu.vector_store %arg6[%c0_2, %c0_3], %2 {strides = array<i32>} : memref<8x32xf32, #tpu.memory_space<vmem>>, vector<8x32xf32>,
    %cst_4 = arith.constant 0.000000e+00 : f32
    %4 = vector.broadcast %cst_4 : f32 to vector<8x32xf32>
    %c0_5 = arith.constant 0 : index
    %c0_6 = arith.constant 0 : index
    %5 = vector.load %arg7[%c0_5, %c0_6] : memref<8x32xf32, #tpu.memory_space<vmem>>, vector<8x32xf32>
    tpu.vector_store %arg7[%c0_5, %c0_6], %4 {strides = array<i32>} : memref<8x32xf32, #tpu.memory_space<vmem>>, vector<8x32xf32>,
    %cst_7 = arith.constant 0.000000e+00 : f32
    %6 = vector.broadcast %cst_7 : f32 to vector<8x32xf32>
    %c0_8 = arith.constant 0 : index
    %c0_9 = arith.constant 0 : index
    %7 = vector.load %arg8[%c0_8, %c0_9] : memref<8x32xf32, #tpu.memory_space<vmem>>, vector<8x32xf32>
    tpu.vector_store %arg8[%c0_8, %c0_9], %6 {strides = array<i32>} : memref<8x32xf32, #tpu.memory_space<vmem>>, vector<8x32xf32>,
    %c0_10 = arith.constant 0 : index
    %c0_11 = arith.constant 0 : index
    %8 = vector.load %arg2[%c0_10, %c0_11] : memref<32x128xf32, #tpu.memory_space<vmem>>, vector<32x128xf32>
    %c0_12 = arith.constant 0 : index
    %c0_13 = arith.constant 0 : index
    %9 = vector.load %arg3[%c0_12, %c0_13] : memref<32x128xf32, #tpu.memory_space<vmem>>, vector<32x128xf32>
    %c0_i32 = arith.constant 0 : i32
    %c0_14 = arith.constant 0 : index
    %c0_15 = arith.constant 0 : index
    %10 = vector.load %arg5[%c0_14, %c0_15] : memref<8x32xf32, #tpu.memory_space<vmem>>, vector<8x32xf32>
    %cst_16 = arith.constant dense<0.000000e+00> : vector<8x128xf32>
    %11 = tpu.matmul %10, %8, %cst_16 {dimension_numbers = #tpu.dot_dimension_numbers<[1], [0], [0], [1], [0, 0, 1, 1], [], []>} : vector<8x32xf32>, vector<32x128xf32>, vector<8x128xf32> -> vector<8x128xf32>
    %12 = arith.index_cast %c0_i32 : i32 to index
    %c0_17 = arith.constant 0 : index
    %c0_18 = arith.constant 0 : index
    %13 = vector.load %arg0[%12, %c0_17, %c0_18] : memref<8x8x128xf32, #tpu.memory_space<vmem>>, vector<1x8x128xf32>
    %14 = vector.shape_cast %13 : vector<1x8x128xf32> to vector<8x128xf32>
    %15 = arith.addf %11, %14 : vector<8x128xf32>
    %c0_19 = arith.constant 0 : index
    %c0_20 = arith.constant 0 : index
    %16 = vector.load %arg6[%c0_19, %c0_20] : memref<8x32xf32, #tpu.memory_space<vmem>>, vector<8x32xf32>
    %17 = vector.extract_strided_slice %15 {offsets = [0, 0], sizes = [8, 32], strides = [1, 1]} : vector<8x128xf32> to vector<8x32xf32>
    %cst_21 = arith.constant 5.000000e-01 : f32
    %18 = vector.broadcast %cst_21 : f32 to vector<8x32xf32>
    %19 = arith.mulf %18, %17 : vector<8x32xf32>
    %20 = math.tanh %19 : vector<8x32xf32>
    %cst_22 = arith.constant 1.000000e+00 : f32
    %21 = vector.broadcast %cst_22 : f32 to vector<8x32xf32>
    %22 = arith.addf %20, %21 : vector<8x32xf32>
    %cst_23 = arith.constant 5.000000e-01 : f32
    %23 = vector.broadcast %cst_23 : f32 to vector<8x32xf32>
    %24 = arith.mulf %23, %22 : vector<8x32xf32>
    %25 = vector.extract_strided_slice %15 {offsets = [0, 32], sizes = [8, 32], strides = [1, 1]} : vector<8x128xf32> to vector<8x32xf32>
    %cst_24 = arith.constant 5.000000e-01 : f32
    %26 = vector.broadcast %cst_24 : f32 to vector<8x32xf32>
    %27 = arith.mulf %26, %25 : vector<8x32xf32>
    %28 = math.tanh %27 : vector<8x32xf32>
    %cst_25 = arith.constant 1.000000e+00 : f32
    %29 = vector.broadcast %cst_25 : f32 to vector<8x32xf32>
    %30 = arith.addf %28, %29 : vector<8x32xf32>
    %cst_26 = arith.constant 5.000000e-01 : f32
    %31 = vector.broadcast %cst_26 : f32 to vector<8x32xf32>
    %32 = arith.mulf %31, %30 : vector<8x32xf32>
    %33 = vector.extract_strided_slice %15 {offsets = [0, 64], sizes = [8, 32], strides = [1, 1]} : vector<8x128xf32> to vector<8x32xf32>
    %34 = math.tanh %33 : vector<8x32xf32>
    %35 = vector.extract_strided_slice %15 {offsets = [0, 96], sizes = [8, 32], strides = [1, 1]} : vector<8x128xf32> to vector<8x32xf32>
    %cst_27 = arith.constant 5.000000e-01 : f32
    %36 = vector.broadcast %cst_27 : f32 to vector<8x32xf32>
    %37 = arith.mulf %36, %35 : vector<8x32xf32>
    %38 = math.tanh %37 : vector<8x32xf32>
    %cst_28 = arith.constant 1.000000e+00 : f32
    %39 = vector.broadcast %cst_28 : f32 to vector<8x32xf32>
    %40 = arith.addf %38, %39 : vector<8x32xf32>
    %cst_29 = arith.constant 5.000000e-01 : f32
    %41 = vector.broadcast %cst_29 : f32 to vector<8x32xf32>
    %42 = arith.mulf %41, %40 : vector<8x32xf32>
    %43 = arith.mulf %32, %16 : vector<8x32xf32>
    %44 = arith.mulf %24, %34 : vector<8x32xf32>
    %45 = arith.addf %43, %44 : vector<8x32xf32>
    %46 = math.tanh %45 : vector<8x32xf32>
    %47 = arith.mulf %42, %46 : vector<8x32xf32>
    %c0_30 = arith.constant 0 : index
    %c0_31 = arith.constant 0 : index
    %48 = vector.load %arg5[%c0_30, %c0_31] : memref<8x32xf32, #tpu.memory_space<vmem>>, vector<8x32xf32>
    tpu.vector_store %arg5[%c0_30, %c0_31], %47 {strides = array<i32>} : memref<8x32xf32, #tpu.memory_space<vmem>>, vector<8x32xf32>,
    %c0_32 = arith.constant 0 : index
    %c0_33 = arith.constant 0 : index
    %49 = vector.load %arg6[%c0_32, %c0_33] : memref<8x32xf32, #tpu.memory_space<vmem>>, vector<8x32xf32>
    tpu.vector_store %arg6[%c0_32, %c0_33], %45 {strides = array<i32>} : memref<8x32xf32, #tpu.memory_space<vmem>>, vector<8x32xf32>,
    %50 = arith.index_cast %c0_i32 : i32 to index
    %c0_34 = arith.constant 0 : index
    %c0_35 = arith.constant 0 : index
    %51 = vector.load %arg4[%50, %c0_34, %c0_35] : memref<8x8x64xf32, #tpu.memory_space<vmem>>, vector<1x8x32xf32>
    %52 = vector.shape_cast %51 : vector<1x8x32xf32> to vector<8x32xf32>
    %53 = vector.shape_cast %47 : vector<8x32xf32> to vector<1x8x32xf32>
    tpu.vector_store %arg4[%50, %c0_34, %c0_35], %53 {strides = array<i32>} : memref<8x8x64xf32, #tpu.memory_space<vmem>>, vector<1x8x32xf32>,
    %c7_i32 = arith.constant 7 : i32
    %54 = arith.subi %c7_i32, %c0_i32 : i32
    %c0_36 = arith.constant 0 : index
    %c0_37 = arith.constant 0 : index
    %55 = vector.load %arg7[%c0_36, %c0_37] : memref<8x32xf32, #tpu.memory_space<vmem>>, vector<8x32xf32>
    %cst_38 = arith.constant dense<0.000000e+00> : vector<8x128xf32>
    %56 = tpu.matmul %55, %9, %cst_38 {dimension_numbers = #tpu.dot_dimension_numbers<[1], [0], [0], [1], [0, 0, 1, 1], [], []>} : vector<8x32xf32>, vector<32x128xf32>, vector<8x128xf32> -> vector<8x128xf32>
    %57 = arith.index_cast %54 : i32 to index
    %c0_39 = arith.constant 0 : index
    %c0_40 = arith.constant 0 : index
    %58 = vector.load %arg1[%57, %c0_39, %c0_40] : memref<8x8x128xf32, #tpu.memory_space<vmem>>, vector<1x8x128xf32>
    %59 = vector.shape_cast %58 : vector<1x8x128xf32> to vector<8x128xf32>
    %60 = arith.addf %56, %59 : vector<8x128xf32>
    %c0_41 = arith.constant 0 : index
    %c0_42 = arith.constant 0 : index
    %61 = vector.load %arg8[%c0_41, %c0_42] : memref<8x32xf32, #tpu.memory_space<vmem>>, vector<8x32xf32>
    %62 = vector.extract_strided_slice %60 {offsets = [0, 0], sizes = [8, 32], strides = [1, 1]} : vector<8x128xf32> to vector<8x32xf32>
    %cst_43 = arith.constant 5.000000e-01 : f32
    %63 = vector.broadcast %cst_43 : f32 to vector<8x32xf32>
    %64 = arith.mulf %63, %62 : vector<8x32xf32>
    %65 = math.tanh %64 : vector<8x32xf32>
    %cst_44 = arith.constant 1.000000e+00 : f32
    %66 = vector.broadcast %cst_44 : f32 to vector<8x32xf32>
    %67 = arith.addf %65, %66 : vector<8x32xf32>
    %cst_45 = arith.constant 5.000000e-01 : f32
    %68 = vector.broadcast %cst_45 : f32 to vector<8x32xf32>
    %69 = arith.mulf %68, %67 : vector<8x32xf32>
    %70 = vector.extract_strided_slice %60 {offsets = [0, 32], sizes = [8, 32], strides = [1, 1]} : vector<8x128xf32> to vector<8x32xf32>
    %cst_46 = arith.constant 5.000000e-01 : f32
    %71 = vector.broadcast %cst_46 : f32 to vector<8x32xf32>
    %72 = arith.mulf %71, %70 : vector<8x32xf32>
    %73 = math.tanh %72 : vector<8x32xf32>
    %cst_47 = arith.constant 1.000000e+00 : f32
    %74 = vector.broadcast %cst_47 : f32 to vector<8x32xf32>
    %75 = arith.addf %73, %74 : vector<8x32xf32>
    %cst_48 = arith.constant 5.000000e-01 : f32
    %76 = vector.broadcast %cst_48 : f32 to vector<8x32xf32>
    %77 = arith.mulf %76, %75 : vector<8x32xf32>
    %78 = vector.extract_strided_slice %60 {offsets = [0, 64], sizes = [8, 32], strides = [1, 1]} : vector<8x128xf32> to vector<8x32xf32>
    %79 = math.tanh %78 : vector<8x32xf32>
    %80 = vector.extract_strided_slice %60 {offsets = [0, 96], sizes = [8, 32], strides = [1, 1]} : vector<8x128xf32> to vector<8x32xf32>
    %cst_49 = arith.constant 5.000000e-01 : f32
    %81 = vector.broadcast %cst_49 : f32 to vector<8x32xf32>
    %82 = arith.mulf %81, %80 : vector<8x32xf32>
    %83 = math.tanh %82 : vector<8x32xf32>
    %cst_50 = arith.constant 1.000000e+00 : f32
    %84 = vector.broadcast %cst_50 : f32 to vector<8x32xf32>
    %85 = arith.addf %83, %84 : vector<8x32xf32>
    %cst_51 = arith.constant 5.000000e-01 : f32
    %86 = vector.broadcast %cst_51 : f32 to vector<8x32xf32>
    %87 = arith.mulf %86, %85 : vector<8x32xf32>
    %88 = arith.mulf %77, %61 : vector<8x32xf32>
    %89 = arith.mulf %69, %79 : vector<8x32xf32>
    %90 = arith.addf %88, %89 : vector<8x32xf32>
    %91 = math.tanh %90 : vector<8x32xf32>
    %92 = arith.mulf %87, %91 : vector<8x32xf32>
    %c0_52 = arith.constant 0 : index
    %c0_53 = arith.constant 0 : index
    %93 = vector.load %arg7[%c0_52, %c0_53] : memref<8x32xf32, #tpu.memory_space<vmem>>, vector<8x32xf32>
    tpu.vector_store %arg7[%c0_52, %c0_53], %92 {strides = array<i32>} : memref<8x32xf32, #tpu.memory_space<vmem>>, vector<8x32xf32>,
    %c0_54 = arith.constant 0 : index
    %c0_55 = arith.constant 0 : index
    %94 = vector.load %arg8[%c0_54, %c0_55] : memref<8x32xf32, #tpu.memory_space<vmem>>, vector<8x32xf32>
    tpu.vector_store %arg8[%c0_54, %c0_55], %90 {strides = array<i32>} : memref<8x32xf32, #tpu.memory_space<vmem>>, vector<8x32xf32>,
    %95 = arith.index_cast %54 : i32 to index
    %c0_56 = arith.constant 0 : index
    %c32 = arith.constant 32 : index
    %96 = vector.load %arg4[%95, %c0_56, %c32] : memref<8x8x64xf32, #tpu.memory_space<vmem>>, vector<1x8x32xf32>
    %97 = vector.shape_cast %96 : vector<1x8x32xf32> to vector<8x32xf32>
    %98 = vector.shape_cast %92 : vector<8x32xf32> to vector<1x8x32xf32>
    tpu.vector_store %arg4[%95, %c0_56, %c32], %98 {strides = array<i32>} : memref<8x8x64xf32, #tpu.memory_space<vmem>>, vector<1x8x32xf32>,
    %c1_i32 = arith.constant 1 : i32
    %c0_57 = arith.constant 0 : index
    %c0_58 = arith.constant 0 : index
    %99 = vector.load %arg5[%c0_57, %c0_58] : memref<8x32xf32, #tpu.memory_space<vmem>>, vector<8x32xf32>
    %cst_59 = arith.constant dense<0.000000e+00> : vector<8x128xf32>
    %100 = tpu.matmul %99, %8, %cst_59 {dimension_numbers = #tpu.dot_dimension_numbers<[1], [0], [0], [1], [0, 0, 1, 1], [], []>} : vector<8x32xf32>, vector<32x128xf32>, vector<8x128xf32> -> vector<8x128xf32>
    %101 = arith.index_cast %c1_i32 : i32 to index
    %c0_60 = arith.constant 0 : index
    %c0_61 = arith.constant 0 : index
    %102 = vector.load %arg0[%101, %c0_60, %c0_61] : memref<8x8x128xf32, #tpu.memory_space<vmem>>, vector<1x8x128xf32>
    %103 = vector.shape_cast %102 : vector<1x8x128xf32> to vector<8x128xf32>
    %104 = arith.addf %100, %103 : vector<8x128xf32>
    %c0_62 = arith.constant 0 : index
    %c0_63 = arith.constant 0 : index
    %105 = vector.load %arg6[%c0_62, %c0_63] : memref<8x32xf32, #tpu.memory_space<vmem>>, vector<8x32xf32>
    %106 = vector.extract_strided_slice %104 {offsets = [0, 0], sizes = [8, 32], strides = [1, 1]} : vector<8x128xf32> to vector<8x32xf32>
    %cst_64 = arith.constant 5.000000e-01 : f32
    %107 = vector.broadcast %cst_64 : f32 to vector<8x32xf32>
    %108 = arith.mulf %107, %106 : vector<8x32xf32>
    %109 = math.tanh %108 : vector<8x32xf32>
    %cst_65 = arith.constant 1.000000e+00 : f32
    %110 = vector.broadcast %cst_65 : f32 to vector<8x32xf32>
    %111 = arith.addf %109, %110 : vector<8x32xf32>
    %cst_66 = arith.constant 5.000000e-01 : f32
    %112 = vector.broadcast %cst_66 : f32 to vector<8x32xf32>
    %113 = arith.mulf %112, %111 : vector<8x32xf32>
    %114 = vector.extract_strided_slice %104 {offsets = [0, 32], sizes = [8, 32], strides = [1, 1]} : vector<8x128xf32> to vector<8x32xf32>
    %cst_67 = arith.constant 5.000000e-01 : f32
    %115 = vector.broadcast %cst_67 : f32 to vector<8x32xf32>
    %116 = arith.mulf %115, %114 : vector<8x32xf32>
    %117 = math.tanh %116 : vector<8x32xf32>
    %cst_68 = arith.constant 1.000000e+00 : f32
    %118 = vector.broadcast %cst_68 : f32 to vector<8x32xf32>
    %119 = arith.addf %117, %118 : vector<8x32xf32>
    %cst_69 = arith.constant 5.000000e-01 : f32
    %120 = vector.broadcast %cst_69 : f32 to vector<8x32xf32>
    %121 = arith.mulf %120, %119 : vector<8x32xf32>
    %122 = vector.extract_strided_slice %104 {offsets = [0, 64], sizes = [8, 32], strides = [1, 1]} : vector<8x128xf32> to vector<8x32xf32>
    %123 = math.tanh %122 : vector<8x32xf32>
    %124 = vector.extract_strided_slice %104 {offsets = [0, 96], sizes = [8, 32], strides = [1, 1]} : vector<8x128xf32> to vector<8x32xf32>
    %cst_70 = arith.constant 5.000000e-01 : f32
    %125 = vector.broadcast %cst_70 : f32 to vector<8x32xf32>
    %126 = arith.mulf %125, %124 : vector<8x32xf32>
    %127 = math.tanh %126 : vector<8x32xf32>
    %cst_71 = arith.constant 1.000000e+00 : f32
    %128 = vector.broadcast %cst_71 : f32 to vector<8x32xf32>
    %129 = arith.addf %127, %128 : vector<8x32xf32>
    %cst_72 = arith.constant 5.000000e-01 : f32
    %130 = vector.broadcast %cst_72 : f32 to vector<8x32xf32>
    %131 = arith.mulf %130, %129 : vector<8x32xf32>
    %132 = arith.mulf %121, %105 : vector<8x32xf32>
    %133 = arith.mulf %113, %123 : vector<8x32xf32>
    %134 = arith.addf %132, %133 : vector<8x32xf32>
    %135 = math.tanh %134 : vector<8x32xf32>
    %136 = arith.mulf %131, %135 : vector<8x32xf32>
    %c0_73 = arith.constant 0 : index
    %c0_74 = arith.constant 0 : index
    %137 = vector.load %arg5[%c0_73, %c0_74] : memref<8x32xf32, #tpu.memory_space<vmem>>, vector<8x32xf32>
    tpu.vector_store %arg5[%c0_73, %c0_74], %136 {strides = array<i32>} : memref<8x32xf32, #tpu.memory_space<vmem>>, vector<8x32xf32>,
    %c0_75 = arith.constant 0 : index
    %c0_76 = arith.constant 0 : index
    %138 = vector.load %arg6[%c0_75, %c0_76] : memref<8x32xf32, #tpu.memory_space<vmem>>, vector<8x32xf32>
    tpu.vector_store %arg6[%c0_75, %c0_76], %134 {strides = array<i32>} : memref<8x32xf32, #tpu.memory_space<vmem>>, vector<8x32xf32>,
    %139 = arith.index_cast %c1_i32 : i32 to index
    %c0_77 = arith.constant 0 : index
    %c0_78 = arith.constant 0 : index
    %140 = vector.load %arg4[%139, %c0_77, %c0_78] : memref<8x8x64xf32, #tpu.memory_space<vmem>>, vector<1x8x32xf32>
    %141 = vector.shape_cast %140 : vector<1x8x32xf32> to vector<8x32xf32>
    %142 = vector.shape_cast %136 : vector<8x32xf32> to vector<1x8x32xf32>
    tpu.vector_store %arg4[%139, %c0_77, %c0_78], %142 {strides = array<i32>} : memref<8x8x64xf32, #tpu.memory_space<vmem>>, vector<1x8x32xf32>,
    %c7_i32_79 = arith.constant 7 : i32
    %143 = arith.subi %c7_i32_79, %c1_i32 : i32
    %c0_80 = arith.constant 0 : index
    %c0_81 = arith.constant 0 : index
    %144 = vector.load %arg7[%c0_80, %c0_81] : memref<8x32xf32, #tpu.memory_space<vmem>>, vector<8x32xf32>
    %cst_82 = arith.constant dense<0.000000e+00> : vector<8x128xf32>
    %145 = tpu.matmul %144, %9, %cst_82 {dimension_numbers = #tpu.dot_dimension_numbers<[1], [0], [0], [1], [0, 0, 1, 1], [], []>} : vector<8x32xf32>, vector<32x128xf32>, vector<8x128xf32> -> vector<8x128xf32>
    %146 = arith.index_cast %143 : i32 to index
    %c0_83 = arith.constant 0 : index
    %c0_84 = arith.constant 0 : index
    %147 = vector.load %arg1[%146, %c0_83, %c0_84] : memref<8x8x128xf32, #tpu.memory_space<vmem>>, vector<1x8x128xf32>
    %148 = vector.shape_cast %147 : vector<1x8x128xf32> to vector<8x128xf32>
    %149 = arith.addf %145, %148 : vector<8x128xf32>
    %c0_85 = arith.constant 0 : index
    %c0_86 = arith.constant 0 : index
    %150 = vector.load %arg8[%c0_85, %c0_86] : memref<8x32xf32, #tpu.memory_space<vmem>>, vector<8x32xf32>
    %151 = vector.extract_strided_slice %149 {offsets = [0, 0], sizes = [8, 32], strides = [1, 1]} : vector<8x128xf32> to vector<8x32xf32>
    %cst_87 = arith.constant 5.000000e-01 : f32
    %152 = vector.broadcast %cst_87 : f32 to vector<8x32xf32>
    %153 = arith.mulf %152, %151 : vector<8x32xf32>
    %154 = math.tanh %153 : vector<8x32xf32>
    %cst_88 = arith.constant 1.000000e+00 : f32
    %155 = vector.broadcast %cst_88 : f32 to vector<8x32xf32>
    %156 = arith.addf %154, %155 : vector<8x32xf32>
    %cst_89 = arith.constant 5.000000e-01 : f32
    %157 = vector.broadcast %cst_89 : f32 to vector<8x32xf32>
    %158 = arith.mulf %157, %156 : vector<8x32xf32>
    %159 = vector.extract_strided_slice %149 {offsets = [0, 32], sizes = [8, 32], strides = [1, 1]} : vector<8x128xf32> to vector<8x32xf32>
    %cst_90 = arith.constant 5.000000e-01 : f32
    %160 = vector.broadcast %cst_90 : f32 to vector<8x32xf32>
    %161 = arith.mulf %160, %159 : vector<8x32xf32>
    %162 = math.tanh %161 : vector<8x32xf32>
    %cst_91 = arith.constant 1.000000e+00 : f32
    %163 = vector.broadcast %cst_91 : f32 to vector<8x32xf32>
    %164 = arith.addf %162, %163 : vector<8x32xf32>
    %cst_92 = arith.constant 5.000000e-01 : f32
    %165 = vector.broadcast %cst_92 : f32 to vector<8x32xf32>
    %166 = arith.mulf %165, %164 : vector<8x32xf32>
    %167 = vector.extract_strided_slice %149 {offsets = [0, 64], sizes = [8, 32], strides = [1, 1]} : vector<8x128xf32> to vector<8x32xf32>
    %168 = math.tanh %167 : vector<8x32xf32>
    %169 = vector.extract_strided_slice %149 {offsets = [0, 96], sizes = [8, 32], strides = [1, 1]} : vector<8x128xf32> to vector<8x32xf32>
    %cst_93 = arith.constant 5.000000e-01 : f32
    %170 = vector.broadcast %cst_93 : f32 to vector<8x32xf32>
    %171 = arith.mulf %170, %169 : vector<8x32xf32>
    %172 = math.tanh %171 : vector<8x32xf32>
    %cst_94 = arith.constant 1.000000e+00 : f32
    %173 = vector.broadcast %cst_94 : f32 to vector<8x32xf32>
    %174 = arith.addf %172, %173 : vector<8x32xf32>
    %cst_95 = arith.constant 5.000000e-01 : f32
    %175 = vector.broadcast %cst_95 : f32 to vector<8x32xf32>
    %176 = arith.mulf %175, %174 : vector<8x32xf32>
    %177 = arith.mulf %166, %150 : vector<8x32xf32>
    %178 = arith.mulf %158, %168 : vector<8x32xf32>
    %179 = arith.addf %177, %178 : vector<8x32xf32>
    %180 = math.tanh %179 : vector<8x32xf32>
    %181 = arith.mulf %176, %180 : vector<8x32xf32>
    %c0_96 = arith.constant 0 : index
    %c0_97 = arith.constant 0 : index
    %182 = vector.load %arg7[%c0_96, %c0_97] : memref<8x32xf32, #tpu.memory_space<vmem>>, vector<8x32xf32>
    tpu.vector_store %arg7[%c0_96, %c0_97], %181 {strides = array<i32>} : memref<8x32xf32, #tpu.memory_space<vmem>>, vector<8x32xf32>,
    %c0_98 = arith.constant 0 : index
    %c0_99 = arith.constant 0 : index
    %183 = vector.load %arg8[%c0_98, %c0_99] : memref<8x32xf32, #tpu.memory_space<vmem>>, vector<8x32xf32>
    tpu.vector_store %arg8[%c0_98, %c0_99], %179 {strides = array<i32>} : memref<8x32xf32, #tpu.memory_space<vmem>>, vector<8x32xf32>,
    %184 = arith.index_cast %143 : i32 to index
    %c0_100 = arith.constant 0 : index
    %c32_101 = arith.constant 32 : index
    %185 = vector.load %arg4[%184, %c0_100, %c32_101] : memref<8x8x64xf32, #tpu.memory_space<vmem>>, vector<1x8x32xf32>
    %186 = vector.shape_cast %185 : vector<1x8x32xf32> to vector<8x32xf32>
    %187 = vector.shape_cast %181 : vector<8x32xf32> to vector<1x8x32xf32>
    tpu.vector_store %arg4[%184, %c0_100, %c32_101], %187 {strides = array<i32>} : memref<8x8x64xf32, #tpu.memory_space<vmem>>, vector<1x8x32xf32>,
    %c2_i32 = arith.constant 2 : i32
    %c0_102 = arith.constant 0 : index
    %c0_103 = arith.constant 0 : index
    %188 = vector.load %arg5[%c0_102, %c0_103] : memref<8x32xf32, #tpu.memory_space<vmem>>, vector<8x32xf32>
    %cst_104 = arith.constant dense<0.000000e+00> : vector<8x128xf32>
    %189 = tpu.matmul %188, %8, %cst_104 {dimension_numbers = #tpu.dot_dimension_numbers<[1], [0], [0], [1], [0, 0, 1, 1], [], []>} : vector<8x32xf32>, vector<32x128xf32>, vector<8x128xf32> -> vector<8x128xf32>
    %190 = arith.index_cast %c2_i32 : i32 to index
    %c0_105 = arith.constant 0 : index
    %c0_106 = arith.constant 0 : index
    %191 = vector.load %arg0[%190, %c0_105, %c0_106] : memref<8x8x128xf32, #tpu.memory_space<vmem>>, vector<1x8x128xf32>
    %192 = vector.shape_cast %191 : vector<1x8x128xf32> to vector<8x128xf32>
    %193 = arith.addf %189, %192 : vector<8x128xf32>
    %c0_107 = arith.constant 0 : index
    %c0_108 = arith.constant 0 : index
    %194 = vector.load %arg6[%c0_107, %c0_108] : memref<8x32xf32, #tpu.memory_space<vmem>>, vector<8x32xf32>
    %195 = vector.extract_strided_slice %193 {offsets = [0, 0], sizes = [8, 32], strides = [1, 1]} : vector<8x128xf32> to vector<8x32xf32>
    %cst_109 = arith.constant 5.000000e-01 : f32
    %196 = vector.broadcast %cst_109 : f32 to vector<8x32xf32>
    %197 = arith.mulf %196, %195 : vector<8x32xf32>
    %198 = math.tanh %197 : vector<8x32xf32>
    %cst_110 = arith.constant 1.000000e+00 : f32
    %199 = vector.broadcast %cst_110 : f32 to vector<8x32xf32>
    %200 = arith.addf %198, %199 : vector<8x32xf32>
    %cst_111 = arith.constant 5.000000e-01 : f32
    %201 = vector.broadcast %cst_111 : f32 to vector<8x32xf32>
    %202 = arith.mulf %201, %200 : vector<8x32xf32>
    %203 = vector.extract_strided_slice %193 {offsets = [0, 32], sizes = [8, 32], strides = [1, 1]} : vector<8x128xf32> to vector<8x32xf32>
    %cst_112 = arith.constant 5.000000e-01 : f32
    %204 = vector.broadcast %cst_112 : f32 to vector<8x32xf32>
    %205 = arith.mulf %204, %203 : vector<8x32xf32>
    %206 = math.tanh %205 : vector<8x32xf32>
    %cst_113 = arith.constant 1.000000e+00 : f32
    %207 = vector.broadcast %cst_113 : f32 to vector<8x32xf32>
    %208 = arith.addf %206, %207 : vector<8x32xf32>
    %cst_114 = arith.constant 5.000000e-01 : f32
    %209 = vector.broadcast %cst_114 : f32 to vector<8x32xf32>
    %210 = arith.mulf %209, %208 : vector<8x32xf32>
    %211 = vector.extract_strided_slice %193 {offsets = [0, 64], sizes = [8, 32], strides = [1, 1]} : vector<8x128xf32> to vector<8x32xf32>
    %212 = math.tanh %211 : vector<8x32xf32>
    %213 = vector.extract_strided_slice %193 {offsets = [0, 96], sizes = [8, 32], strides = [1, 1]} : vector<8x128xf32> to vector<8x32xf32>
    %cst_115 = arith.constant 5.000000e-01 : f32
    %214 = vector.broadcast %cst_115 : f32 to vector<8x32xf32>
    %215 = arith.mulf %214, %213 : vector<8x32xf32>
    %216 = math.tanh %215 : vector<8x32xf32>
    %cst_116 = arith.constant 1.000000e+00 : f32
    %217 = vector.broadcast %cst_116 : f32 to vector<8x32xf32>
    %218 = arith.addf %216, %217 : vector<8x32xf32>
    %cst_117 = arith.constant 5.000000e-01 : f32
    %219 = vector.broadcast %cst_117 : f32 to vector<8x32xf32>
    %220 = arith.mulf %219, %218 : vector<8x32xf32>
    %221 = arith.mulf %210, %194 : vector<8x32xf32>
    %222 = arith.mulf %202, %212 : vector<8x32xf32>
    %223 = arith.addf %221, %222 : vector<8x32xf32>
    %224 = math.tanh %223 : vector<8x32xf32>
    %225 = arith.mulf %220, %224 : vector<8x32xf32>
    %c0_118 = arith.constant 0 : index
    %c0_119 = arith.constant 0 : index
    %226 = vector.load %arg5[%c0_118, %c0_119] : memref<8x32xf32, #tpu.memory_space<vmem>>, vector<8x32xf32>
    tpu.vector_store %arg5[%c0_118, %c0_119], %225 {strides = array<i32>} : memref<8x32xf32, #tpu.memory_space<vmem>>, vector<8x32xf32>,
    %c0_120 = arith.constant 0 : index
    %c0_121 = arith.constant 0 : index
    %227 = vector.load %arg6[%c0_120, %c0_121] : memref<8x32xf32, #tpu.memory_space<vmem>>, vector<8x32xf32>
    tpu.vector_store %arg6[%c0_120, %c0_121], %223 {strides = array<i32>} : memref<8x32xf32, #tpu.memory_space<vmem>>, vector<8x32xf32>,
    %228 = arith.index_cast %c2_i32 : i32 to index
    %c0_122 = arith.constant 0 : index
    %c0_123 = arith.constant 0 : index
    %229 = vector.load %arg4[%228, %c0_122, %c0_123] : memref<8x8x64xf32, #tpu.memory_space<vmem>>, vector<1x8x32xf32>
    %230 = vector.shape_cast %229 : vector<1x8x32xf32> to vector<8x32xf32>
    %231 = vector.shape_cast %225 : vector<8x32xf32> to vector<1x8x32xf32>
    tpu.vector_store %arg4[%228, %c0_122, %c0_123], %231 {strides = array<i32>} : memref<8x8x64xf32, #tpu.memory_space<vmem>>, vector<1x8x32xf32>,
    %c7_i32_124 = arith.constant 7 : i32
    %232 = arith.subi %c7_i32_124, %c2_i32 : i32
    %c0_125 = arith.constant 0 : index
    %c0_126 = arith.constant 0 : index
    %233 = vector.load %arg7[%c0_125, %c0_126] : memref<8x32xf32, #tpu.memory_space<vmem>>, vector<8x32xf32>
    %cst_127 = arith.constant dense<0.000000e+00> : vector<8x128xf32>
    %234 = tpu.matmul %233, %9, %cst_127 {dimension_numbers = #tpu.dot_dimension_numbers<[1], [0], [0], [1], [0, 0, 1, 1], [], []>} : vector<8x32xf32>, vector<32x128xf32>, vector<8x128xf32> -> vector<8x128xf32>
    %235 = arith.index_cast %232 : i32 to index
    %c0_128 = arith.constant 0 : index
    %c0_129 = arith.constant 0 : index
    %236 = vector.load %arg1[%235, %c0_128, %c0_129] : memref<8x8x128xf32, #tpu.memory_space<vmem>>, vector<1x8x128xf32>
    %237 = vector.shape_cast %236 : vector<1x8x128xf32> to vector<8x128xf32>
    %238 = arith.addf %234, %237 : vector<8x128xf32>
    %c0_130 = arith.constant 0 : index
    %c0_131 = arith.constant 0 : index
    %239 = vector.load %arg8[%c0_130, %c0_131] : memref<8x32xf32, #tpu.memory_space<vmem>>, vector<8x32xf32>
    %240 = vector.extract_strided_slice %238 {offsets = [0, 0], sizes = [8, 32], strides = [1, 1]} : vector<8x128xf32> to vector<8x32xf32>
    %cst_132 = arith.constant 5.000000e-01 : f32
    %241 = vector.broadcast %cst_132 : f32 to vector<8x32xf32>
    %242 = arith.mulf %241, %240 : vector<8x32xf32>
    %243 = math.tanh %242 : vector<8x32xf32>
    %cst_133 = arith.constant 1.000000e+00 : f32
    %244 = vector.broadcast %cst_133 : f32 to vector<8x32xf32>
    %245 = arith.addf %243, %244 : vector<8x32xf32>
    %cst_134 = arith.constant 5.000000e-01 : f32
    %246 = vector.broadcast %cst_134 : f32 to vector<8x32xf32>
    %247 = arith.mulf %246, %245 : vector<8x32xf32>
    %248 = vector.extract_strided_slice %238 {offsets = [0, 32], sizes = [8, 32], strides = [1, 1]} : vector<8x128xf32> to vector<8x32xf32>
    %cst_135 = arith.constant 5.000000e-01 : f32
    %249 = vector.broadcast %cst_135 : f32 to vector<8x32xf32>
    %250 = arith.mulf %249, %248 : vector<8x32xf32>
    %251 = math.tanh %250 : vector<8x32xf32>
    %cst_136 = arith.constant 1.000000e+00 : f32
    %252 = vector.broadcast %cst_136 : f32 to vector<8x32xf32>
    %253 = arith.addf %251, %252 : vector<8x32xf32>
    %cst_137 = arith.constant 5.000000e-01 : f32
    %254 = vector.broadcast %cst_137 : f32 to vector<8x32xf32>
    %255 = arith.mulf %254, %253 : vector<8x32xf32>
    %256 = vector.extract_strided_slice %238 {offsets = [0, 64], sizes = [8, 32], strides = [1, 1]} : vector<8x128xf32> to vector<8x32xf32>
    %257 = math.tanh %256 : vector<8x32xf32>
    %258 = vector.extract_strided_slice %238 {offsets = [0, 96], sizes = [8, 32], strides = [1, 1]} : vector<8x128xf32> to vector<8x32xf32>
    %cst_138 = arith.constant 5.000000e-01 : f32
    %259 = vector.broadcast %cst_138 : f32 to vector<8x32xf32>
    %260 = arith.mulf %259, %258 : vector<8x32xf32>
    %261 = math.tanh %260 : vector<8x32xf32>
    %cst_139 = arith.constant 1.000000e+00 : f32
    %262 = vector.broadcast %cst_139 : f32 to vector<8x32xf32>
    %263 = arith.addf %261, %262 : vector<8x32xf32>
    %cst_140 = arith.constant 5.000000e-01 : f32
    %264 = vector.broadcast %cst_140 : f32 to vector<8x32xf32>
    %265 = arith.mulf %264, %263 : vector<8x32xf32>
    %266 = arith.mulf %255, %239 : vector<8x32xf32>
    %267 = arith.mulf %247, %257 : vector<8x32xf32>
    %268 = arith.addf %266, %267 : vector<8x32xf32>
    %269 = math.tanh %268 : vector<8x32xf32>
    %270 = arith.mulf %265, %269 : vector<8x32xf32>
    %c0_141 = arith.constant 0 : index
    %c0_142 = arith.constant 0 : index
    %271 = vector.load %arg7[%c0_141, %c0_142] : memref<8x32xf32, #tpu.memory_space<vmem>>, vector<8x32xf32>
    tpu.vector_store %arg7[%c0_141, %c0_142], %270 {strides = array<i32>} : memref<8x32xf32, #tpu.memory_space<vmem>>, vector<8x32xf32>,
    %c0_143 = arith.constant 0 : index
    %c0_144 = arith.constant 0 : index
    %272 = vector.load %arg8[%c0_143, %c0_144] : memref<8x32xf32, #tpu.memory_space<vmem>>, vector<8x32xf32>
    tpu.vector_store %arg8[%c0_143, %c0_144], %268 {strides = array<i32>} : memref<8x32xf32, #tpu.memory_space<vmem>>, vector<8x32xf32>,
    %273 = arith.index_cast %232 : i32 to index
    %c0_145 = arith.constant 0 : index
    %c32_146 = arith.constant 32 : index
    %274 = vector.load %arg4[%273, %c0_145, %c32_146] : memref<8x8x64xf32, #tpu.memory_space<vmem>>, vector<1x8x32xf32>
    %275 = vector.shape_cast %274 : vector<1x8x32xf32> to vector<8x32xf32>
    %276 = vector.shape_cast %270 : vector<8x32xf32> to vector<1x8x32xf32>
    tpu.vector_store %arg4[%273, %c0_145, %c32_146], %276 {strides = array<i32>} : memref<8x8x64xf32, #tpu.memory_space<vmem>>, vector<1x8x32xf32>,
    %c3_i32 = arith.constant 3 : i32
    %c0_147 = arith.constant 0 : index
    %c0_148 = arith.constant 0 : index
    %277 = vector.load %arg5[%c0_147, %c0_148] : memref<8x32xf32, #tpu.memory_space<vmem>>, vector<8x32xf32>
    %cst_149 = arith.constant dense<0.000000e+00> : vector<8x128xf32>
    %278 = tpu.matmul %277, %8, %cst_149 {dimension_numbers = #tpu.dot_dimension_numbers<[1], [0], [0], [1], [0, 0, 1, 1], [], []>} : vector<8x32xf32>, vector<32x128xf32>, vector<8x128xf32> -> vector<8x128xf32>
    %279 = arith.index_cast %c3_i32 : i32 to index
    %c0_150 = arith.constant 0 : index
    %c0_151 = arith.constant 0 : index
    %280 = vector.load %arg0[%279, %c0_150, %c0_151] : memref<8x8x128xf32, #tpu.memory_space<vmem>>, vector<1x8x128xf32>
    %281 = vector.shape_cast %280 : vector<1x8x128xf32> to vector<8x128xf32>
    %282 = arith.addf %278, %281 : vector<8x128xf32>
    %c0_152 = arith.constant 0 : index
    %c0_153 = arith.constant 0 : index
    %283 = vector.load %arg6[%c0_152, %c0_153] : memref<8x32xf32, #tpu.memory_space<vmem>>, vector<8x32xf32>
    %284 = vector.extract_strided_slice %282 {offsets = [0, 0], sizes = [8, 32], strides = [1, 1]} : vector<8x128xf32> to vector<8x32xf32>
    %cst_154 = arith.constant 5.000000e-01 : f32
    %285 = vector.broadcast %cst_154 : f32 to vector<8x32xf32>
    %286 = arith.mulf %285, %284 : vector<8x32xf32>
    %287 = math.tanh %286 : vector<8x32xf32>
    %cst_155 = arith.constant 1.000000e+00 : f32
    %288 = vector.broadcast %cst_155 : f32 to vector<8x32xf32>
    %289 = arith.addf %287, %288 : vector<8x32xf32>
    %cst_156 = arith.constant 5.000000e-01 : f32
    %290 = vector.broadcast %cst_156 : f32 to vector<8x32xf32>
    %291 = arith.mulf %290, %289 : vector<8x32xf32>
    %292 = vector.extract_strided_slice %282 {offsets = [0, 32], sizes = [8, 32], strides = [1, 1]} : vector<8x128xf32> to vector<8x32xf32>
    %cst_157 = arith.constant 5.000000e-01 : f32
    %293 = vector.broadcast %cst_157 : f32 to vector<8x32xf32>
    %294 = arith.mulf %293, %292 : vector<8x32xf32>
    %295 = math.tanh %294 : vector<8x32xf32>
    %cst_158 = arith.constant 1.000000e+00 : f32
    %296 = vector.broadcast %cst_158 : f32 to vector<8x32xf32>
    %297 = arith.addf %295, %296 : vector<8x32xf32>
    %cst_159 = arith.constant 5.000000e-01 : f32
    %298 = vector.broadcast %cst_159 : f32 to vector<8x32xf32>
    %299 = arith.mulf %298, %297 : vector<8x32xf32>
    %300 = vector.extract_strided_slice %282 {offsets = [0, 64], sizes = [8, 32], strides = [1, 1]} : vector<8x128xf32> to vector<8x32xf32>
    %301 = math.tanh %300 : vector<8x32xf32>
    %302 = vector.extract_strided_slice %282 {offsets = [0, 96], sizes = [8, 32], strides = [1, 1]} : vector<8x128xf32> to vector<8x32xf32>
    %cst_160 = arith.constant 5.000000e-01 : f32
    %303 = vector.broadcast %cst_160 : f32 to vector<8x32xf32>
    %304 = arith.mulf %303, %302 : vector<8x32xf32>
    %305 = math.tanh %304 : vector<8x32xf32>
    %cst_161 = arith.constant 1.000000e+00 : f32
    %306 = vector.broadcast %cst_161 : f32 to vector<8x32xf32>
    %307 = arith.addf %305, %306 : vector<8x32xf32>
    %cst_162 = arith.constant 5.000000e-01 : f32
    %308 = vector.broadcast %cst_162 : f32 to vector<8x32xf32>
    %309 = arith.mulf %308, %307 : vector<8x32xf32>
    %310 = arith.mulf %299, %283 : vector<8x32xf32>
    %311 = arith.mulf %291, %301 : vector<8x32xf32>
    %312 = arith.addf %310, %311 : vector<8x32xf32>
    %313 = math.tanh %312 : vector<8x32xf32>
    %314 = arith.mulf %309, %313 : vector<8x32xf32>
    %c0_163 = arith.constant 0 : index
    %c0_164 = arith.constant 0 : index
    %315 = vector.load %arg5[%c0_163, %c0_164] : memref<8x32xf32, #tpu.memory_space<vmem>>, vector<8x32xf32>
    tpu.vector_store %arg5[%c0_163, %c0_164], %314 {strides = array<i32>} : memref<8x32xf32, #tpu.memory_space<vmem>>, vector<8x32xf32>,
    %c0_165 = arith.constant 0 : index
    %c0_166 = arith.constant 0 : index
    %316 = vector.load %arg6[%c0_165, %c0_166] : memref<8x32xf32, #tpu.memory_space<vmem>>, vector<8x32xf32>
    tpu.vector_store %arg6[%c0_165, %c0_166], %312 {strides = array<i32>} : memref<8x32xf32, #tpu.memory_space<vmem>>, vector<8x32xf32>,
    %317 = arith.index_cast %c3_i32 : i32 to index
    %c0_167 = arith.constant 0 : index
    %c0_168 = arith.constant 0 : index
    %318 = vector.load %arg4[%317, %c0_167, %c0_168] : memref<8x8x64xf32, #tpu.memory_space<vmem>>, vector<1x8x32xf32>
    %319 = vector.shape_cast %318 : vector<1x8x32xf32> to vector<8x32xf32>
    %320 = vector.shape_cast %314 : vector<8x32xf32> to vector<1x8x32xf32>
    tpu.vector_store %arg4[%317, %c0_167, %c0_168], %320 {strides = array<i32>} : memref<8x8x64xf32, #tpu.memory_space<vmem>>, vector<1x8x32xf32>,
    %c7_i32_169 = arith.constant 7 : i32
    %321 = arith.subi %c7_i32_169, %c3_i32 : i32
    %c0_170 = arith.constant 0 : index
    %c0_171 = arith.constant 0 : index
    %322 = vector.load %arg7[%c0_170, %c0_171] : memref<8x32xf32, #tpu.memory_space<vmem>>, vector<8x32xf32>
    %cst_172 = arith.constant dense<0.000000e+00> : vector<8x128xf32>
    %323 = tpu.matmul %322, %9, %cst_172 {dimension_numbers = #tpu.dot_dimension_numbers<[1], [0], [0], [1], [0, 0, 1, 1], [], []>} : vector<8x32xf32>, vector<32x128xf32>, vector<8x128xf32> -> vector<8x128xf32>
    %324 = arith.index_cast %321 : i32 to index
    %c0_173 = arith.constant 0 : index
    %c0_174 = arith.constant 0 : index
    %325 = vector.load %arg1[%324, %c0_173, %c0_174] : memref<8x8x128xf32, #tpu.memory_space<vmem>>, vector<1x8x128xf32>
    %326 = vector.shape_cast %325 : vector<1x8x128xf32> to vector<8x128xf32>
    %327 = arith.addf %323, %326 : vector<8x128xf32>
    %c0_175 = arith.constant 0 : index
    %c0_176 = arith.constant 0 : index
    %328 = vector.load %arg8[%c0_175, %c0_176] : memref<8x32xf32, #tpu.memory_space<vmem>>, vector<8x32xf32>
    %329 = vector.extract_strided_slice %327 {offsets = [0, 0], sizes = [8, 32], strides = [1, 1]} : vector<8x128xf32> to vector<8x32xf32>
    %cst_177 = arith.constant 5.000000e-01 : f32
    %330 = vector.broadcast %cst_177 : f32 to vector<8x32xf32>
    %331 = arith.mulf %330, %329 : vector<8x32xf32>
    %332 = math.tanh %331 : vector<8x32xf32>
    %cst_178 = arith.constant 1.000000e+00 : f32
    %333 = vector.broadcast %cst_178 : f32 to vector<8x32xf32>
    %334 = arith.addf %332, %333 : vector<8x32xf32>
    %cst_179 = arith.constant 5.000000e-01 : f32
    %335 = vector.broadcast %cst_179 : f32 to vector<8x32xf32>
    %336 = arith.mulf %335, %334 : vector<8x32xf32>
    %337 = vector.extract_strided_slice %327 {offsets = [0, 32], sizes = [8, 32], strides = [1, 1]} : vector<8x128xf32> to vector<8x32xf32>
    %cst_180 = arith.constant 5.000000e-01 : f32
    %338 = vector.broadcast %cst_180 : f32 to vector<8x32xf32>
    %339 = arith.mulf %338, %337 : vector<8x32xf32>
    %340 = math.tanh %339 : vector<8x32xf32>
    %cst_181 = arith.constant 1.000000e+00 : f32
    %341 = vector.broadcast %cst_181 : f32 to vector<8x32xf32>
    %342 = arith.addf %340, %341 : vector<8x32xf32>
    %cst_182 = arith.constant 5.000000e-01 : f32
    %343 = vector.broadcast %cst_182 : f32 to vector<8x32xf32>
    %344 = arith.mulf %343, %342 : vector<8x32xf32>
    %345 = vector.extract_strided_slice %327 {offsets = [0, 64], sizes = [8, 32], strides = [1, 1]} : vector<8x128xf32> to vector<8x32xf32>
    %346 = math.tanh %345 : vector<8x32xf32>
    %347 = vector.extract_strided_slice %327 {offsets = [0, 96], sizes = [8, 32], strides = [1, 1]} : vector<8x128xf32> to vector<8x32xf32>
    %cst_183 = arith.constant 5.000000e-01 : f32
    %348 = vector.broadcast %cst_183 : f32 to vector<8x32xf32>
    %349 = arith.mulf %348, %347 : vector<8x32xf32>
    %350 = math.tanh %349 : vector<8x32xf32>
    %cst_184 = arith.constant 1.000000e+00 : f32
    %351 = vector.broadcast %cst_184 : f32 to vector<8x32xf32>
    %352 = arith.addf %350, %351 : vector<8x32xf32>
    %cst_185 = arith.constant 5.000000e-01 : f32
    %353 = vector.broadcast %cst_185 : f32 to vector<8x32xf32>
    %354 = arith.mulf %353, %352 : vector<8x32xf32>
    %355 = arith.mulf %344, %328 : vector<8x32xf32>
    %356 = arith.mulf %336, %346 : vector<8x32xf32>
    %357 = arith.addf %355, %356 : vector<8x32xf32>
    %358 = math.tanh %357 : vector<8x32xf32>
    %359 = arith.mulf %354, %358 : vector<8x32xf32>
    %c0_186 = arith.constant 0 : index
    %c0_187 = arith.constant 0 : index
    %360 = vector.load %arg7[%c0_186, %c0_187] : memref<8x32xf32, #tpu.memory_space<vmem>>, vector<8x32xf32>
    tpu.vector_store %arg7[%c0_186, %c0_187], %359 {strides = array<i32>} : memref<8x32xf32, #tpu.memory_space<vmem>>, vector<8x32xf32>,
    %c0_188 = arith.constant 0 : index
    %c0_189 = arith.constant 0 : index
    %361 = vector.load %arg8[%c0_188, %c0_189] : memref<8x32xf32, #tpu.memory_space<vmem>>, vector<8x32xf32>
    tpu.vector_store %arg8[%c0_188, %c0_189], %357 {strides = array<i32>} : memref<8x32xf32, #tpu.memory_space<vmem>>, vector<8x32xf32>,
    %362 = arith.index_cast %321 : i32 to index
    %c0_190 = arith.constant 0 : index
    %c32_191 = arith.constant 32 : index
    %363 = vector.load %arg4[%362, %c0_190, %c32_191] : memref<8x8x64xf32, #tpu.memory_space<vmem>>, vector<1x8x32xf32>
    %364 = vector.shape_cast %363 : vector<1x8x32xf32> to vector<8x32xf32>
    %365 = vector.shape_cast %359 : vector<8x32xf32> to vector<1x8x32xf32>
    tpu.vector_store %arg4[%362, %c0_190, %c32_191], %365 {strides = array<i32>} : memref<8x8x64xf32, #tpu.memory_space<vmem>>, vector<1x8x32xf32>,
    %c4_i32 = arith.constant 4 : i32
    %c0_192 = arith.constant 0 : index
    %c0_193 = arith.constant 0 : index
    %366 = vector.load %arg5[%c0_192, %c0_193] : memref<8x32xf32, #tpu.memory_space<vmem>>, vector<8x32xf32>
    %cst_194 = arith.constant dense<0.000000e+00> : vector<8x128xf32>
    %367 = tpu.matmul %366, %8, %cst_194 {dimension_numbers = #tpu.dot_dimension_numbers<[1], [0], [0], [1], [0, 0, 1, 1], [], []>} : vector<8x32xf32>, vector<32x128xf32>, vector<8x128xf32> -> vector<8x128xf32>
    %368 = arith.index_cast %c4_i32 : i32 to index
    %c0_195 = arith.constant 0 : index
    %c0_196 = arith.constant 0 : index
    %369 = vector.load %arg0[%368, %c0_195, %c0_196] : memref<8x8x128xf32, #tpu.memory_space<vmem>>, vector<1x8x128xf32>
    %370 = vector.shape_cast %369 : vector<1x8x128xf32> to vector<8x128xf32>
    %371 = arith.addf %367, %370 : vector<8x128xf32>
    %c0_197 = arith.constant 0 : index
    %c0_198 = arith.constant 0 : index
    %372 = vector.load %arg6[%c0_197, %c0_198] : memref<8x32xf32, #tpu.memory_space<vmem>>, vector<8x32xf32>
    %373 = vector.extract_strided_slice %371 {offsets = [0, 0], sizes = [8, 32], strides = [1, 1]} : vector<8x128xf32> to vector<8x32xf32>
    %cst_199 = arith.constant 5.000000e-01 : f32
    %374 = vector.broadcast %cst_199 : f32 to vector<8x32xf32>
    %375 = arith.mulf %374, %373 : vector<8x32xf32>
    %376 = math.tanh %375 : vector<8x32xf32>
    %cst_200 = arith.constant 1.000000e+00 : f32
    %377 = vector.broadcast %cst_200 : f32 to vector<8x32xf32>
    %378 = arith.addf %376, %377 : vector<8x32xf32>
    %cst_201 = arith.constant 5.000000e-01 : f32
    %379 = vector.broadcast %cst_201 : f32 to vector<8x32xf32>
    %380 = arith.mulf %379, %378 : vector<8x32xf32>
    %381 = vector.extract_strided_slice %371 {offsets = [0, 32], sizes = [8, 32], strides = [1, 1]} : vector<8x128xf32> to vector<8x32xf32>
    %cst_202 = arith.constant 5.000000e-01 : f32
    %382 = vector.broadcast %cst_202 : f32 to vector<8x32xf32>
    %383 = arith.mulf %382, %381 : vector<8x32xf32>
    %384 = math.tanh %383 : vector<8x32xf32>
    %cst_203 = arith.constant 1.000000e+00 : f32
    %385 = vector.broadcast %cst_203 : f32 to vector<8x32xf32>
    %386 = arith.addf %384, %385 : vector<8x32xf32>
    %cst_204 = arith.constant 5.000000e-01 : f32
    %387 = vector.broadcast %cst_204 : f32 to vector<8x32xf32>
    %388 = arith.mulf %387, %386 : vector<8x32xf32>
    %389 = vector.extract_strided_slice %371 {offsets = [0, 64], sizes = [8, 32], strides = [1, 1]} : vector<8x128xf32> to vector<8x32xf32>
    %390 = math.tanh %389 : vector<8x32xf32>
    %391 = vector.extract_strided_slice %371 {offsets = [0, 96], sizes = [8, 32], strides = [1, 1]} : vector<8x128xf32> to vector<8x32xf32>
    %cst_205 = arith.constant 5.000000e-01 : f32
    %392 = vector.broadcast %cst_205 : f32 to vector<8x32xf32>
    %393 = arith.mulf %392, %391 : vector<8x32xf32>
    %394 = math.tanh %393 : vector<8x32xf32>
    %cst_206 = arith.constant 1.000000e+00 : f32
    %395 = vector.broadcast %cst_206 : f32 to vector<8x32xf32>
    %396 = arith.addf %394, %395 : vector<8x32xf32>
    %cst_207 = arith.constant 5.000000e-01 : f32
    %397 = vector.broadcast %cst_207 : f32 to vector<8x32xf32>
    %398 = arith.mulf %397, %396 : vector<8x32xf32>
    %399 = arith.mulf %388, %372 : vector<8x32xf32>
    %400 = arith.mulf %380, %390 : vector<8x32xf32>
    %401 = arith.addf %399, %400 : vector<8x32xf32>
    %402 = math.tanh %401 : vector<8x32xf32>
    %403 = arith.mulf %398, %402 : vector<8x32xf32>
    %c0_208 = arith.constant 0 : index
    %c0_209 = arith.constant 0 : index
    %404 = vector.load %arg5[%c0_208, %c0_209] : memref<8x32xf32, #tpu.memory_space<vmem>>, vector<8x32xf32>
    tpu.vector_store %arg5[%c0_208, %c0_209], %403 {strides = array<i32>} : memref<8x32xf32, #tpu.memory_space<vmem>>, vector<8x32xf32>,
    %c0_210 = arith.constant 0 : index
    %c0_211 = arith.constant 0 : index
    %405 = vector.load %arg6[%c0_210, %c0_211] : memref<8x32xf32, #tpu.memory_space<vmem>>, vector<8x32xf32>
    tpu.vector_store %arg6[%c0_210, %c0_211], %401 {strides = array<i32>} : memref<8x32xf32, #tpu.memory_space<vmem>>, vector<8x32xf32>,
    %406 = arith.index_cast %c4_i32 : i32 to index
    %c0_212 = arith.constant 0 : index
    %c0_213 = arith.constant 0 : index
    %407 = vector.load %arg4[%406, %c0_212, %c0_213] : memref<8x8x64xf32, #tpu.memory_space<vmem>>, vector<1x8x32xf32>
    %408 = vector.shape_cast %407 : vector<1x8x32xf32> to vector<8x32xf32>
    %409 = vector.shape_cast %403 : vector<8x32xf32> to vector<1x8x32xf32>
    tpu.vector_store %arg4[%406, %c0_212, %c0_213], %409 {strides = array<i32>} : memref<8x8x64xf32, #tpu.memory_space<vmem>>, vector<1x8x32xf32>,
    %c7_i32_214 = arith.constant 7 : i32
    %410 = arith.subi %c7_i32_214, %c4_i32 : i32
    %c0_215 = arith.constant 0 : index
    %c0_216 = arith.constant 0 : index
    %411 = vector.load %arg7[%c0_215, %c0_216] : memref<8x32xf32, #tpu.memory_space<vmem>>, vector<8x32xf32>
    %cst_217 = arith.constant dense<0.000000e+00> : vector<8x128xf32>
    %412 = tpu.matmul %411, %9, %cst_217 {dimension_numbers = #tpu.dot_dimension_numbers<[1], [0], [0], [1], [0, 0, 1, 1], [], []>} : vector<8x32xf32>, vector<32x128xf32>, vector<8x128xf32> -> vector<8x128xf32>
    %413 = arith.index_cast %410 : i32 to index
    %c0_218 = arith.constant 0 : index
    %c0_219 = arith.constant 0 : index
    %414 = vector.load %arg1[%413, %c0_218, %c0_219] : memref<8x8x128xf32, #tpu.memory_space<vmem>>, vector<1x8x128xf32>
    %415 = vector.shape_cast %414 : vector<1x8x128xf32> to vector<8x128xf32>
    %416 = arith.addf %412, %415 : vector<8x128xf32>
    %c0_220 = arith.constant 0 : index
    %c0_221 = arith.constant 0 : index
    %417 = vector.load %arg8[%c0_220, %c0_221] : memref<8x32xf32, #tpu.memory_space<vmem>>, vector<8x32xf32>
    %418 = vector.extract_strided_slice %416 {offsets = [0, 0], sizes = [8, 32], strides = [1, 1]} : vector<8x128xf32> to vector<8x32xf32>
    %cst_222 = arith.constant 5.000000e-01 : f32
    %419 = vector.broadcast %cst_222 : f32 to vector<8x32xf32>
    %420 = arith.mulf %419, %418 : vector<8x32xf32>
    %421 = math.tanh %420 : vector<8x32xf32>
    %cst_223 = arith.constant 1.000000e+00 : f32
    %422 = vector.broadcast %cst_223 : f32 to vector<8x32xf32>
    %423 = arith.addf %421, %422 : vector<8x32xf32>
    %cst_224 = arith.constant 5.000000e-01 : f32
    %424 = vector.broadcast %cst_224 : f32 to vector<8x32xf32>
    %425 = arith.mulf %424, %423 : vector<8x32xf32>
    %426 = vector.extract_strided_slice %416 {offsets = [0, 32], sizes = [8, 32], strides = [1, 1]} : vector<8x128xf32> to vector<8x32xf32>
    %cst_225 = arith.constant 5.000000e-01 : f32
    %427 = vector.broadcast %cst_225 : f32 to vector<8x32xf32>
    %428 = arith.mulf %427, %426 : vector<8x32xf32>
    %429 = math.tanh %428 : vector<8x32xf32>
    %cst_226 = arith.constant 1.000000e+00 : f32
    %430 = vector.broadcast %cst_226 : f32 to vector<8x32xf32>
    %431 = arith.addf %429, %430 : vector<8x32xf32>
    %cst_227 = arith.constant 5.000000e-01 : f32
    %432 = vector.broadcast %cst_227 : f32 to vector<8x32xf32>
    %433 = arith.mulf %432, %431 : vector<8x32xf32>
    %434 = vector.extract_strided_slice %416 {offsets = [0, 64], sizes = [8, 32], strides = [1, 1]} : vector<8x128xf32> to vector<8x32xf32>
    %435 = math.tanh %434 : vector<8x32xf32>
    %436 = vector.extract_strided_slice %416 {offsets = [0, 96], sizes = [8, 32], strides = [1, 1]} : vector<8x128xf32> to vector<8x32xf32>
    %cst_228 = arith.constant 5.000000e-01 : f32
    %437 = vector.broadcast %cst_228 : f32 to vector<8x32xf32>
    %438 = arith.mulf %437, %436 : vector<8x32xf32>
    %439 = math.tanh %438 : vector<8x32xf32>
    %cst_229 = arith.constant 1.000000e+00 : f32
    %440 = vector.broadcast %cst_229 : f32 to vector<8x32xf32>
    %441 = arith.addf %439, %440 : vector<8x32xf32>
    %cst_230 = arith.constant 5.000000e-01 : f32
    %442 = vector.broadcast %cst_230 : f32 to vector<8x32xf32>
    %443 = arith.mulf %442, %441 : vector<8x32xf32>
    %444 = arith.mulf %433, %417 : vector<8x32xf32>
    %445 = arith.mulf %425, %435 : vector<8x32xf32>
    %446 = arith.addf %444, %445 : vector<8x32xf32>
    %447 = math.tanh %446 : vector<8x32xf32>
    %448 = arith.mulf %443, %447 : vector<8x32xf32>
    %c0_231 = arith.constant 0 : index
    %c0_232 = arith.constant 0 : index
    %449 = vector.load %arg7[%c0_231, %c0_232] : memref<8x32xf32, #tpu.memory_space<vmem>>, vector<8x32xf32>
    tpu.vector_store %arg7[%c0_231, %c0_232], %448 {strides = array<i32>} : memref<8x32xf32, #tpu.memory_space<vmem>>, vector<8x32xf32>,
    %c0_233 = arith.constant 0 : index
    %c0_234 = arith.constant 0 : index
    %450 = vector.load %arg8[%c0_233, %c0_234] : memref<8x32xf32, #tpu.memory_space<vmem>>, vector<8x32xf32>
    tpu.vector_store %arg8[%c0_233, %c0_234], %446 {strides = array<i32>} : memref<8x32xf32, #tpu.memory_space<vmem>>, vector<8x32xf32>,
    %451 = arith.index_cast %410 : i32 to index
    %c0_235 = arith.constant 0 : index
    %c32_236 = arith.constant 32 : index
    %452 = vector.load %arg4[%451, %c0_235, %c32_236] : memref<8x8x64xf32, #tpu.memory_space<vmem>>, vector<1x8x32xf32>
    %453 = vector.shape_cast %452 : vector<1x8x32xf32> to vector<8x32xf32>
    %454 = vector.shape_cast %448 : vector<8x32xf32> to vector<1x8x32xf32>
    tpu.vector_store %arg4[%451, %c0_235, %c32_236], %454 {strides = array<i32>} : memref<8x8x64xf32, #tpu.memory_space<vmem>>, vector<1x8x32xf32>,
    %c5_i32 = arith.constant 5 : i32
    %c0_237 = arith.constant 0 : index
    %c0_238 = arith.constant 0 : index
    %455 = vector.load %arg5[%c0_237, %c0_238] : memref<8x32xf32, #tpu.memory_space<vmem>>, vector<8x32xf32>
    %cst_239 = arith.constant dense<0.000000e+00> : vector<8x128xf32>
    %456 = tpu.matmul %455, %8, %cst_239 {dimension_numbers = #tpu.dot_dimension_numbers<[1], [0], [0], [1], [0, 0, 1, 1], [], []>} : vector<8x32xf32>, vector<32x128xf32>, vector<8x128xf32> -> vector<8x128xf32>
    %457 = arith.index_cast %c5_i32 : i32 to index
    %c0_240 = arith.constant 0 : index
    %c0_241 = arith.constant 0 : index
    %458 = vector.load %arg0[%457, %c0_240, %c0_241] : memref<8x8x128xf32, #tpu.memory_space<vmem>>, vector<1x8x128xf32>
    %459 = vector.shape_cast %458 : vector<1x8x128xf32> to vector<8x128xf32>
    %460 = arith.addf %456, %459 : vector<8x128xf32>
    %c0_242 = arith.constant 0 : index
    %c0_243 = arith.constant 0 : index
    %461 = vector.load %arg6[%c0_242, %c0_243] : memref<8x32xf32, #tpu.memory_space<vmem>>, vector<8x32xf32>
    %462 = vector.extract_strided_slice %460 {offsets = [0, 0], sizes = [8, 32], strides = [1, 1]} : vector<8x128xf32> to vector<8x32xf32>
    %cst_244 = arith.constant 5.000000e-01 : f32
    %463 = vector.broadcast %cst_244 : f32 to vector<8x32xf32>
    %464 = arith.mulf %463, %462 : vector<8x32xf32>
    %465 = math.tanh %464 : vector<8x32xf32>
    %cst_245 = arith.constant 1.000000e+00 : f32
    %466 = vector.broadcast %cst_245 : f32 to vector<8x32xf32>
    %467 = arith.addf %465, %466 : vector<8x32xf32>
    %cst_246 = arith.constant 5.000000e-01 : f32
    %468 = vector.broadcast %cst_246 : f32 to vector<8x32xf32>
    %469 = arith.mulf %468, %467 : vector<8x32xf32>
    %470 = vector.extract_strided_slice %460 {offsets = [0, 32], sizes = [8, 32], strides = [1, 1]} : vector<8x128xf32> to vector<8x32xf32>
    %cst_247 = arith.constant 5.000000e-01 : f32
    %471 = vector.broadcast %cst_247 : f32 to vector<8x32xf32>
    %472 = arith.mulf %471, %470 : vector<8x32xf32>
    %473 = math.tanh %472 : vector<8x32xf32>
    %cst_248 = arith.constant 1.000000e+00 : f32
    %474 = vector.broadcast %cst_248 : f32 to vector<8x32xf32>
    %475 = arith.addf %473, %474 : vector<8x32xf32>
    %cst_249 = arith.constant 5.000000e-01 : f32
    %476 = vector.broadcast %cst_249 : f32 to vector<8x32xf32>
    %477 = arith.mulf %476, %475 : vector<8x32xf32>
    %478 = vector.extract_strided_slice %460 {offsets = [0, 64], sizes = [8, 32], strides = [1, 1]} : vector<8x128xf32> to vector<8x32xf32>
    %479 = math.tanh %478 : vector<8x32xf32>
    %480 = vector.extract_strided_slice %460 {offsets = [0, 96], sizes = [8, 32], strides = [1, 1]} : vector<8x128xf32> to vector<8x32xf32>
    %cst_250 = arith.constant 5.000000e-01 : f32
    %481 = vector.broadcast %cst_250 : f32 to vector<8x32xf32>
    %482 = arith.mulf %481, %480 : vector<8x32xf32>
    %483 = math.tanh %482 : vector<8x32xf32>
    %cst_251 = arith.constant 1.000000e+00 : f32
    %484 = vector.broadcast %cst_251 : f32 to vector<8x32xf32>
    %485 = arith.addf %483, %484 : vector<8x32xf32>
    %cst_252 = arith.constant 5.000000e-01 : f32
    %486 = vector.broadcast %cst_252 : f32 to vector<8x32xf32>
    %487 = arith.mulf %486, %485 : vector<8x32xf32>
    %488 = arith.mulf %477, %461 : vector<8x32xf32>
    %489 = arith.mulf %469, %479 : vector<8x32xf32>
    %490 = arith.addf %488, %489 : vector<8x32xf32>
    %491 = math.tanh %490 : vector<8x32xf32>
    %492 = arith.mulf %487, %491 : vector<8x32xf32>
    %c0_253 = arith.constant 0 : index
    %c0_254 = arith.constant 0 : index
    %493 = vector.load %arg5[%c0_253, %c0_254] : memref<8x32xf32, #tpu.memory_space<vmem>>, vector<8x32xf32>
    tpu.vector_store %arg5[%c0_253, %c0_254], %492 {strides = array<i32>} : memref<8x32xf32, #tpu.memory_space<vmem>>, vector<8x32xf32>,
    %c0_255 = arith.constant 0 : index
    %c0_256 = arith.constant 0 : index
    %494 = vector.load %arg6[%c0_255, %c0_256] : memref<8x32xf32, #tpu.memory_space<vmem>>, vector<8x32xf32>
    tpu.vector_store %arg6[%c0_255, %c0_256], %490 {strides = array<i32>} : memref<8x32xf32, #tpu.memory_space<vmem>>, vector<8x32xf32>,
    %495 = arith.index_cast %c5_i32 : i32 to index
    %c0_257 = arith.constant 0 : index
    %c0_258 = arith.constant 0 : index
    %496 = vector.load %arg4[%495, %c0_257, %c0_258] : memref<8x8x64xf32, #tpu.memory_space<vmem>>, vector<1x8x32xf32>
    %497 = vector.shape_cast %496 : vector<1x8x32xf32> to vector<8x32xf32>
    %498 = vector.shape_cast %492 : vector<8x32xf32> to vector<1x8x32xf32>
    tpu.vector_store %arg4[%495, %c0_257, %c0_258], %498 {strides = array<i32>} : memref<8x8x64xf32, #tpu.memory_space<vmem>>, vector<1x8x32xf32>,
    %c7_i32_259 = arith.constant 7 : i32
    %499 = arith.subi %c7_i32_259, %c5_i32 : i32
    %c0_260 = arith.constant 0 : index
    %c0_261 = arith.constant 0 : index
    %500 = vector.load %arg7[%c0_260, %c0_261] : memref<8x32xf32, #tpu.memory_space<vmem>>, vector<8x32xf32>
    %cst_262 = arith.constant dense<0.000000e+00> : vector<8x128xf32>
    %501 = tpu.matmul %500, %9, %cst_262 {dimension_numbers = #tpu.dot_dimension_numbers<[1], [0], [0], [1], [0, 0, 1, 1], [], []>} : vector<8x32xf32>, vector<32x128xf32>, vector<8x128xf32> -> vector<8x128xf32>
    %502 = arith.index_cast %499 : i32 to index
    %c0_263 = arith.constant 0 : index
    %c0_264 = arith.constant 0 : index
    %503 = vector.load %arg1[%502, %c0_263, %c0_264] : memref<8x8x128xf32, #tpu.memory_space<vmem>>, vector<1x8x128xf32>
    %504 = vector.shape_cast %503 : vector<1x8x128xf32> to vector<8x128xf32>
    %505 = arith.addf %501, %504 : vector<8x128xf32>
    %c0_265 = arith.constant 0 : index
    %c0_266 = arith.constant 0 : index
    %506 = vector.load %arg8[%c0_265, %c0_266] : memref<8x32xf32, #tpu.memory_space<vmem>>, vector<8x32xf32>
    %507 = vector.extract_strided_slice %505 {offsets = [0, 0], sizes = [8, 32], strides = [1, 1]} : vector<8x128xf32> to vector<8x32xf32>
    %cst_267 = arith.constant 5.000000e-01 : f32
    %508 = vector.broadcast %cst_267 : f32 to vector<8x32xf32>
    %509 = arith.mulf %508, %507 : vector<8x32xf32>
    %510 = math.tanh %509 : vector<8x32xf32>
    %cst_268 = arith.constant 1.000000e+00 : f32
    %511 = vector.broadcast %cst_268 : f32 to vector<8x32xf32>
    %512 = arith.addf %510, %511 : vector<8x32xf32>
    %cst_269 = arith.constant 5.000000e-01 : f32
    %513 = vector.broadcast %cst_269 : f32 to vector<8x32xf32>
    %514 = arith.mulf %513, %512 : vector<8x32xf32>
    %515 = vector.extract_strided_slice %505 {offsets = [0, 32], sizes = [8, 32], strides = [1, 1]} : vector<8x128xf32> to vector<8x32xf32>
    %cst_270 = arith.constant 5.000000e-01 : f32
    %516 = vector.broadcast %cst_270 : f32 to vector<8x32xf32>
    %517 = arith.mulf %516, %515 : vector<8x32xf32>
    %518 = math.tanh %517 : vector<8x32xf32>
    %cst_271 = arith.constant 1.000000e+00 : f32
    %519 = vector.broadcast %cst_271 : f32 to vector<8x32xf32>
    %520 = arith.addf %518, %519 : vector<8x32xf32>
    %cst_272 = arith.constant 5.000000e-01 : f32
    %521 = vector.broadcast %cst_272 : f32 to vector<8x32xf32>
    %522 = arith.mulf %521, %520 : vector<8x32xf32>
    %523 = vector.extract_strided_slice %505 {offsets = [0, 64], sizes = [8, 32], strides = [1, 1]} : vector<8x128xf32> to vector<8x32xf32>
    %524 = math.tanh %523 : vector<8x32xf32>
    %525 = vector.extract_strided_slice %505 {offsets = [0, 96], sizes = [8, 32], strides = [1, 1]} : vector<8x128xf32> to vector<8x32xf32>
    %cst_273 = arith.constant 5.000000e-01 : f32
    %526 = vector.broadcast %cst_273 : f32 to vector<8x32xf32>
    %527 = arith.mulf %526, %525 : vector<8x32xf32>
    %528 = math.tanh %527 : vector<8x32xf32>
    %cst_274 = arith.constant 1.000000e+00 : f32
    %529 = vector.broadcast %cst_274 : f32 to vector<8x32xf32>
    %530 = arith.addf %528, %529 : vector<8x32xf32>
    %cst_275 = arith.constant 5.000000e-01 : f32
    %531 = vector.broadcast %cst_275 : f32 to vector<8x32xf32>
    %532 = arith.mulf %531, %530 : vector<8x32xf32>
    %533 = arith.mulf %522, %506 : vector<8x32xf32>
    %534 = arith.mulf %514, %524 : vector<8x32xf32>
    %535 = arith.addf %533, %534 : vector<8x32xf32>
    %536 = math.tanh %535 : vector<8x32xf32>
    %537 = arith.mulf %532, %536 : vector<8x32xf32>
    %c0_276 = arith.constant 0 : index
    %c0_277 = arith.constant 0 : index
    %538 = vector.load %arg7[%c0_276, %c0_277] : memref<8x32xf32, #tpu.memory_space<vmem>>, vector<8x32xf32>
    tpu.vector_store %arg7[%c0_276, %c0_277], %537 {strides = array<i32>} : memref<8x32xf32, #tpu.memory_space<vmem>>, vector<8x32xf32>,
    %c0_278 = arith.constant 0 : index
    %c0_279 = arith.constant 0 : index
    %539 = vector.load %arg8[%c0_278, %c0_279] : memref<8x32xf32, #tpu.memory_space<vmem>>, vector<8x32xf32>
    tpu.vector_store %arg8[%c0_278, %c0_279], %535 {strides = array<i32>} : memref<8x32xf32, #tpu.memory_space<vmem>>, vector<8x32xf32>,
    %540 = arith.index_cast %499 : i32 to index
    %c0_280 = arith.constant 0 : index
    %c32_281 = arith.constant 32 : index
    %541 = vector.load %arg4[%540, %c0_280, %c32_281] : memref<8x8x64xf32, #tpu.memory_space<vmem>>, vector<1x8x32xf32>
    %542 = vector.shape_cast %541 : vector<1x8x32xf32> to vector<8x32xf32>
    %543 = vector.shape_cast %537 : vector<8x32xf32> to vector<1x8x32xf32>
    tpu.vector_store %arg4[%540, %c0_280, %c32_281], %543 {strides = array<i32>} : memref<8x8x64xf32, #tpu.memory_space<vmem>>, vector<1x8x32xf32>,
    %c6_i32 = arith.constant 6 : i32
    %c0_282 = arith.constant 0 : index
    %c0_283 = arith.constant 0 : index
    %544 = vector.load %arg5[%c0_282, %c0_283] : memref<8x32xf32, #tpu.memory_space<vmem>>, vector<8x32xf32>
    %cst_284 = arith.constant dense<0.000000e+00> : vector<8x128xf32>
    %545 = tpu.matmul %544, %8, %cst_284 {dimension_numbers = #tpu.dot_dimension_numbers<[1], [0], [0], [1], [0, 0, 1, 1], [], []>} : vector<8x32xf32>, vector<32x128xf32>, vector<8x128xf32> -> vector<8x128xf32>
    %546 = arith.index_cast %c6_i32 : i32 to index
    %c0_285 = arith.constant 0 : index
    %c0_286 = arith.constant 0 : index
    %547 = vector.load %arg0[%546, %c0_285, %c0_286] : memref<8x8x128xf32, #tpu.memory_space<vmem>>, vector<1x8x128xf32>
    %548 = vector.shape_cast %547 : vector<1x8x128xf32> to vector<8x128xf32>
    %549 = arith.addf %545, %548 : vector<8x128xf32>
    %c0_287 = arith.constant 0 : index
    %c0_288 = arith.constant 0 : index
    %550 = vector.load %arg6[%c0_287, %c0_288] : memref<8x32xf32, #tpu.memory_space<vmem>>, vector<8x32xf32>
    %551 = vector.extract_strided_slice %549 {offsets = [0, 0], sizes = [8, 32], strides = [1, 1]} : vector<8x128xf32> to vector<8x32xf32>
    %cst_289 = arith.constant 5.000000e-01 : f32
    %552 = vector.broadcast %cst_289 : f32 to vector<8x32xf32>
    %553 = arith.mulf %552, %551 : vector<8x32xf32>
    %554 = math.tanh %553 : vector<8x32xf32>
    %cst_290 = arith.constant 1.000000e+00 : f32
    %555 = vector.broadcast %cst_290 : f32 to vector<8x32xf32>
    %556 = arith.addf %554, %555 : vector<8x32xf32>
    %cst_291 = arith.constant 5.000000e-01 : f32
    %557 = vector.broadcast %cst_291 : f32 to vector<8x32xf32>
    %558 = arith.mulf %557, %556 : vector<8x32xf32>
    %559 = vector.extract_strided_slice %549 {offsets = [0, 32], sizes = [8, 32], strides = [1, 1]} : vector<8x128xf32> to vector<8x32xf32>
    %cst_292 = arith.constant 5.000000e-01 : f32
    %560 = vector.broadcast %cst_292 : f32 to vector<8x32xf32>
    %561 = arith.mulf %560, %559 : vector<8x32xf32>
    %562 = math.tanh %561 : vector<8x32xf32>
    %cst_293 = arith.constant 1.000000e+00 : f32
    %563 = vector.broadcast %cst_293 : f32 to vector<8x32xf32>
    %564 = arith.addf %562, %563 : vector<8x32xf32>
    %cst_294 = arith.constant 5.000000e-01 : f32
    %565 = vector.broadcast %cst_294 : f32 to vector<8x32xf32>
    %566 = arith.mulf %565, %564 : vector<8x32xf32>
    %567 = vector.extract_strided_slice %549 {offsets = [0, 64], sizes = [8, 32], strides = [1, 1]} : vector<8x128xf32> to vector<8x32xf32>
    %568 = math.tanh %567 : vector<8x32xf32>
    %569 = vector.extract_strided_slice %549 {offsets = [0, 96], sizes = [8, 32], strides = [1, 1]} : vector<8x128xf32> to vector<8x32xf32>
    %cst_295 = arith.constant 5.000000e-01 : f32
    %570 = vector.broadcast %cst_295 : f32 to vector<8x32xf32>
    %571 = arith.mulf %570, %569 : vector<8x32xf32>
    %572 = math.tanh %571 : vector<8x32xf32>
    %cst_296 = arith.constant 1.000000e+00 : f32
    %573 = vector.broadcast %cst_296 : f32 to vector<8x32xf32>
    %574 = arith.addf %572, %573 : vector<8x32xf32>
    %cst_297 = arith.constant 5.000000e-01 : f32
    %575 = vector.broadcast %cst_297 : f32 to vector<8x32xf32>
    %576 = arith.mulf %575, %574 : vector<8x32xf32>
    %577 = arith.mulf %566, %550 : vector<8x32xf32>
    %578 = arith.mulf %558, %568 : vector<8x32xf32>
    %579 = arith.addf %577, %578 : vector<8x32xf32>
    %580 = math.tanh %579 : vector<8x32xf32>
    %581 = arith.mulf %576, %580 : vector<8x32xf32>
    %c0_298 = arith.constant 0 : index
    %c0_299 = arith.constant 0 : index
    %582 = vector.load %arg5[%c0_298, %c0_299] : memref<8x32xf32, #tpu.memory_space<vmem>>, vector<8x32xf32>
    tpu.vector_store %arg5[%c0_298, %c0_299], %581 {strides = array<i32>} : memref<8x32xf32, #tpu.memory_space<vmem>>, vector<8x32xf32>,
    %c0_300 = arith.constant 0 : index
    %c0_301 = arith.constant 0 : index
    %583 = vector.load %arg6[%c0_300, %c0_301] : memref<8x32xf32, #tpu.memory_space<vmem>>, vector<8x32xf32>
    tpu.vector_store %arg6[%c0_300, %c0_301], %579 {strides = array<i32>} : memref<8x32xf32, #tpu.memory_space<vmem>>, vector<8x32xf32>,
    %584 = arith.index_cast %c6_i32 : i32 to index
    %c0_302 = arith.constant 0 : index
    %c0_303 = arith.constant 0 : index
    %585 = vector.load %arg4[%584, %c0_302, %c0_303] : memref<8x8x64xf32, #tpu.memory_space<vmem>>, vector<1x8x32xf32>
    %586 = vector.shape_cast %585 : vector<1x8x32xf32> to vector<8x32xf32>
    %587 = vector.shape_cast %581 : vector<8x32xf32> to vector<1x8x32xf32>
    tpu.vector_store %arg4[%584, %c0_302, %c0_303], %587 {strides = array<i32>} : memref<8x8x64xf32, #tpu.memory_space<vmem>>, vector<1x8x32xf32>,
    %c7_i32_304 = arith.constant 7 : i32
    %588 = arith.subi %c7_i32_304, %c6_i32 : i32
    %c0_305 = arith.constant 0 : index
    %c0_306 = arith.constant 0 : index
    %589 = vector.load %arg7[%c0_305, %c0_306] : memref<8x32xf32, #tpu.memory_space<vmem>>, vector<8x32xf32>
    %cst_307 = arith.constant dense<0.000000e+00> : vector<8x128xf32>
    %590 = tpu.matmul %589, %9, %cst_307 {dimension_numbers = #tpu.dot_dimension_numbers<[1], [0], [0], [1], [0, 0, 1, 1], [], []>} : vector<8x32xf32>, vector<32x128xf32>, vector<8x128xf32> -> vector<8x128xf32>
    %591 = arith.index_cast %588 : i32 to index
    %c0_308 = arith.constant 0 : index
    %c0_309 = arith.constant 0 : index
    %592 = vector.load %arg1[%591, %c0_308, %c0_309] : memref<8x8x128xf32, #tpu.memory_space<vmem>>, vector<1x8x128xf32>
    %593 = vector.shape_cast %592 : vector<1x8x128xf32> to vector<8x128xf32>
    %594 = arith.addf %590, %593 : vector<8x128xf32>
    %c0_310 = arith.constant 0 : index
    %c0_311 = arith.constant 0 : index
    %595 = vector.load %arg8[%c0_310, %c0_311] : memref<8x32xf32, #tpu.memory_space<vmem>>, vector<8x32xf32>
    %596 = vector.extract_strided_slice %594 {offsets = [0, 0], sizes = [8, 32], strides = [1, 1]} : vector<8x128xf32> to vector<8x32xf32>
    %cst_312 = arith.constant 5.000000e-01 : f32
    %597 = vector.broadcast %cst_312 : f32 to vector<8x32xf32>
    %598 = arith.mulf %597, %596 : vector<8x32xf32>
    %599 = math.tanh %598 : vector<8x32xf32>
    %cst_313 = arith.constant 1.000000e+00 : f32
    %600 = vector.broadcast %cst_313 : f32 to vector<8x32xf32>
    %601 = arith.addf %599, %600 : vector<8x32xf32>
    %cst_314 = arith.constant 5.000000e-01 : f32
    %602 = vector.broadcast %cst_314 : f32 to vector<8x32xf32>
    %603 = arith.mulf %602, %601 : vector<8x32xf32>
    %604 = vector.extract_strided_slice %594 {offsets = [0, 32], sizes = [8, 32], strides = [1, 1]} : vector<8x128xf32> to vector<8x32xf32>
    %cst_315 = arith.constant 5.000000e-01 : f32
    %605 = vector.broadcast %cst_315 : f32 to vector<8x32xf32>
    %606 = arith.mulf %605, %604 : vector<8x32xf32>
    %607 = math.tanh %606 : vector<8x32xf32>
    %cst_316 = arith.constant 1.000000e+00 : f32
    %608 = vector.broadcast %cst_316 : f32 to vector<8x32xf32>
    %609 = arith.addf %607, %608 : vector<8x32xf32>
    %cst_317 = arith.constant 5.000000e-01 : f32
    %610 = vector.broadcast %cst_317 : f32 to vector<8x32xf32>
    %611 = arith.mulf %610, %609 : vector<8x32xf32>
    %612 = vector.extract_strided_slice %594 {offsets = [0, 64], sizes = [8, 32], strides = [1, 1]} : vector<8x128xf32> to vector<8x32xf32>
    %613 = math.tanh %612 : vector<8x32xf32>
    %614 = vector.extract_strided_slice %594 {offsets = [0, 96], sizes = [8, 32], strides = [1, 1]} : vector<8x128xf32> to vector<8x32xf32>
    %cst_318 = arith.constant 5.000000e-01 : f32
    %615 = vector.broadcast %cst_318 : f32 to vector<8x32xf32>
    %616 = arith.mulf %615, %614 : vector<8x32xf32>
    %617 = math.tanh %616 : vector<8x32xf32>
    %cst_319 = arith.constant 1.000000e+00 : f32
    %618 = vector.broadcast %cst_319 : f32 to vector<8x32xf32>
    %619 = arith.addf %617, %618 : vector<8x32xf32>
    %cst_320 = arith.constant 5.000000e-01 : f32
    %620 = vector.broadcast %cst_320 : f32 to vector<8x32xf32>
    %621 = arith.mulf %620, %619 : vector<8x32xf32>
    %622 = arith.mulf %611, %595 : vector<8x32xf32>
    %623 = arith.mulf %603, %613 : vector<8x32xf32>
    %624 = arith.addf %622, %623 : vector<8x32xf32>
    %625 = math.tanh %624 : vector<8x32xf32>
    %626 = arith.mulf %621, %625 : vector<8x32xf32>
    %c0_321 = arith.constant 0 : index
    %c0_322 = arith.constant 0 : index
    %627 = vector.load %arg7[%c0_321, %c0_322] : memref<8x32xf32, #tpu.memory_space<vmem>>, vector<8x32xf32>
    tpu.vector_store %arg7[%c0_321, %c0_322], %626 {strides = array<i32>} : memref<8x32xf32, #tpu.memory_space<vmem>>, vector<8x32xf32>,
    %c0_323 = arith.constant 0 : index
    %c0_324 = arith.constant 0 : index
    %628 = vector.load %arg8[%c0_323, %c0_324] : memref<8x32xf32, #tpu.memory_space<vmem>>, vector<8x32xf32>
    tpu.vector_store %arg8[%c0_323, %c0_324], %624 {strides = array<i32>} : memref<8x32xf32, #tpu.memory_space<vmem>>, vector<8x32xf32>,
    %629 = arith.index_cast %588 : i32 to index
    %c0_325 = arith.constant 0 : index
    %c32_326 = arith.constant 32 : index
    %630 = vector.load %arg4[%629, %c0_325, %c32_326] : memref<8x8x64xf32, #tpu.memory_space<vmem>>, vector<1x8x32xf32>
    %631 = vector.shape_cast %630 : vector<1x8x32xf32> to vector<8x32xf32>
    %632 = vector.shape_cast %626 : vector<8x32xf32> to vector<1x8x32xf32>
    tpu.vector_store %arg4[%629, %c0_325, %c32_326], %632 {strides = array<i32>} : memref<8x8x64xf32, #tpu.memory_space<vmem>>, vector<1x8x32xf32>,
    %c7_i32_327 = arith.constant 7 : i32
    %c0_328 = arith.constant 0 : index
    %c0_329 = arith.constant 0 : index
    %633 = vector.load %arg5[%c0_328, %c0_329] : memref<8x32xf32, #tpu.memory_space<vmem>>, vector<8x32xf32>
    %cst_330 = arith.constant dense<0.000000e+00> : vector<8x128xf32>
    %634 = tpu.matmul %633, %8, %cst_330 {dimension_numbers = #tpu.dot_dimension_numbers<[1], [0], [0], [1], [0, 0, 1, 1], [], []>} : vector<8x32xf32>, vector<32x128xf32>, vector<8x128xf32> -> vector<8x128xf32>
    %635 = arith.index_cast %c7_i32_327 : i32 to index
    %c0_331 = arith.constant 0 : index
    %c0_332 = arith.constant 0 : index
    %636 = vector.load %arg0[%635, %c0_331, %c0_332] : memref<8x8x128xf32, #tpu.memory_space<vmem>>, vector<1x8x128xf32>
    %637 = vector.shape_cast %636 : vector<1x8x128xf32> to vector<8x128xf32>
    %638 = arith.addf %634, %637 : vector<8x128xf32>
    %c0_333 = arith.constant 0 : index
    %c0_334 = arith.constant 0 : index
    %639 = vector.load %arg6[%c0_333, %c0_334] : memref<8x32xf32, #tpu.memory_space<vmem>>, vector<8x32xf32>
    %640 = vector.extract_strided_slice %638 {offsets = [0, 0], sizes = [8, 32], strides = [1, 1]} : vector<8x128xf32> to vector<8x32xf32>
    %cst_335 = arith.constant 5.000000e-01 : f32
    %641 = vector.broadcast %cst_335 : f32 to vector<8x32xf32>
    %642 = arith.mulf %641, %640 : vector<8x32xf32>
    %643 = math.tanh %642 : vector<8x32xf32>
    %cst_336 = arith.constant 1.000000e+00 : f32
    %644 = vector.broadcast %cst_336 : f32 to vector<8x32xf32>
    %645 = arith.addf %643, %644 : vector<8x32xf32>
    %cst_337 = arith.constant 5.000000e-01 : f32
    %646 = vector.broadcast %cst_337 : f32 to vector<8x32xf32>
    %647 = arith.mulf %646, %645 : vector<8x32xf32>
    %648 = vector.extract_strided_slice %638 {offsets = [0, 32], sizes = [8, 32], strides = [1, 1]} : vector<8x128xf32> to vector<8x32xf32>
    %cst_338 = arith.constant 5.000000e-01 : f32
    %649 = vector.broadcast %cst_338 : f32 to vector<8x32xf32>
    %650 = arith.mulf %649, %648 : vector<8x32xf32>
    %651 = math.tanh %650 : vector<8x32xf32>
    %cst_339 = arith.constant 1.000000e+00 : f32
    %652 = vector.broadcast %cst_339 : f32 to vector<8x32xf32>
    %653 = arith.addf %651, %652 : vector<8x32xf32>
    %cst_340 = arith.constant 5.000000e-01 : f32
    %654 = vector.broadcast %cst_340 : f32 to vector<8x32xf32>
    %655 = arith.mulf %654, %653 : vector<8x32xf32>
    %656 = vector.extract_strided_slice %638 {offsets = [0, 64], sizes = [8, 32], strides = [1, 1]} : vector<8x128xf32> to vector<8x32xf32>
    %657 = math.tanh %656 : vector<8x32xf32>
    %658 = vector.extract_strided_slice %638 {offsets = [0, 96], sizes = [8, 32], strides = [1, 1]} : vector<8x128xf32> to vector<8x32xf32>
    %cst_341 = arith.constant 5.000000e-01 : f32
    %659 = vector.broadcast %cst_341 : f32 to vector<8x32xf32>
    %660 = arith.mulf %659, %658 : vector<8x32xf32>
    %661 = math.tanh %660 : vector<8x32xf32>
    %cst_342 = arith.constant 1.000000e+00 : f32
    %662 = vector.broadcast %cst_342 : f32 to vector<8x32xf32>
    %663 = arith.addf %661, %662 : vector<8x32xf32>
    %cst_343 = arith.constant 5.000000e-01 : f32
    %664 = vector.broadcast %cst_343 : f32 to vector<8x32xf32>
    %665 = arith.mulf %664, %663 : vector<8x32xf32>
    %666 = arith.mulf %655, %639 : vector<8x32xf32>
    %667 = arith.mulf %647, %657 : vector<8x32xf32>
    %668 = arith.addf %666, %667 : vector<8x32xf32>
    %669 = math.tanh %668 : vector<8x32xf32>
    %670 = arith.mulf %665, %669 : vector<8x32xf32>
    %c0_344 = arith.constant 0 : index
    %c0_345 = arith.constant 0 : index
    %671 = vector.load %arg5[%c0_344, %c0_345] : memref<8x32xf32, #tpu.memory_space<vmem>>, vector<8x32xf32>
    tpu.vector_store %arg5[%c0_344, %c0_345], %670 {strides = array<i32>} : memref<8x32xf32, #tpu.memory_space<vmem>>, vector<8x32xf32>,
    %c0_346 = arith.constant 0 : index
    %c0_347 = arith.constant 0 : index
    %672 = vector.load %arg6[%c0_346, %c0_347] : memref<8x32xf32, #tpu.memory_space<vmem>>, vector<8x32xf32>
    tpu.vector_store %arg6[%c0_346, %c0_347], %668 {strides = array<i32>} : memref<8x32xf32, #tpu.memory_space<vmem>>, vector<8x32xf32>,
    %673 = arith.index_cast %c7_i32_327 : i32 to index
    %c0_348 = arith.constant 0 : index
    %c0_349 = arith.constant 0 : index
    %674 = vector.load %arg4[%673, %c0_348, %c0_349] : memref<8x8x64xf32, #tpu.memory_space<vmem>>, vector<1x8x32xf32>
    %675 = vector.shape_cast %674 : vector<1x8x32xf32> to vector<8x32xf32>
    %676 = vector.shape_cast %670 : vector<8x32xf32> to vector<1x8x32xf32>
    tpu.vector_store %arg4[%673, %c0_348, %c0_349], %676 {strides = array<i32>} : memref<8x8x64xf32, #tpu.memory_space<vmem>>, vector<1x8x32xf32>,
    %c7_i32_350 = arith.constant 7 : i32
    %677 = arith.subi %c7_i32_350, %c7_i32_327 : i32
    %c0_351 = arith.constant 0 : index
    %c0_352 = arith.constant 0 : index
    %678 = vector.load %arg7[%c0_351, %c0_352] : memref<8x32xf32, #tpu.memory_space<vmem>>, vector<8x32xf32>
    %cst_353 = arith.constant dense<0.000000e+00> : vector<8x128xf32>
    %679 = tpu.matmul %678, %9, %cst_353 {dimension_numbers = #tpu.dot_dimension_numbers<[1], [0], [0], [1], [0, 0, 1, 1], [], []>} : vector<8x32xf32>, vector<32x128xf32>, vector<8x128xf32> -> vector<8x128xf32>
    %680 = arith.index_cast %677 : i32 to index
    %c0_354 = arith.constant 0 : index
    %c0_355 = arith.constant 0 : index
    %681 = vector.load %arg1[%680, %c0_354, %c0_355] : memref<8x8x128xf32, #tpu.memory_space<vmem>>, vector<1x8x128xf32>
    %682 = vector.shape_cast %681 : vector<1x8x128xf32> to vector<8x128xf32>
    %683 = arith.addf %679, %682 : vector<8x128xf32>
    %c0_356 = arith.constant 0 : index
    %c0_357 = arith.constant 0 : index
    %684 = vector.load %arg8[%c0_356, %c0_357] : memref<8x32xf32, #tpu.memory_space<vmem>>, vector<8x32xf32>
    %685 = vector.extract_strided_slice %683 {offsets = [0, 0], sizes = [8, 32], strides = [1, 1]} : vector<8x128xf32> to vector<8x32xf32>
    %cst_358 = arith.constant 5.000000e-01 : f32
    %686 = vector.broadcast %cst_358 : f32 to vector<8x32xf32>
    %687 = arith.mulf %686, %685 : vector<8x32xf32>
    %688 = math.tanh %687 : vector<8x32xf32>
    %cst_359 = arith.constant 1.000000e+00 : f32
    %689 = vector.broadcast %cst_359 : f32 to vector<8x32xf32>
    %690 = arith.addf %688, %689 : vector<8x32xf32>
    %cst_360 = arith.constant 5.000000e-01 : f32
    %691 = vector.broadcast %cst_360 : f32 to vector<8x32xf32>
    %692 = arith.mulf %691, %690 : vector<8x32xf32>
    %693 = vector.extract_strided_slice %683 {offsets = [0, 32], sizes = [8, 32], strides = [1, 1]} : vector<8x128xf32> to vector<8x32xf32>
    %cst_361 = arith.constant 5.000000e-01 : f32
    %694 = vector.broadcast %cst_361 : f32 to vector<8x32xf32>
    %695 = arith.mulf %694, %693 : vector<8x32xf32>
    %696 = math.tanh %695 : vector<8x32xf32>
    %cst_362 = arith.constant 1.000000e+00 : f32
    %697 = vector.broadcast %cst_362 : f32 to vector<8x32xf32>
    %698 = arith.addf %696, %697 : vector<8x32xf32>
    %cst_363 = arith.constant 5.000000e-01 : f32
    %699 = vector.broadcast %cst_363 : f32 to vector<8x32xf32>
    %700 = arith.mulf %699, %698 : vector<8x32xf32>
    %701 = vector.extract_strided_slice %683 {offsets = [0, 64], sizes = [8, 32], strides = [1, 1]} : vector<8x128xf32> to vector<8x32xf32>
    %702 = math.tanh %701 : vector<8x32xf32>
    %703 = vector.extract_strided_slice %683 {offsets = [0, 96], sizes = [8, 32], strides = [1, 1]} : vector<8x128xf32> to vector<8x32xf32>
    %cst_364 = arith.constant 5.000000e-01 : f32
    %704 = vector.broadcast %cst_364 : f32 to vector<8x32xf32>
    %705 = arith.mulf %704, %703 : vector<8x32xf32>
    %706 = math.tanh %705 : vector<8x32xf32>
    %cst_365 = arith.constant 1.000000e+00 : f32
    %707 = vector.broadcast %cst_365 : f32 to vector<8x32xf32>
    %708 = arith.addf %706, %707 : vector<8x32xf32>
    %cst_366 = arith.constant 5.000000e-01 : f32
    %709 = vector.broadcast %cst_366 : f32 to vector<8x32xf32>
    %710 = arith.mulf %709, %708 : vector<8x32xf32>
    %711 = arith.mulf %700, %684 : vector<8x32xf32>
    %712 = arith.mulf %692, %702 : vector<8x32xf32>
    %713 = arith.addf %711, %712 : vector<8x32xf32>
    %714 = math.tanh %713 : vector<8x32xf32>
    %715 = arith.mulf %710, %714 : vector<8x32xf32>
    %c0_367 = arith.constant 0 : index
    %c0_368 = arith.constant 0 : index
    %716 = vector.load %arg7[%c0_367, %c0_368] : memref<8x32xf32, #tpu.memory_space<vmem>>, vector<8x32xf32>
    tpu.vector_store %arg7[%c0_367, %c0_368], %715 {strides = array<i32>} : memref<8x32xf32, #tpu.memory_space<vmem>>, vector<8x32xf32>,
    %c0_369 = arith.constant 0 : index
    %c0_370 = arith.constant 0 : index
    %717 = vector.load %arg8[%c0_369, %c0_370] : memref<8x32xf32, #tpu.memory_space<vmem>>, vector<8x32xf32>
    tpu.vector_store %arg8[%c0_369, %c0_370], %713 {strides = array<i32>} : memref<8x32xf32, #tpu.memory_space<vmem>>, vector<8x32xf32>,
    %718 = arith.index_cast %677 : i32 to index
    %c0_371 = arith.constant 0 : index
    %c32_372 = arith.constant 32 : index
    %719 = vector.load %arg4[%718, %c0_371, %c32_372] : memref<8x8x64xf32, #tpu.memory_space<vmem>>, vector<1x8x32xf32>
    %720 = vector.shape_cast %719 : vector<1x8x32xf32> to vector<8x32xf32>
    %721 = vector.shape_cast %715 : vector<8x32xf32> to vector<1x8x32xf32>
    tpu.vector_store %arg4[%718, %c0_371, %c32_372], %721 {strides = array<i32>} : memref<8x8x64xf32, #tpu.memory_space<vmem>>, vector<1x8x32xf32>,
    %c8_i32 = arith.constant 8 : i32
    return
  }
}

module attributes {stable_mosaic.version = 11 : i64} {
  func.func @_decoder_kernel(%arg0: memref<8x64xf32, #tpu.memory_space<vmem>>, %arg1: memref<8x64xf32, #tpu.memory_space<vmem>>, %arg2: memref<64x128xf32, #tpu.memory_space<vmem>>, %arg3: memref<64x128xf32, #tpu.memory_space<vmem>>, %arg4: memref<1x128xf32, #tpu.memory_space<vmem>>, %arg5: memref<8x128xf32, #tpu.memory_space<vmem>>) attributes {dimension_semantics = [], scalar_prefetch = 0 : i64, scratch_operands = 0 : i64, tpu.core_type = #tpu.core_type<tc>} {
    %c0 = arith.constant 0 : index
    %c0_0 = arith.constant 0 : index
    %0 = vector.load %arg0[%c0, %c0_0] : memref<8x64xf32, #tpu.memory_space<vmem>>, vector<8x64xf32>
    %c0_1 = arith.constant 0 : index
    %c0_2 = arith.constant 0 : index
    %1 = vector.load %arg2[%c0_1, %c0_2] : memref<64x128xf32, #tpu.memory_space<vmem>>, vector<64x128xf32>
    %cst = arith.constant dense<0.000000e+00> : vector<8x128xf32>
    %2 = tpu.matmul %0, %1, %cst {dimension_numbers = #tpu.dot_dimension_numbers<[1], [0], [0], [1], [0, 0, 1, 1], [], []>} : vector<8x64xf32>, vector<64x128xf32>, vector<8x128xf32> -> vector<8x128xf32>
    %c0_3 = arith.constant 0 : index
    %c0_4 = arith.constant 0 : index
    %3 = vector.load %arg1[%c0_3, %c0_4] : memref<8x64xf32, #tpu.memory_space<vmem>>, vector<8x64xf32>
    %c0_5 = arith.constant 0 : index
    %c0_6 = arith.constant 0 : index
    %4 = vector.load %arg3[%c0_5, %c0_6] : memref<64x128xf32, #tpu.memory_space<vmem>>, vector<64x128xf32>
    %cst_7 = arith.constant dense<0.000000e+00> : vector<8x128xf32>
    %5 = tpu.matmul %3, %4, %cst_7 {dimension_numbers = #tpu.dot_dimension_numbers<[1], [0], [0], [1], [0, 0, 1, 1], [], []>} : vector<8x64xf32>, vector<64x128xf32>, vector<8x128xf32> -> vector<8x128xf32>
    %6 = arith.addf %2, %5 : vector<8x128xf32>
    %c0_8 = arith.constant 0 : index
    %c0_9 = arith.constant 0 : index
    %7 = vector.load %arg4[%c0_8, %c0_9] : memref<1x128xf32, #tpu.memory_space<vmem>>, vector<1x128xf32>
    %8 = vector.broadcast %7 : vector<1x128xf32> to vector<8x128xf32>
    %9 = arith.addf %6, %8 : vector<8x128xf32>
    %c0_10 = arith.constant 0 : index
    %c0_11 = arith.constant 0 : index
    %10 = vector.load %arg5[%c0_10, %c0_11] : memref<8x128xf32, #tpu.memory_space<vmem>>, vector<8x128xf32>
    tpu.vector_store %arg5[%c0_10, %c0_11], %9 {strides = array<i32>} : memref<8x128xf32, #tpu.memory_space<vmem>>, vector<8x128xf32>,
    return
  }
}

</mosaic_0001>

<llo_original>
// kernel: birnn_forward.7
$region0: #{birnn_forward.7}
  #allocation0 [shape = 'u32[]', space=smem, size = 0x4, offset = 0x4, fixed_abs, tag = 'smem constant byte address 0x4 - core index']
  #allocation1 [shape = 'u32[144,128]{1,0:T(1,128)}', space=vmem, size = 0x12000, scoped, tag = 'internal scratch']
  %s0 = inlined_call_operand.vmem [shape: f32[64,64], index: 0, kind: input, shape index: {}]
  %s1 = inlined_call_operand.vmem [shape: f32[64,128], index: 1, kind: input, shape index: {}]
  %s2 = inlined_call_operand.vmem [shape: f32[64,128], index: 2, kind: input, shape index: {}]
  %s3 = inlined_call_operand.vmem [shape: f32[1,128], index: 3, kind: input, shape index: {}]
  %s4 = inlined_call_operand.vmem [shape: f32[1,128], index: 4, kind: input, shape index: {}]
  %s5 = inlined_call_operand.vmem [shape: f32[64,128], index: 5, kind: output, shape index: {0}]
  %s6 = inlined_call_operand.vmem [shape: f32[64,128], index: 6, kind: output, shape index: {1}]
  %7 = xla_tuple %s5, %s6
  %s8 = sld [smem:[#allocation0]]
  $region38: #{birnn_forward.7} parent=0
    _
  %s10 = ssub.s32 1, %s8
  %s11 = scalar_select 0, %s10, %s8
  // Predicated region
  $region2: #{birnn_forward.7} parent=0 // pred_check
    _
  $region3: #{birnn_forward.7} parent=0 // pred_check_branch
    %13 = sbr.rel (0) target = $region5
  $region4: #{birnn_forward.7} parent=0 // pred_region
    _
  $region5: #{birnn_forward.7} parent=0 // pred_fallthru
    _
  // Predicated region
  $region6: #{birnn_forward.7} parent=0 // pred_check
    _
  $region7: #{birnn_forward.7} parent=0 // pred_check_branch
    %15 = sbr.rel (0) target = $region9
  $region8: #{birnn_forward.7} parent=0 // pred_region
    _
  $region9: #{birnn_forward.7} parent=0 // pred_fallthru
    _
  // Predicated region
  $region10: #{birnn_forward.7} parent=0 // pred_check
    _
  $region11: #{birnn_forward.7} parent=0 // pred_check_branch
    %17 = sbr.rel (0) target = $region13
  $region12: #{birnn_forward.7} parent=0 // pred_region
    _
  $region13: #{birnn_forward.7} parent=0 // pred_fallthru
    _
  // Predicated region
  $region14: #{birnn_forward.7} parent=0 // pred_check
    _
  $region15: #{birnn_forward.7} parent=0 // pred_check_branch
    %19 = sbr.rel (0) target = $region17
  $region16: #{birnn_forward.7} parent=0 // pred_region
    _
  $region17: #{birnn_forward.7} parent=0 // pred_fallthru
    _
  // Predicated region
  $region18: #{birnn_forward.7} parent=0 // pred_check
    _
  $region19: #{birnn_forward.7} parent=0 // pred_check_branch
    %21 = sbr.rel (0) target = $region21
  $region20: #{birnn_forward.7} parent=0 // pred_region
    _
  $region21: #{birnn_forward.7} parent=0 // pred_fallthru
    _
  %v22 = vld [vmem:[%s0] sm:$0xff]
  %v23 = vld [vmem:[%s0 + $0x8] sm:$0xff]
  %v24 = vld [vmem:[%s0 + $0x10] sm:$0xff]
  %v25 = vld [vmem:[%s0 + $0x18] sm:$0xff]
  %v26 = vld [vmem:[%s0 + $0x20] sm:$0xff]
  %v27 = vld [vmem:[%s0 + $0x28] sm:$0xff]
  %v28 = vld [vmem:[%s0 + $0x30] sm:$0xff]
  %v29 = vld [vmem:[%s0 + $0x38] sm:$0xff]
  %v30 = vld [vmem:[%s1] sm:$0xff]
  %v31 = vld [vmem:[%s1 + $0x8] sm:$0xff]
  %v32 = vld [vmem:[%s1 + $0x10] sm:$0xff]
  %v33 = vld [vmem:[%s1 + $0x18] sm:$0xff]
  %v34 = vld [vmem:[%s1 + $0x20] sm:$0xff]
  %v35 = vld [vmem:[%s1 + $0x28] sm:$0xff]
  %v36 = vld [vmem:[%s1 + $0x30] sm:$0xff]
  %v37 = vld [vmem:[%s1 + $0x38] sm:$0xff]
  %v38 = vld [vmem:[%s3] sm:$0x1]
  %v40 = vlaneseq
  %v41 = vshrl.u32 %v40, 7
  %v42 = vsub.s32 0, %v41
  %v43 = vrot.slane %v38, %v42
  %vm45 = vcmask 523264
  %v47 = vsel %vm45, %v22, 0
  %v50 = vsel %vm45, %v23, 0
  %v53 = vsel %vm45, %v24, 0
  %v56 = vsel %vm45, %v25, 0
  %v59 = vsel %vm45, %v26, 0
  %v62 = vsel %vm45, %v27, 0
  %v65 = vsel %vm45, %v28, 0
  %v68 = vsel %vm45, %v29, 0
  %70 = vmatprep.subr.mxu0 0.0
  %71 = vmatpush1.msra.mxu0 %v30
  %72 = vmatprep.subr.mxu0 0.0
  %73 = vmatpush1.msra.mxu0 %v31
  %74 = vmatprep.subr.mxu0 0.0
  %75 = vmatpush1.msra.mxu0 %v32
  %76 = vmatprep.subr.mxu0 0.0
  %77 = vmatpush1.msra.mxu0 %v33
  %78 = vmatprep.subr.mxu0 0.0
  %79 = vmatpush1.msra.mxu0 %v34
  %80 = vmatprep.subr.mxu0 0.0
  %81 = vmatpush1.msra.mxu0 %v35
  %82 = vmatprep.subr.mxu0 0.0
  %83 = vmatpush1.msra.mxu0 %v36
  %84 = vmatprep.subr.mxu0 0.0
  %85 = vmatpush1.msra.mxu0 %v37
  %86 = vmatprep.subr.mxu0 0.0
  %87 = vmatpush1.msra.mxu0 0.0
  %88 = vmatprep.subr.mxu0 0.0
  %89 = vmatpush1.msra.mxu0 0.0
  %90 = vmatprep.subr.mxu0 0.0
  %91 = vmatpush1.msra.mxu0 0.0
  %92 = vmatprep.subr.mxu0 0.0
  %93 = vmatpush1.msra.mxu0 0.0
  %94 = vmatprep.subr.mxu0 0.0
  %95 = vmatpush1.msra.mxu0 0.0
  %96 = vmatprep.subr.mxu0 0.0
  %97 = vmatpush1.msra.mxu0 0.0
  %98 = vmatprep.subr.mxu0 0.0
  %99 = vmatpush1.msra.mxu0 0.0
  %100 = vmatprep.subr.mxu0 0.0
  %101 = vmatpush1.msra.mxu0 0.0
  %102 = vmatprep.subr.mxu0 0.0
  %103 = vmatpush1.msra.mxu0 0.0
  %104 = vmatprep.subr.mxu0 0.0
  %105 = vmatpush1.msra.mxu0 0.0
  %106 = vmatprep.subr.mxu0 0.0
  %107 = vmatpush1.msra.mxu0 0.0
  %108 = vmatprep.subr.mxu0 0.0
  %109 = vmatpush1.msra.mxu0 0.0
  %110 = vmatprep.subr.mxu0 0.0
  %111 = vmatpush1.msra.mxu0 0.0
  %112 = vmatprep.subr.mxu0 0.0
  %113 = vmatpush1.msra.mxu0 0.0
  %114 = vmatprep.subr.mxu0 0.0
  %115 = vmatpush1.msra.mxu0 0.0
  %116 = vmatprep.subr.mxu0 0.0
  %117 = vmatpush1.msra.mxu0 0.0
  %118 = vmatprep.subr.mxu0 0.0
  %119 = vmatpush1.msra.mxu0 0.0
  %120 = vmatprep.subr.mxu0 0.0
  %121 = vmatpush1.msra.mxu0 0.0
  %122 = vmatprep.subr.mxu0 0.0
  %123 = vmatpush1.msra.mxu0 0.0
  %124 = vmatprep.subr.mxu0 0.0
  %125 = vmatpush1.msra.mxu0 0.0
  %126 = vmatprep.subr.mxu0 0.0
  %127 = vmatpush1.msra.mxu0 0.0
  %128 = vmatprep.subr.mxu0 0.0
  %129 = vmatpush1.msra.mxu0 0.0
  %130 = vmatprep.subr.mxu0 0.0
  %131 = vmatpush1.msra.mxu0 0.0
  %132 = vmatprep.subr.mxu0 0.0
  %133 = vmatpush1.msra.mxu0 0.0
  %134 = vmatprep.mubr.f32.mxu0 0.0
  %135 = vmatmul.mubr.f32.gmra.mrb[0].mxu0 %v47
  %v136 = vpop.f32.mrb[0].mxu0
  %v137 = vadd.f32 %v43, %v136
  %v138 = vpop.f32.mrb[0].mxu0
  %139 = vmatprep.mubr.f32.mxu0 0.0
  %140 = vmatmul.mubr.f32.gmra.mrb[0].mxu0 %v50
  %v141 = vpop.f32.mrb[0].mxu0
  %v142 = vadd.f32 %v43, %v141
  %v143 = vpop.f32.mrb[0].mxu0
  %144 = vmatprep.mubr.f32.mxu0 0.0
  %145 = vmatmul.mubr.f32.gmra.mrb[0].mxu0 %v53
  %v146 = vpop.f32.mrb[0].mxu0
  %v147 = vadd.f32 %v43, %v146
  %v148 = vpop.f32.mrb[0].mxu0
  %149 = vmatprep.mubr.f32.mxu0 0.0
  %150 = vmatmul.mubr.f32.gmra.mrb[0].mxu0 %v56
  %v151 = vpop.f32.mrb[0].mxu0
  %v152 = vadd.f32 %v43, %v151
  %v153 = vpop.f32.mrb[0].mxu0
  %154 = vmatprep.mubr.f32.mxu0 0.0
  %155 = vmatmul.mubr.f32.gmra.mrb[0].mxu0 %v59
  %v156 = vpop.f32.mrb[0].mxu0
  %v157 = vadd.f32 %v43, %v156
  %v158 = vpop.f32.mrb[0].mxu0
  %159 = vmatprep.mubr.f32.mxu0 0.0
  %160 = vmatmul.mubr.f32.gmra.mrb[0].mxu0 %v62
  %v161 = vpop.f32.mrb[0].mxu0
  %v162 = vadd.f32 %v43, %v161
  %v163 = vpop.f32.mrb[0].mxu0
  %164 = vmatprep.mubr.f32.mxu0 0.0
  %165 = vmatmul.mubr.f32.gmra.mrb[0].mxu0 %v65
  %v166 = vpop.f32.mrb[0].mxu0
  %v167 = vadd.f32 %v43, %v166
  %v168 = vpop.f32.mrb[0].mxu0
  %169 = vmatprep.mubr.f32.mxu0 0.0
  %170 = vmatmul.mubr.f32.gmra.mrb[0].mxu0 %v68
  %v171 = vpop.f32.mrb[0].mxu0
  %v172 = vadd.f32 %v43, %v171
  %v173 = vpop.f32.mrb[0].mxu0
  %174 = vdwg.mxu0
  %175 = vst [vmem:[%s5] sm:$0xff] %v137
  %176 = vst [vmem:[%s5 + $0x8] sm:$0xff] %v142
  %177 = vst [vmem:[%s5 + $0x10] sm:$0xff] %v147
  %178 = vst [vmem:[%s5 + $0x18] sm:$0xff] %v152
  %179 = vst [vmem:[%s5 + $0x20] sm:$0xff] %v157
  %180 = vst [vmem:[%s5 + $0x28] sm:$0xff] %v162
  %181 = vst [vmem:[%s5 + $0x30] sm:$0xff] %v167
  %182 = vst [vmem:[%s5 + $0x38] sm:$0xff] %v172
  %v183 = vld [vmem:[%s2] sm:$0xff]
  %v184 = vld [vmem:[%s2 + $0x8] sm:$0xff]
  %v185 = vld [vmem:[%s2 + $0x10] sm:$0xff]
  %v186 = vld [vmem:[%s2 + $0x18] sm:$0xff]
  %v187 = vld [vmem:[%s2 + $0x20] sm:$0xff]
  %v188 = vld [vmem:[%s2 + $0x28] sm:$0xff]
  %v189 = vld [vmem:[%s2 + $0x30] sm:$0xff]
  %v190 = vld [vmem:[%s2 + $0x38] sm:$0xff]
  %v191 = vld [vmem:[%s4] sm:$0x1]
  %v193 = vlaneseq
  %v194 = vshrl.u32 %v193, 7
  %v195 = vsub.s32 0, %v194
  %v196 = vrot.slane %v191, %v195
  %198 = vmatprep.subr.mxu0 0.0
  %199 = vmatpush1.msra.mxu0 %v183
  %200 = vmatprep.subr.mxu0 0.0
  %201 = vmatpush1.msra.mxu0 %v184
  %202 = vmatprep.subr.mxu0 0.0
  %203 = vmatpush1.msra.mxu0 %v185
  %204 = vmatprep.subr.mxu0 0.0
  %205 = vmatpush1.msra.mxu0 %v186
  %206 = vmatprep.subr.mxu0 0.0
  %207 = vmatpush1.msra.mxu0 %v187
  %208 = vmatprep.subr.mxu0 0.0
  %209 = vmatpush1.msra.mxu0 %v188
  %210 = vmatprep.subr.mxu0 0.0
  %211 = vmatpush1.msra.mxu0 %v189
  %212 = vmatprep.subr.mxu0 0.0
  %213 = vmatpush1.msra.mxu0 %v190
  %214 = vmatprep.subr.mxu0 0.0
  %215 = vmatpush1.msra.mxu0 0.0
  %216 = vmatprep.subr.mxu0 0.0
  %217 = vmatpush1.msra.mxu0 0.0
  %218 = vmatprep.subr.mxu0 0.0
  %219 = vmatpush1.msra.mxu0 0.0
  %220 = vmatprep.subr.mxu0 0.0
  %221 = vmatpush1.msra.mxu0 0.0
  %222 = vmatprep.subr.mxu0 0.0
  %223 = vmatpush1.msra.mxu0 0.0
  %224 = vmatprep.subr.mxu0 0.0
  %225 = vmatpush1.msra.mxu0 0.0
  %226 = vmatprep.subr.mxu0 0.0
  %227 = vmatpush1.msra.mxu0 0.0
  %228 = vmatprep.subr.mxu0 0.0
  %229 = vmatpush1.msra.mxu0 0.0
  %230 = vmatprep.subr.mxu0 0.0
  %231 = vmatpush1.msra.mxu0 0.0
  %232 = vmatprep.subr.mxu0 0.0
  %233 = vmatpush1.msra.mxu0 0.0
  %234 = vmatprep.subr.mxu0 0.0
  %235 = vmatpush1.msra.mxu0 0.0
  %236 = vmatprep.subr.mxu0 0.0
  %237 = vmatpush1.msra.mxu0 0.0
  %238 = vmatprep.subr.mxu0 0.0
  %239 = vmatpush1.msra.mxu0 0.0
  %240 = vmatprep.subr.mxu0 0.0
  %241 = vmatpush1.msra.mxu0 0.0
  %242 = vmatprep.subr.mxu0 0.0
  %243 = vmatpush1.msra.mxu0 0.0
  %244 = vmatprep.subr.mxu0 0.0
  %245 = vmatpush1.msra.mxu0 0.0
  %246 = vmatprep.subr.mxu0 0.0
  %247 = vmatpush1.msra.mxu0 0.0
  %248 = vmatprep.subr.mxu0 0.0
  %249 = vmatpush1.msra.mxu0 0.0
  %250 = vmatprep.subr.mxu0 0.0
  %251 = vmatpush1.msra.mxu0 0.0
  %252 = vmatprep.subr.mxu0 0.0
  %253 = vmatpush1.msra.mxu0 0.0
  %254 = vmatprep.subr.mxu0 0.0
  %255 = vmatpush1.msra.mxu0 0.0
  %256 = vmatprep.subr.mxu0 0.0
  %257 = vmatpush1.msra.mxu0 0.0
  %258 = vmatprep.subr.mxu0 0.0
  %259 = vmatpush1.msra.mxu0 0.0
  %260 = vmatprep.subr.mxu0 0.0
  %261 = vmatpush1.msra.mxu0 0.0
  %262 = vmatprep.mubr.f32.mxu0 0.0
  %263 = vmatmul.mubr.f32.gmra.mrb[0].mxu0 %v47
  %v264 = vpop.f32.mrb[0].mxu0
  %v265 = vadd.f32 %v196, %v264
  %v266 = vpop.f32.mrb[0].mxu0
  %267 = vmatprep.mubr.f32.mxu0 0.0
  %268 = vmatmul.mubr.f32.gmra.mrb[0].mxu0 %v50
  %v269 = vpop.f32.mrb[0].mxu0
  %v270 = vadd.f32 %v196, %v269
  %v271 = vpop.f32.mrb[0].mxu0
  %272 = vmatprep.mubr.f32.mxu0 0.0
  %273 = vmatmul.mubr.f32.gmra.mrb[0].mxu0 %v53
  %v274 = vpop.f32.mrb[0].mxu0
  %v275 = vadd.f32 %v196, %v274
  %v276 = vpop.f32.mrb[0].mxu0
  %277 = vmatprep.mubr.f32.mxu0 0.0
  %278 = vmatmul.mubr.f32.gmra.mrb[0].mxu0 %v56
  %v279 = vpop.f32.mrb[0].mxu0
  %v280 = vadd.f32 %v196, %v279
  %v281 = vpop.f32.mrb[0].mxu0
  %282 = vmatprep.mubr.f32.mxu0 0.0
  %283 = vmatmul.mubr.f32.gmra.mrb[0].mxu0 %v59
  %v284 = vpop.f32.mrb[0].mxu0
  %v285 = vadd.f32 %v196, %v284
  %v286 = vpop.f32.mrb[0].mxu0
  %287 = vmatprep.mubr.f32.mxu0 0.0
  %288 = vmatmul.mubr.f32.gmra.mrb[0].mxu0 %v62
  %v289 = vpop.f32.mrb[0].mxu0
  %v290 = vadd.f32 %v196, %v289
  %v291 = vpop.f32.mrb[0].mxu0
  %292 = vmatprep.mubr.f32.mxu0 0.0
  %293 = vmatmul.mubr.f32.gmra.mrb[0].mxu0 %v65
  %v294 = vpop.f32.mrb[0].mxu0
  %v295 = vadd.f32 %v196, %v294
  %v296 = vpop.f32.mrb[0].mxu0
  %297 = vmatprep.mubr.f32.mxu0 0.0
  %298 = vmatmul.mubr.f32.gmra.mrb[0].mxu0 %v68
  %v299 = vpop.f32.mrb[0].mxu0
  %v300 = vadd.f32 %v196, %v299
  %v301 = vpop.f32.mrb[0].mxu0
  %302 = vdwg.mxu0
  %303 = vst [vmem:[%s6] sm:$0xff] %v265
  %304 = vst [vmem:[%s6 + $0x8] sm:$0xff] %v270
  %305 = vst [vmem:[%s6 + $0x10] sm:$0xff] %v275
  %306 = vst [vmem:[%s6 + $0x18] sm:$0xff] %v280
  %307 = vst [vmem:[%s6 + $0x20] sm:$0xff] %v285
  %308 = vst [vmem:[%s6 + $0x28] sm:$0xff] %v290
  %309 = vst [vmem:[%s6 + $0x30] sm:$0xff] %v295
  %310 = vst [vmem:[%s6 + $0x38] sm:$0xff] %v300
  // Predicated region
  $region22: #{birnn_forward.7} parent=0 // pred_check
    _
  $region23: #{birnn_forward.7} parent=0 // pred_check_branch
    %312 = sbr.rel (0) target = $region25
  $region24: #{birnn_forward.7} parent=0 // pred_region
    _
  $region25: #{birnn_forward.7} parent=0 // pred_fallthru
    _
  // Predicated region
  $region26: #{birnn_forward.7} parent=0 // pred_check
    _
  $region27: #{birnn_forward.7} parent=0 // pred_check_branch
    %314 = sbr.rel (0) target = $region29
  $region28: #{birnn_forward.7} parent=0 // pred_region
    _
  $region29: #{birnn_forward.7} parent=0 // pred_fallthru
    _
  // Predicated region
  $region30: #{birnn_forward.7} parent=0 // pred_check
    _
  $region31: #{birnn_forward.7} parent=0 // pred_check_branch
    %316 = sbr.rel (0) target = $region33
  $region32: #{birnn_forward.7} parent=0 // pred_region
    _
  $region33: #{birnn_forward.7} parent=0 // pred_fallthru
    _
  // Predicated region
  $region34: #{birnn_forward.7} parent=0 // pred_check
    _
  $region35: #{birnn_forward.7} parent=0 // pred_check_branch
    %318 = sbr.rel (0) target = $region37
  $region36: #{birnn_forward.7} parent=0 // pred_region
    _
  $region37: #{birnn_forward.7} parent=0 // pred_fallthru
    _

// kernel: birnn_forward.9
$region0: #{birnn_forward.9}
  #allocation0 [shape = 'u32[]', space=smem, size = 0x4, offset = 0x4, fixed_abs, tag = 'smem constant byte address 0x4 - core index']
  #allocation1 [shape = 'u32[144,128]{1,0:T(1,128)}', space=vmem, size = 0x12000, scoped, tag = 'internal scratch']
  %s0 = inlined_call_operand.vmem [shape: f32[8,64], index: 0, kind: input, shape index: {}]
  %s1 = inlined_call_operand.vmem [shape: f32[8,64], index: 1, kind: input, shape index: {}]
  %s2 = inlined_call_operand.vmem [shape: f32[64,128], index: 2, kind: input, shape index: {}]
  %s3 = inlined_call_operand.vmem [shape: f32[64,128], index: 3, kind: input, shape index: {}]
  %s4 = inlined_call_operand.vmem [shape: f32[1,128], index: 4, kind: input, shape index: {}]
  %s5 = inlined_call_operand.vmem [shape: f32[8,128], index: 5, kind: output, shape index: {}]
  %s6 = sld [smem:[#allocation0]]
  $region30: #{birnn_forward.9} parent=0
    _
  %s8 = ssub.s32 1, %s6
  %s9 = scalar_select 0, %s8, %s6
  // Predicated region
  $region2: #{birnn_forward.9} parent=0 // pred_check
    _
  $region3: #{birnn_forward.9} parent=0 // pred_check_branch
    %11 = sbr.rel (0) target = $region5
  $region4: #{birnn_forward.9} parent=0 // pred_region
    _
  $region5: #{birnn_forward.9} parent=0 // pred_fallthru
    _
  // Predicated region
  $region6: #{birnn_forward.9} parent=0 // pred_check
    _
  $region7: #{birnn_forward.9} parent=0 // pred_check_branch
    %13 = sbr.rel (0) target = $region9
  $region8: #{birnn_forward.9} parent=0 // pred_region
    _
  $region9: #{birnn_forward.9} parent=0 // pred_fallthru
    _
  // Predicated region
  $region10: #{birnn_forward.9} parent=0 // pred_check
    _
  $region11: #{birnn_forward.9} parent=0 // pred_check_branch
    %15 = sbr.rel (0) target = $region13
  $region12: #{birnn_forward.9} parent=0 // pred_region
    _
  $region13: #{birnn_forward.9} parent=0 // pred_fallthru
    _
  // Predicated region
  $region14: #{birnn_forward.9} parent=0 // pred_check
    _
  $region15: #{birnn_forward.9} parent=0 // pred_check_branch
    %17 = sbr.rel (0) target = $region17
  $region16: #{birnn_forward.9} parent=0 // pred_region
    _
  $region17: #{birnn_forward.9} parent=0 // pred_fallthru
    _
  // Predicated region
  $region18: #{birnn_forward.9} parent=0 // pred_check
    _
  $region19: #{birnn_forward.9} parent=0 // pred_check_branch
    %19 = sbr.rel (0) target = $region21
  $region20: #{birnn_forward.9} parent=0 // pred_region
    _
  $region21: #{birnn_forward.9} parent=0 // pred_fallthru
    _
  %v20 = vld [vmem:[%s0] sm:$0xff]
  %v21 = vld [vmem:[%s2] sm:$0xff]
  %v22 = vld [vmem:[%s2 + $0x8] sm:$0xff]
  %v23 = vld [vmem:[%s2 + $0x10] sm:$0xff]
  %v24 = vld [vmem:[%s2 + $0x18] sm:$0xff]
  %v25 = vld [vmem:[%s2 + $0x20] sm:$0xff]
  %v26 = vld [vmem:[%s2 + $0x28] sm:$0xff]
  %v27 = vld [vmem:[%s2 + $0x30] sm:$0xff]
  %v28 = vld [vmem:[%s2 + $0x38] sm:$0xff]
  %v29 = vld [vmem:[%s1] sm:$0xff]
  %v30 = vld [vmem:[%s3] sm:$0xff]
  %v31 = vld [vmem:[%s3 + $0x8] sm:$0xff]
  %v32 = vld [vmem:[%s3 + $0x10] sm:$0xff]
  %v33 = vld [vmem:[%s3 + $0x18] sm:$0xff]
  %v34 = vld [vmem:[%s3 + $0x20] sm:$0xff]
  %v35 = vld [vmem:[%s3 + $0x28] sm:$0xff]
  %v36 = vld [vmem:[%s3 + $0x30] sm:$0xff]
  %v37 = vld [vmem:[%s3 + $0x38] sm:$0xff]
  %vm38 = vcmask 523264
  %v40 = vsel %vm38, %v29, 0
  %42 = vmatprep.subr.mxu0 0.0
  %43 = vmatpush1.msra.mxu0 %v30
  %44 = vmatprep.subr.mxu0 0.0
  %45 = vmatpush1.msra.mxu0 %v31
  %46 = vmatprep.subr.mxu0 0.0
  %47 = vmatpush1.msra.mxu0 %v32
  %48 = vmatprep.subr.mxu0 0.0
  %49 = vmatpush1.msra.mxu0 %v33
  %50 = vmatprep.subr.mxu0 0.0
  %51 = vmatpush1.msra.mxu0 %v34
  %52 = vmatprep.subr.mxu0 0.0
  %53 = vmatpush1.msra.mxu0 %v35
  %54 = vmatprep.subr.mxu0 0.0
  %55 = vmatpush1.msra.mxu0 %v36
  %56 = vmatprep.subr.mxu0 0.0
  %57 = vmatpush1.msra.mxu0 %v37
  %58 = vmatprep.subr.mxu0 0.0
  %59 = vmatpush1.msra.mxu0 0.0
  %60 = vmatprep.subr.mxu0 0.0
  %61 = vmatpush1.msra.mxu0 0.0
  %62 = vmatprep.subr.mxu0 0.0
  %63 = vmatpush1.msra.mxu0 0.0
  %64 = vmatprep.subr.mxu0 0.0
  %65 = vmatpush1.msra.mxu0 0.0
  %66 = vmatprep.subr.mxu0 0.0
  %67 = vmatpush1.msra.mxu0 0.0
  %68 = vmatprep.subr.mxu0 0.0
  %69 = vmatpush1.msra.mxu0 0.0
  %70 = vmatprep.subr.mxu0 0.0
  %71 = vmatpush1.msra.mxu0 0.0
  %72 = vmatprep.subr.mxu0 0.0
  %73 = vmatpush1.msra.mxu0 0.0
  %74 = vmatprep.subr.mxu0 0.0
  %75 = vmatpush1.msra.mxu0 0.0
  %76 = vmatprep.subr.mxu0 0.0
  %77 = vmatpush1.msra.mxu0 0.0
  %78 = vmatprep.subr.mxu0 0.0
  %79 = vmatpush1.msra.mxu0 0.0
  %80 = vmatprep.subr.mxu0 0.0
  %81 = vmatpush1.msra.mxu0 0.0
  %82 = vmatprep.subr.mxu0 0.0
  %83 = vmatpush1.msra.mxu0 0.0
  %84 = vmatprep.subr.mxu0 0.0
  %85 = vmatpush1.msra.mxu0 0.0
  %86 = vmatprep.subr.mxu0 0.0
  %87 = vmatpush1.msra.mxu0 0.0
  %88 = vmatprep.subr.mxu0 0.0
  %89 = vmatpush1.msra.mxu0 0.0
  %90 = vmatprep.subr.mxu0 0.0
  %91 = vmatpush1.msra.mxu0 0.0
  %92 = vmatprep.subr.mxu0 0.0
  %93 = vmatpush1.msra.mxu0 0.0
  %94 = vmatprep.subr.mxu0 0.0
  %95 = vmatpush1.msra.mxu0 0.0
  %96 = vmatprep.subr.mxu0 0.0
  %97 = vmatpush1.msra.mxu0 0.0
  %98 = vmatprep.subr.mxu0 0.0
  %99 = vmatpush1.msra.mxu0 0.0
  %100 = vmatprep.subr.mxu0 0.0
  %101 = vmatpush1.msra.mxu0 0.0
  %102 = vmatprep.subr.mxu0 0.0
  %103 = vmatpush1.msra.mxu0 0.0
  %104 = vmatprep.subr.mxu0 0.0
  %105 = vmatpush1.msra.mxu0 0.0
  %106 = vmatprep.mubr.f32.mxu0 0.0
  %107 = vmatmul.mubr.f32.gmra.mrb[0].mxu0 %v40
  %v108 = vpop.f32.mrb[0].mxu0
  %v109 = vadd.f32 0.0, %v108
  %v110 = vpop.f32.mrb[0].mxu0
  %111 = vdwg.mxu0
  %v113 = vsel %vm38, %v20, 0
  %115 = vmatprep.subr.mxu0 0.0
  %116 = vmatpush1.msra.mxu0 %v21
  %117 = vmatprep.subr.mxu0 0.0
  %118 = vmatpush1.msra.mxu0 %v22
  %119 = vmatprep.subr.mxu0 0.0
  %120 = vmatpush1.msra.mxu0 %v23
  %121 = vmatprep.subr.mxu0 0.0
  %122 = vmatpush1.msra.mxu0 %v24
  %123 = vmatprep.subr.mxu0 0.0
  %124 = vmatpush1.msra.mxu0 %v25
  %125 = vmatprep.subr.mxu0 0.0
  %126 = vmatpush1.msra.mxu0 %v26
  %127 = vmatprep.subr.mxu0 0.0
  %128 = vmatpush1.msra.mxu0 %v27
  %129 = vmatprep.subr.mxu0 0.0
  %130 = vmatpush1.msra.mxu0 %v28
  %131 = vmatprep.subr.mxu0 0.0
  %132 = vmatpush1.msra.mxu0 0.0
  %133 = vmatprep.subr.mxu0 0.0
  %134 = vmatpush1.msra.mxu0 0.0
  %135 = vmatprep.subr.mxu0 0.0
  %136 = vmatpush1.msra.mxu0 0.0
  %137 = vmatprep.subr.mxu0 0.0
  %138 = vmatpush1.msra.mxu0 0.0
  %139 = vmatprep.subr.mxu0 0.0
  %140 = vmatpush1.msra.mxu0 0.0
  %141 = vmatprep.subr.mxu0 0.0
  %142 = vmatpush1.msra.mxu0 0.0
  %143 = vmatprep.subr.mxu0 0.0
  %144 = vmatpush1.msra.mxu0 0.0
  %145 = vmatprep.subr.mxu0 0.0
  %146 = vmatpush1.msra.mxu0 0.0
  %147 = vmatprep.subr.mxu0 0.0
  %148 = vmatpush1.msra.mxu0 0.0
  %149 = vmatprep.subr.mxu0 0.0
  %150 = vmatpush1.msra.mxu0 0.0
  %151 = vmatprep.subr.mxu0 0.0
  %152 = vmatpush1.msra.mxu0 0.0
  %153 = vmatprep.subr.mxu0 0.0
  %154 = vmatpush1.msra.mxu0 0.0
  %155 = vmatprep.subr.mxu0 0.0
  %156 = vmatpush1.msra.mxu0 0.0
  %157 = vmatprep.subr.mxu0 0.0
  %158 = vmatpush1.msra.mxu0 0.0
  %159 = vmatprep.subr.mxu0 0.0
  %160 = vmatpush1.msra.mxu0 0.0
  %161 = vmatprep.subr.mxu0 0.0
  %162 = vmatpush1.msra.mxu0 0.0
  %163 = vmatprep.subr.mxu0 0.0
  %164 = vmatpush1.msra.mxu0 0.0
  %165 = vmatprep.subr.mxu0 0.0
  %166 = vmatpush1.msra.mxu0 0.0
  %167 = vmatprep.subr.mxu0 0.0
  %168 = vmatpush1.msra.mxu0 0.0
  %169 = vmatprep.subr.mxu0 0.0
  %170 = vmatpush1.msra.mxu0 0.0
  %171 = vmatprep.subr.mxu0 0.0
  %172 = vmatpush1.msra.mxu0 0.0
  %173 = vmatprep.subr.mxu0 0.0
  %174 = vmatpush1.msra.mxu0 0.0
  %175 = vmatprep.subr.mxu0 0.0
  %176 = vmatpush1.msra.mxu0 0.0
  %177 = vmatprep.subr.mxu0 0.0
  %178 = vmatpush1.msra.mxu0 0.0
  %179 = vmatprep.mubr.f32.mxu0 0.0
  %180 = vmatmul.mubr.f32.gmra.mrb[0].mxu0 %v113
  %v181 = vpop.f32.mrb[0].mxu0
  %v182 = vadd.f32 %v109, %v181
  %v183 = vpop.f32.mrb[0].mxu0
  %184 = vdwg.mxu0
  %v185 = vld [vmem:[%s4] sm:$0x1]
  %v187 = vlaneseq
  %v188 = vshrl.u32 %v187, 7
  %v189 = vsub.s32 0, %v188
  %v190 = vrot.slane %v185, %v189
  %v192 = vadd.f32 %v182, %v190
  %193 = vst [vmem:[%s5] sm:$0xff] %v192
  // Predicated region
  $region22: #{birnn_forward.9} parent=0 // pred_check
    _
  $region23: #{birnn_forward.9} parent=0 // pred_check_branch
    %195 = sbr.rel (0) target = $region25
  $region24: #{birnn_forward.9} parent=0 // pred_region
    _
  $region25: #{birnn_forward.9} parent=0 // pred_fallthru
    _
  // Predicated region
  $region26: #{birnn_forward.9} parent=0 // pred_check
    _
  $region27: #{birnn_forward.9} parent=0 // pred_check_branch
    %197 = sbr.rel (0) target = $region29
  $region28: #{birnn_forward.9} parent=0 // pred_region
    _
  $region29: #{birnn_forward.9} parent=0 // pred_fallthru
    _

// kernel: birnn_forward.5
$region0: #{birnn_forward.5}
  #allocation0 [shape = 'u32[]', space=smem, size = 0x4, offset = 0x4, fixed_abs, tag = 'smem constant byte address 0x4 - core index']
  #allocation1 [shape = 'u32[144,128]{1,0:T(1,128)}', space=vmem, size = 0x12000, scoped, tag = 'internal scratch']
  %s0 = inlined_call_operand.vmem [shape: f32[64,32], index: 0, kind: input, shape index: {}]
  %s1 = inlined_call_operand.vmem [shape: f32[32,128], index: 1, kind: input, shape index: {}]
  %s2 = inlined_call_operand.vmem [shape: f32[32,128], index: 2, kind: input, shape index: {}]
  %s3 = inlined_call_operand.vmem [shape: f32[1,128], index: 3, kind: input, shape index: {}]
  %s4 = inlined_call_operand.vmem [shape: f32[1,128], index: 4, kind: input, shape index: {}]
  %s5 = inlined_call_operand.vmem [shape: f32[64,128], index: 5, kind: output, shape index: {0}]
  %s6 = inlined_call_operand.vmem [shape: f32[64,128], index: 6, kind: output, shape index: {1}]
  %7 = xla_tuple %s5, %s6
  %s8 = sld [smem:[#allocation0]]
  $region38: #{birnn_forward.5} parent=0
    _
  %s10 = ssub.s32 1, %s8
  %s11 = scalar_select 0, %s10, %s8
  // Predicated region
  $region2: #{birnn_forward.5} parent=0 // pred_check
    _
  $region3: #{birnn_forward.5} parent=0 // pred_check_branch
    %13 = sbr.rel (0) target = $region5
  $region4: #{birnn_forward.5} parent=0 // pred_region
    _
  $region5: #{birnn_forward.5} parent=0 // pred_fallthru
    _
  // Predicated region
  $region6: #{birnn_forward.5} parent=0 // pred_check
    _
  $region7: #{birnn_forward.5} parent=0 // pred_check_branch
    %15 = sbr.rel (0) target = $region9
  $region8: #{birnn_forward.5} parent=0 // pred_region
    _
  $region9: #{birnn_forward.5} parent=0 // pred_fallthru
    _
  // Predicated region
  $region10: #{birnn_forward.5} parent=0 // pred_check
    _
  $region11: #{birnn_forward.5} parent=0 // pred_check_branch
    %17 = sbr.rel (0) target = $region13
  $region12: #{birnn_forward.5} parent=0 // pred_region
    _
  $region13: #{birnn_forward.5} parent=0 // pred_fallthru
    _
  // Predicated region
  $region14: #{birnn_forward.5} parent=0 // pred_check
    _
  $region15: #{birnn_forward.5} parent=0 // pred_check_branch
    %19 = sbr.rel (0) target = $region17
  $region16: #{birnn_forward.5} parent=0 // pred_region
    _
  $region17: #{birnn_forward.5} parent=0 // pred_fallthru
    _
  // Predicated region
  $region18: #{birnn_forward.5} parent=0 // pred_check
    _
  $region19: #{birnn_forward.5} parent=0 // pred_check_branch
    %21 = sbr.rel (0) target = $region21
  $region20: #{birnn_forward.5} parent=0 // pred_region
    _
  $region21: #{birnn_forward.5} parent=0 // pred_fallthru
    _
  %v22 = vld [vmem:[%s0] sm:$0xff]
  %v23 = vld [vmem:[%s0 + $0x8] sm:$0xff]
  %v24 = vld [vmem:[%s0 + $0x10] sm:$0xff]
  %v25 = vld [vmem:[%s0 + $0x18] sm:$0xff]
  %v26 = vld [vmem:[%s0 + $0x20] sm:$0xff]
  %v27 = vld [vmem:[%s0 + $0x28] sm:$0xff]
  %v28 = vld [vmem:[%s0 + $0x30] sm:$0xff]
  %v29 = vld [vmem:[%s0 + $0x38] sm:$0xff]
  %v30 = vld [vmem:[%s1] sm:$0xff]
  %v31 = vld [vmem:[%s1 + $0x8] sm:$0xff]
  %v32 = vld [vmem:[%s1 + $0x10] sm:$0xff]
  %v33 = vld [vmem:[%s1 + $0x18] sm:$0xff]
  %v34 = vld [vmem:[%s3] sm:$0x1]
  %v36 = vlaneseq
  %v37 = vshrl.u32 %v36, 7
  %v38 = vsub.s32 0, %v37
  %v39 = vrot.slane %v34, %v38
  %vm41 = vcmask 261120
  %v43 = vsel %vm41, %v22, 0
  %v46 = vsel %vm41, %v23, 0
  %v49 = vsel %vm41, %v24, 0
  %v52 = vsel %vm41, %v25, 0
  %v55 = vsel %vm41, %v26, 0
  %v58 = vsel %vm41, %v27, 0
  %v61 = vsel %vm41, %v28, 0
  %v64 = vsel %vm41, %v29, 0
  %66 = vmatprep.subr.mxu0 0.0
  %67 = vmatpush1.msra.mxu0 %v30
  %68 = vmatprep.subr.mxu0 0.0
  %69 = vmatpush1.msra.mxu0 %v31
  %70 = vmatprep.subr.mxu0 0.0
  %71 = vmatpush1.msra.mxu0 %v32
  %72 = vmatprep.subr.mxu0 0.0
  %73 = vmatpush1.msra.mxu0 %v33
  %74 = vmatprep.subr.mxu0 0.0
  %75 = vmatpush1.msra.mxu0 0.0
  %76 = vmatprep.subr.mxu0 0.0
  %77 = vmatpush1.msra.mxu0 0.0
  %78 = vmatprep.subr.mxu0 0.0
  %79 = vmatpush1.msra.mxu0 0.0
  %80 = vmatprep.subr.mxu0 0.0
  %81 = vmatpush1.msra.mxu0 0.0
  %82 = vmatprep.subr.mxu0 0.0
  %83 = vmatpush1.msra.mxu0 0.0
  %84 = vmatprep.subr.mxu0 0.0
  %85 = vmatpush1.msra.mxu0 0.0
  %86 = vmatprep.subr.mxu0 0.0
  %87 = vmatpush1.msra.mxu0 0.0
  %88 = vmatprep.subr.mxu0 0.0
  %89 = vmatpush1.msra.mxu0 0.0
  %90 = vmatprep.subr.mxu0 0.0
  %91 = vmatpush1.msra.mxu0 0.0
  %92 = vmatprep.subr.mxu0 0.0
  %93 = vmatpush1.msra.mxu0 0.0
  %94 = vmatprep.subr.mxu0 0.0
  %95 = vmatpush1.msra.mxu0 0.0
  %96 = vmatprep.subr.mxu0 0.0
  %97 = vmatpush1.msra.mxu0 0.0
  %98 = vmatprep.subr.mxu0 0.0
  %99 = vmatpush1.msra.mxu0 0.0
  %100 = vmatprep.subr.mxu0 0.0
  %101 = vmatpush1.msra.mxu0 0.0
  %102 = vmatprep.subr.mxu0 0.0
  %103 = vmatpush1.msra.mxu0 0.0
  %104 = vmatprep.subr.mxu0 0.0
  %105 = vmatpush1.msra.mxu0 0.0
  %106 = vmatprep.subr.mxu0 0.0
  %107 = vmatpush1.msra.mxu0 0.0
  %108 = vmatprep.subr.mxu0 0.0
  %109 = vmatpush1.msra.mxu0 0.0
  %110 = vmatprep.subr.mxu0 0.0
  %111 = vmatpush1.msra.mxu0 0.0
  %112 = vmatprep.subr.mxu0 0.0
  %113 = vmatpush1.msra.mxu0 0.0
  %114 = vmatprep.subr.mxu0 0.0
  %115 = vmatpush1.msra.mxu0 0.0
  %116 = vmatprep.subr.mxu0 0.0
  %117 = vmatpush1.msra.mxu0 0.0
  %118 = vmatprep.subr.mxu0 0.0
  %119 = vmatpush1.msra.mxu0 0.0
  %120 = vmatprep.subr.mxu0 0.0
  %121 = vmatpush1.msra.mxu0 0.0
  %122 = vmatprep.subr.mxu0 0.0
  %123 = vmatpush1.msra.mxu0 0.0
  %124 = vmatprep.subr.mxu0 0.0
  %125 = vmatpush1.msra.mxu0 0.0
  %126 = vmatprep.subr.mxu0 0.0
  %127 = vmatpush1.msra.mxu0 0.0
  %128 = vmatprep.subr.mxu0 0.0
  %129 = vmatpush1.msra.mxu0 0.0
  %130 = vmatprep.mubr.f32.mxu0 0.0
  %131 = vmatmul.mubr.f32.gmra.mrb[0].mxu0 %v43
  %v132 = vpop.f32.mrb[0].mxu0
  %v133 = vadd.f32 %v39, %v132
  %v134 = vpop.f32.mrb[0].mxu0
  %135 = vmatprep.mubr.f32.mxu0 0.0
  %136 = vmatmul.mubr.f32.gmra.mrb[0].mxu0 %v46
  %v137 = vpop.f32.mrb[0].mxu0
  %v138 = vadd.f32 %v39, %v137
  %v139 = vpop.f32.mrb[0].mxu0
  %140 = vmatprep.mubr.f32.mxu0 0.0
  %141 = vmatmul.mubr.f32.gmra.mrb[0].mxu0 %v49
  %v142 = vpop.f32.mrb[0].mxu0
  %v143 = vadd.f32 %v39, %v142
  %v144 = vpop.f32.mrb[0].mxu0
  %145 = vmatprep.mubr.f32.mxu0 0.0
  %146 = vmatmul.mubr.f32.gmra.mrb[0].mxu0 %v52
  %v147 = vpop.f32.mrb[0].mxu0
  %v148 = vadd.f32 %v39, %v147
  %v149 = vpop.f32.mrb[0].mxu0
  %150 = vmatprep.mubr.f32.mxu0 0.0
  %151 = vmatmul.mubr.f32.gmra.mrb[0].mxu0 %v55
  %v152 = vpop.f32.mrb[0].mxu0
  %v153 = vadd.f32 %v39, %v152
  %v154 = vpop.f32.mrb[0].mxu0
  %155 = vmatprep.mubr.f32.mxu0 0.0
  %156 = vmatmul.mubr.f32.gmra.mrb[0].mxu0 %v58
  %v157 = vpop.f32.mrb[0].mxu0
  %v158 = vadd.f32 %v39, %v157
  %v159 = vpop.f32.mrb[0].mxu0
  %160 = vmatprep.mubr.f32.mxu0 0.0
  %161 = vmatmul.mubr.f32.gmra.mrb[0].mxu0 %v61
  %v162 = vpop.f32.mrb[0].mxu0
  %v163 = vadd.f32 %v39, %v162
  %v164 = vpop.f32.mrb[0].mxu0
  %165 = vmatprep.mubr.f32.mxu0 0.0
  %166 = vmatmul.mubr.f32.gmra.mrb[0].mxu0 %v64
  %v167 = vpop.f32.mrb[0].mxu0
  %v168 = vadd.f32 %v39, %v167
  %v169 = vpop.f32.mrb[0].mxu0
  %170 = vdwg.mxu0
  %171 = vst [vmem:[%s5] sm:$0xff] %v133
  %172 = vst [vmem:[%s5 + $0x8] sm:$0xff] %v138
  %173 = vst [vmem:[%s5 + $0x10] sm:$0xff] %v143
  %174 = vst [vmem:[%s5 + $0x18] sm:$0xff] %v148
  %175 = vst [vmem:[%s5 + $0x20] sm:$0xff] %v153
  %176 = vst [vmem:[%s5 + $0x28] sm:$0xff] %v158
  %177 = vst [vmem:[%s5 + $0x30] sm:$0xff] %v163
  %178 = vst [vmem:[%s5 + $0x38] sm:$0xff] %v168
  %v179 = vld [vmem:[%s2] sm:$0xff]
  %v180 = vld [vmem:[%s2 + $0x8] sm:$0xff]
  %v181 = vld [vmem:[%s2 + $0x10] sm:$0xff]
  %v182 = vld [vmem:[%s2 + $0x18] sm:$0xff]
  %v183 = vld [vmem:[%s4] sm:$0x1]
  %v185 = vlaneseq
  %v186 = vshrl.u32 %v185, 7
  %v187 = vsub.s32 0, %v186
  %v188 = vrot.slane %v183, %v187
  %190 = vmatprep.subr.mxu0 0.0
  %191 = vmatpush1.msra.mxu0 %v179
  %192 = vmatprep.subr.mxu0 0.0
  %193 = vmatpush1.msra.mxu0 %v180
  %194 = vmatprep.subr.mxu0 0.0
  %195 = vmatpush1.msra.mxu0 %v181
  %196 = vmatprep.subr.mxu0 0.0
  %197 = vmatpush1.msra.mxu0 %v182
  %198 = vmatprep.subr.mxu0 0.0
  %199 = vmatpush1.msra.mxu0 0.0
  %200 = vmatprep.subr.mxu0 0.0
  %201 = vmatpush1.msra.mxu0 0.0
  %202 = vmatprep.subr.mxu0 0.0
  %203 = vmatpush1.msra.mxu0 0.0
  %204 = vmatprep.subr.mxu0 0.0
  %205 = vmatpush1.msra.mxu0 0.0
  %206 = vmatprep.subr.mxu0 0.0
  %207 = vmatpush1.msra.mxu0 0.0
  %208 = vmatprep.subr.mxu0 0.0
  %209 = vmatpush1.msra.mxu0 0.0
  %210 = vmatprep.subr.mxu0 0.0
  %211 = vmatpush1.msra.mxu0 0.0
  %212 = vmatprep.subr.mxu0 0.0
  %213 = vmatpush1.msra.mxu0 0.0
  %214 = vmatprep.subr.mxu0 0.0
  %215 = vmatpush1.msra.mxu0 0.0
  %216 = vmatprep.subr.mxu0 0.0
  %217 = vmatpush1.msra.mxu0 0.0
  %218 = vmatprep.subr.mxu0 0.0
  %219 = vmatpush1.msra.mxu0 0.0
  %220 = vmatprep.subr.mxu0 0.0
  %221 = vmatpush1.msra.mxu0 0.0
  %222 = vmatprep.subr.mxu0 0.0
  %223 = vmatpush1.msra.mxu0 0.0
  %224 = vmatprep.subr.mxu0 0.0
  %225 = vmatpush1.msra.mxu0 0.0
  %226 = vmatprep.subr.mxu0 0.0
  %227 = vmatpush1.msra.mxu0 0.0
  %228 = vmatprep.subr.mxu0 0.0
  %229 = vmatpush1.msra.mxu0 0.0
  %230 = vmatprep.subr.mxu0 0.0
  %231 = vmatpush1.msra.mxu0 0.0
  %232 = vmatprep.subr.mxu0 0.0
  %233 = vmatpush1.msra.mxu0 0.0
  %234 = vmatprep.subr.mxu0 0.0
  %235 = vmatpush1.msra.mxu0 0.0
  %236 = vmatprep.subr.mxu0 0.0
  %237 = vmatpush1.msra.mxu0 0.0
  %238 = vmatprep.subr.mxu0 0.0
  %239 = vmatpush1.msra.mxu0 0.0
  %240 = vmatprep.subr.mxu0 0.0
  %241 = vmatpush1.msra.mxu0 0.0
  %242 = vmatprep.subr.mxu0 0.0
  %243 = vmatpush1.msra.mxu0 0.0
  %244 = vmatprep.subr.mxu0 0.0
  %245 = vmatpush1.msra.mxu0 0.0
  %246 = vmatprep.subr.mxu0 0.0
  %247 = vmatpush1.msra.mxu0 0.0
  %248 = vmatprep.subr.mxu0 0.0
  %249 = vmatpush1.msra.mxu0 0.0
  %250 = vmatprep.subr.mxu0 0.0
  %251 = vmatpush1.msra.mxu0 0.0
  %252 = vmatprep.subr.mxu0 0.0
  %253 = vmatpush1.msra.mxu0 0.0
  %254 = vmatprep.mubr.f32.mxu0 0.0
  %255 = vmatmul.mubr.f32.gmra.mrb[0].mxu0 %v43
  %v256 = vpop.f32.mrb[0].mxu0
  %v257 = vadd.f32 %v188, %v256
  %v258 = vpop.f32.mrb[0].mxu0
  %259 = vmatprep.mubr.f32.mxu0 0.0
  %260 = vmatmul.mubr.f32.gmra.mrb[0].mxu0 %v46
  %v261 = vpop.f32.mrb[0].mxu0
  %v262 = vadd.f32 %v188, %v261
  %v263 = vpop.f32.mrb[0].mxu0
  %264 = vmatprep.mubr.f32.mxu0 0.0
  %265 = vmatmul.mubr.f32.gmra.mrb[0].mxu0 %v49
  %v266 = vpop.f32.mrb[0].mxu0
  %v267 = vadd.f32 %v188, %v266
  %v268 = vpop.f32.mrb[0].mxu0
  %269 = vmatprep.mubr.f32.mxu0 0.0
  %270 = vmatmul.mubr.f32.gmra.mrb[0].mxu0 %v52
  %v271 = vpop.f32.mrb[0].mxu0
  %v272 = vadd.f32 %v188, %v271
  %v273 = vpop.f32.mrb[0].mxu0
  %274 = vmatprep.mubr.f32.mxu0 0.0
  %275 = vmatmul.mubr.f32.gmra.mrb[0].mxu0 %v55
  %v276 = vpop.f32.mrb[0].mxu0
  %v277 = vadd.f32 %v188, %v276
  %v278 = vpop.f32.mrb[0].mxu0
  %279 = vmatprep.mubr.f32.mxu0 0.0
  %280 = vmatmul.mubr.f32.gmra.mrb[0].mxu0 %v58
  %v281 = vpop.f32.mrb[0].mxu0
  %v282 = vadd.f32 %v188, %v281
  %v283 = vpop.f32.mrb[0].mxu0
  %284 = vmatprep.mubr.f32.mxu0 0.0
  %285 = vmatmul.mubr.f32.gmra.mrb[0].mxu0 %v61
  %v286 = vpop.f32.mrb[0].mxu0
  %v287 = vadd.f32 %v188, %v286
  %v288 = vpop.f32.mrb[0].mxu0
  %289 = vmatprep.mubr.f32.mxu0 0.0
  %290 = vmatmul.mubr.f32.gmra.mrb[0].mxu0 %v64
  %v291 = vpop.f32.mrb[0].mxu0
  %v292 = vadd.f32 %v188, %v291
  %v293 = vpop.f32.mrb[0].mxu0
  %294 = vdwg.mxu0
  %295 = vst [vmem:[%s6] sm:$0xff] %v257
  %296 = vst [vmem:[%s6 + $0x8] sm:$0xff] %v262
  %297 = vst [vmem:[%s6 + $0x10] sm:$0xff] %v267
  %298 = vst [vmem:[%s6 + $0x18] sm:$0xff] %v272
  %299 = vst [vmem:[%s6 + $0x20] sm:$0xff] %v277
  %300 = vst [vmem:[%s6 + $0x28] sm:$0xff] %v282
  %301 = vst [vmem:[%s6 + $0x30] sm:$0xff] %v287
  %302 = vst [vmem:[%s6 + $0x38] sm:$0xff] %v292
  // Predicated region
  $region22: #{birnn_forward.5} parent=0 // pred_check
    _
  $region23: #{birnn_forward.5} parent=0 // pred_check_branch
    %304 = sbr.rel (0) target = $region25
  $region24: #{birnn_forward.5} parent=0 // pred_region
    _
  $region25: #{birnn_forward.5} parent=0 // pred_fallthru
    _
  // Predicated region
  $region26: #{birnn_forward.5} parent=0 // pred_check
    _
  $region27: #{birnn_forward.5} parent=0 // pred_check_branch
    %306 = sbr.rel (0) target = $region29
  $region28: #{birnn_forward.5} parent=0 // pred_region
    _
  $region29: #{birnn_forward.5} parent=0 // pred_fallthru
    _
  // Predicated region
  $region30: #{birnn_forward.5} parent=0 // pred_check
    _
  $region31: #{birnn_forward.5} parent=0 // pred_check_branch
    %308 = sbr.rel (0) target = $region33
  $region32: #{birnn_forward.5} parent=0 // pred_region
    _
  $region33: #{birnn_forward.5} parent=0 // pred_fallthru
    _
  // Predicated region
  $region34: #{birnn_forward.5} parent=0 // pred_check
    _
  $region35: #{birnn_forward.5} parent=0 // pred_check_branch
    %310 = sbr.rel (0) target = $region37
  $region36: #{birnn_forward.5} parent=0 // pred_region
    _
  $region37: #{birnn_forward.5} parent=0 // pred_fallthru
    _

// kernel: birnn_forward.6
$region0: #{birnn_forward.6}
  #allocation0 [shape = 'u32[]', space=smem, size = 0x4, offset = 0x4, fixed_abs, tag = 'smem constant byte address 0x4 - core index']
  #allocation1 [shape = 'u32[144,128]{1,0:T(1,128)}', space=vmem, size = 0x12000, scoped, tag = 'internal scratch']
  #allocation2 [shape = 'f32[8,32]{1,0:T(8,128)}', space=vmem, size = 0x1000, scoped, tag = 'scratch operand']
  #allocation3 [shape = 'f32[8,32]{1,0:T(8,128)}', space=vmem, size = 0x1000, scoped, tag = 'scratch operand']
  #allocation4 [shape = 'f32[8,32]{1,0:T(8,128)}', space=vmem, size = 0x1000, scoped, tag = 'scratch operand']
  #allocation5 [shape = 'f32[8,32]{1,0:T(8,128)}', space=vmem, size = 0x1000, scoped, tag = 'scratch operand']
  %s0 = inlined_call_operand.vmem [shape: f32[8,8,128], index: 0, kind: input, shape index: {}]
  %s1 = inlined_call_operand.vmem [shape: f32[8,8,128], index: 1, kind: input, shape index: {}]
  %s2 = inlined_call_operand.vmem [shape: f32[32,128], index: 2, kind: input, shape index: {}]
  %s3 = inlined_call_operand.vmem [shape: f32[32,128], index: 3, kind: input, shape index: {}]
  %s4 = inlined_call_operand.vmem [shape: f32[8,8,64], index: 4, kind: output, shape index: {}]
  %s5 = sld [smem:[#allocation0]]
  $region26: #{birnn_forward.6} parent=0
    _
  %s7 = ssub.s32 1, %s5
  %s8 = scalar_select 0, %s7, %s5
  // Predicated region
  $region2: #{birnn_forward.6} parent=0 // pred_check
    _
  $region3: #{birnn_forward.6} parent=0 // pred_check_branch
    %10 = sbr.rel (0) target = $region5
  $region4: #{birnn_forward.6} parent=0 // pred_region
    _
  $region5: #{birnn_forward.6} parent=0 // pred_fallthru
    _
  // Predicated region
  $region6: #{birnn_forward.6} parent=0 // pred_check
    _
  $region7: #{birnn_forward.6} parent=0 // pred_check_branch
    %12 = sbr.rel (0) target = $region9
  $region8: #{birnn_forward.6} parent=0 // pred_region
    _
  $region9: #{birnn_forward.6} parent=0 // pred_fallthru
    _
  // Predicated region
  $region10: #{birnn_forward.6} parent=0 // pred_check
    _
  $region11: #{birnn_forward.6} parent=0 // pred_check_branch
    %14 = sbr.rel (0) target = $region13
  $region12: #{birnn_forward.6} parent=0 // pred_region
    _
  $region13: #{birnn_forward.6} parent=0 // pred_fallthru
    _
  // Predicated region
  $region14: #{birnn_forward.6} parent=0 // pred_check
    _
  $region15: #{birnn_forward.6} parent=0 // pred_check_branch
    %16 = sbr.rel (0) target = $region17
  $region16: #{birnn_forward.6} parent=0 // pred_region
    _
  $region17: #{birnn_forward.6} parent=0 // pred_fallthru
    _
  %vm17 = vcmask 261120
  %18 = vst.msk [vmem:[#allocation2] sm:$0xff] %vm17, 0.0
  %19 = vst.msk [vmem:[#allocation3] sm:$0xff] %vm17, 0.0
  %20 = vst.msk [vmem:[#allocation4] sm:$0xff] %vm17, 0.0
  %21 = vst.msk [vmem:[#allocation5] sm:$0xff] %vm17, 0.0
  %v22 = vld [vmem:[%s2] sm:$0xff]
  %v23 = vld [vmem:[%s2 + $0x8] sm:$0xff]
  %v24 = vld [vmem:[%s2 + $0x10] sm:$0xff]
  %v25 = vld [vmem:[%s2 + $0x18] sm:$0xff]
  %v26 = vld [vmem:[%s3] sm:$0xff]
  %v27 = vld [vmem:[%s3 + $0x8] sm:$0xff]
  %v28 = vld [vmem:[%s3 + $0x10] sm:$0xff]
  %v29 = vld [vmem:[%s3 + $0x18] sm:$0xff]
  %v30 = vld [vmem:[#allocation2] sm:$0xff]
  %v31 = vld [vmem:[%s0] sm:$0xff]
  %v33 = vsel %vm17, %v30, 0
  %35 = vmatprep.subr.mxu0 0.0
  %36 = vmatpush1.msra.mxu0 %v22
  %37 = vmatprep.subr.mxu0 0.0
  %38 = vmatpush1.msra.mxu0 %v23
  %39 = vmatprep.subr.mxu0 0.0
  %40 = vmatpush1.msra.mxu0 %v24
  %41 = vmatprep.subr.mxu0 0.0
  %42 = vmatpush1.msra.mxu0 %v25
  %43 = vmatprep.subr.mxu0 0.0
  %44 = vmatpush1.msra.mxu0 0.0
  %45 = vmatprep.subr.mxu0 0.0
  %46 = vmatpush1.msra.mxu0 0.0
  %47 = vmatprep.subr.mxu0 0.0
  %48 = vmatpush1.msra.mxu0 0.0
  %49 = vmatprep.subr.mxu0 0.0
  %50 = vmatpush1.msra.mxu0 0.0
  %51 = vmatprep.subr.mxu0 0.0
  %52 = vmatpush1.msra.mxu0 0.0
  %53 = vmatprep.subr.mxu0 0.0
  %54 = vmatpush1.msra.mxu0 0.0
  %55 = vmatprep.subr.mxu0 0.0
  %56 = vmatpush1.msra.mxu0 0.0
  %57 = vmatprep.subr.mxu0 0.0
  %58 = vmatpush1.msra.mxu0 0.0
  %59 = vmatprep.subr.mxu0 0.0
  %60 = vmatpush1.msra.mxu0 0.0
  %61 = vmatprep.subr.mxu0 0.0
  %62 = vmatpush1.msra.mxu0 0.0
  %63 = vmatprep.subr.mxu0 0.0
  %64 = vmatpush1.msra.mxu0 0.0
  %65 = vmatprep.subr.mxu0 0.0
  %66 = vmatpush1.msra.mxu0 0.0
  %67 = vmatprep.subr.mxu0 0.0
  %68 = vmatpush1.msra.mxu0 0.0
  %69 = vmatprep.subr.mxu0 0.0
  %70 = vmatpush1.msra.mxu0 0.0
  %71 = vmatprep.subr.mxu0 0.0
  %72 = vmatpush1.msra.mxu0 0.0
  %73 = vmatprep.subr.mxu0 0.0
  %74 = vmatpush1.msra.mxu0 0.0
  %75 = vmatprep.subr.mxu0 0.0
  %76 = vmatpush1.msra.mxu0 0.0
  %77 = vmatprep.subr.mxu0 0.0
  %78 = vmatpush1.msra.mxu0 0.0
  %79 = vmatprep.subr.mxu0 0.0
  %80 = vmatpush1.msra.mxu0 0.0
  %81 = vmatprep.subr.mxu0 0.0
  %82 = vmatpush1.msra.mxu0 0.0
  %83 = vmatprep.subr.mxu0 0.0
  %84 = vmatpush1.msra.mxu0 0.0
  %85 = vmatprep.subr.mxu0 0.0
  %86 = vmatpush1.msra.mxu0 0.0
  %87 = vmatprep.subr.mxu0 0.0
  %88 = vmatpush1.msra.mxu0 0.0
  %89 = vmatprep.subr.mxu0 0.0
  %90 = vmatpush1.msra.mxu0 0.0
  %91 = vmatprep.subr.mxu0 0.0
  %92 = vmatpush1.msra.mxu0 0.0
  %93 = vmatprep.subr.mxu0 0.0
  %94 = vmatpush1.msra.mxu0 0.0
  %95 = vmatprep.subr.mxu0 0.0
  %96 = vmatpush1.msra.mxu0 0.0
  %97 = vmatprep.subr.mxu0 0.0
  %98 = vmatpush1.msra.mxu0 0.0
  %99 = vmatprep.mubr.f32.mxu0 0.0
  %100 = vmatmul.mubr.f32.gmra.mrb[0].mxu0 %v33
  %v101 = vpop.f32.mrb[0].mxu0
  %v102 = vadd.f32 %v31, %v101
  %v103 = vpop.f32.mrb[0].mxu0
  %104 = vdwg.mxu0
  %v105 = vld [vmem:[#allocation3] sm:$0xff]
  %v106 = vmul.f32 %v102, 0.5
  %v107 = vtanh.pop %v106
  %v108 = vadd.f32 %v107, 1.0
  %v109 = vmul.f32 %v108, 0.5
  %v110 = vtanh.pop %v102
  %112 = vrot.lane.b32.xlu0 %v105, 32
  %v113 = vpop.permute.xlu0 %112
  %v115 = vmul.f32 %v109, %v113
  %117 = vrot.lane.b32.xlu0 %v110, 64
  %v118 = vpop.permute.xlu0 %117
  %v120 = vmul.f32 %v109, %v118
  %122 = vrot.lane.b32.xlu0 %v120, 32
  %v123 = vpop.permute.xlu0 %122
  %v125 = vadd.f32 %v115, %v123
  %v126 = vtanh.pop %v125
  %128 = vrot.lane.b32.xlu0 %v126, 64
  %v129 = vpop.permute.xlu0 %128
  %v131 = vmul.f32 %v109, %v129
  %133 = vrot.lane.b32.xlu0 %v131, 32
  %v134 = vpop.permute.xlu0 %133
  %136 = vst.msk [vmem:[#allocation2] sm:$0xff] %vm17, %v134
  %138 = vrot.lane.b32.xlu0 %v125, 96
  %v139 = vpop.permute.xlu0 %138
  %141 = vst.msk [vmem:[#allocation3] sm:$0xff] %vm17, %v139
  %142 = vst.msk [vmem:[%s4] sm:$0xff] %vm17, %v134
  %v143 = vld [vmem:[#allocation4] sm:$0xff]
  %s144 = scalar_lea.vmem %s1, 56
  %v145 = vld [vmem:[%s144] sm:$0xff]
  %v147 = vsel %vm17, %v143, 0
  %149 = vmatprep.subr.mxu0 0.0
  %150 = vmatpush1.msra.mxu0 %v26
  %151 = vmatprep.subr.mxu0 0.0
  %152 = vmatpush1.msra.mxu0 %v27
  %153 = vmatprep.subr.mxu0 0.0
  %154 = vmatpush1.msra.mxu0 %v28
  %155 = vmatprep.subr.mxu0 0.0
  %156 = vmatpush1.msra.mxu0 %v29
  %157 = vmatprep.subr.mxu0 0.0
  %158 = vmatpush1.msra.mxu0 0.0
  %159 = vmatprep.subr.mxu0 0.0
  %160 = vmatpush1.msra.mxu0 0.0
  %161 = vmatprep.subr.mxu0 0.0
  %162 = vmatpush1.msra.mxu0 0.0
  %163 = vmatprep.subr.mxu0 0.0
  %164 = vmatpush1.msra.mxu0 0.0
  %165 = vmatprep.subr.mxu0 0.0
  %166 = vmatpush1.msra.mxu0 0.0
  %167 = vmatprep.subr.mxu0 0.0
  %168 = vmatpush1.msra.mxu0 0.0
  %169 = vmatprep.subr.mxu0 0.0
  %170 = vmatpush1.msra.mxu0 0.0
  %171 = vmatprep.subr.mxu0 0.0
  %172 = vmatpush1.msra.mxu0 0.0
  %173 = vmatprep.subr.mxu0 0.0
  %174 = vmatpush1.msra.mxu0 0.0
  %175 = vmatprep.subr.mxu0 0.0
  %176 = vmatpush1.msra.mxu0 0.0
  %177 = vmatprep.subr.mxu0 0.0
  %178 = vmatpush1.msra.mxu0 0.0
  %179 = vmatprep.subr.mxu0 0.0
  %180 = vmatpush1.msra.mxu0 0.0
  %181 = vmatprep.subr.mxu0 0.0
  %182 = vmatpush1.msra.mxu0 0.0
  %183 = vmatprep.subr.mxu0 0.0
  %184 = vmatpush1.msra.mxu0 0.0
  %185 = vmatprep.subr.mxu0 0.0
  %186 = vmatpush1.msra.mxu0 0.0
  %187 = vmatprep.subr.mxu0 0.0
  %188 = vmatpush1.msra.mxu0 0.0
  %189 = vmatprep.subr.mxu0 0.0
  %190 = vmatpush1.msra.mxu0 0.0
  %191 = vmatprep.subr.mxu0 0.0
  %192 = vmatpush1.msra.mxu0 0.0
  %193 = vmatprep.subr.mxu0 0.0
  %194 = vmatpush1.msra.mxu0 0.0
  %195 = vmatprep.subr.mxu0 0.0
  %196 = vmatpush1.msra.mxu0 0.0
  %197 = vmatprep.subr.mxu0 0.0
  %198 = vmatpush1.msra.mxu0 0.0
  %199 = vmatprep.subr.mxu0 0.0
  %200 = vmatpush1.msra.mxu0 0.0
  %201 = vmatprep.subr.mxu0 0.0
  %202 = vmatpush1.msra.mxu0 0.0
  %203 = vmatprep.subr.mxu0 0.0
  %204 = vmatpush1.msra.mxu0 0.0
  %205 = vmatprep.subr.mxu0 0.0
  %206 = vmatpush1.msra.mxu0 0.0
  %207 = vmatprep.subr.mxu0 0.0
  %208 = vmatpush1.msra.mxu0 0.0
  %209 = vmatprep.subr.mxu0 0.0
  %210 = vmatpush1.msra.mxu0 0.0
  %211 = vmatprep.subr.mxu0 0.0
  %212 = vmatpush1.msra.mxu0 0.0
  %213 = vmatprep.mubr.f32.mxu0 0.0
  %214 = vmatmul.mubr.f32.gmra.mrb[0].mxu0 %v147
  %v215 = vpop.f32.mrb[0].mxu0
  %v216 = vadd.f32 %v145, %v215
  %v217 = vpop.f32.mrb[0].mxu0
  %218 = vdwg.mxu0
  %v219 = vld [vmem:[#allocation5] sm:$0xff]
  %v220 = vmul.f32 %v216, 0.5
  %v221 = vtanh.pop %v220
  %v222 = vadd.f32 %v221, 1.0
  %v223 = vmul.f32 %v222, 0.5
  %v224 = vtanh.pop %v216
  %226 = vrot.lane.b32.xlu0 %v219, 32
  %v227 = vpop.permute.xlu0 %226
  %v229 = vmul.f32 %v223, %v227
  %231 = vrot.lane.b32.xlu0 %v224, 64
  %v232 = vpop.permute.xlu0 %231
  %v234 = vmul.f32 %v223, %v232
  %236 = vrot.lane.b32.xlu0 %v234, 32
  %v237 = vpop.permute.xlu0 %236
  %v239 = vadd.f32 %v229, %v237
  %v240 = vtanh.pop %v239
  %242 = vrot.lane.b32.xlu0 %v240, 64
  %v243 = vpop.permute.xlu0 %242
  %v245 = vmul.f32 %v223, %v243
  %247 = vrot.lane.b32.xlu0 %v245, 32
  %v248 = vpop.permute.xlu0 %247
  %250 = vst.msk [vmem:[#allocation4] sm:$0xff] %vm17, %v248
  %252 = vrot.lane.b32.xlu0 %v239, 96
  %v253 = vpop.permute.xlu0 %252
  %255 = vst.msk [vmem:[#allocation5] sm:$0xff] %vm17, %v253
  %256 = vrot.lane.b32.xlu0 %v245, 64
  %v257 = vpop.permute.xlu0 %256
  %s259 = scalar_lea.vmem %s4, 56
  %vm260 = vcmask 523520
  %261 = vst.msk [vmem:[%s259] sm:$0xff] %vm260, %v257
  %v262 = vld [vmem:[#allocation2] sm:$0xff]
  %s263 = scalar_lea.vmem %s0, 8
  %v264 = vld [vmem:[%s263] sm:$0xff]
  %v266 = vsel %vm17, %v262, 0
  %268 = vmatprep.subr.mxu0 0.0
  %269 = vmatpush1.msra.mxu0 %v22
  %270 = vmatprep.subr.mxu0 0.0
  %271 = vmatpush1.msra.mxu0 %v23
  %272 = vmatprep.subr.mxu0 0.0
  %273 = vmatpush1.msra.mxu0 %v24
  %274 = vmatprep.subr.mxu0 0.0
  %275 = vmatpush1.msra.mxu0 %v25
  %276 = vmatprep.subr.mxu0 0.0
  %277 = vmatpush1.msra.mxu0 0.0
  %278 = vmatprep.subr.mxu0 0.0
  %279 = vmatpush1.msra.mxu0 0.0
  %280 = vmatprep.subr.mxu0 0.0
  %281 = vmatpush1.msra.mxu0 0.0
  %282 = vmatprep.subr.mxu0 0.0
  %283 = vmatpush1.msra.mxu0 0.0
  %284 = vmatprep.subr.mxu0 0.0
  %285 = vmatpush1.msra.mxu0 0.0
  %286 = vmatprep.subr.mxu0 0.0
  %287 = vmatpush1.msra.mxu0 0.0
  %288 = vmatprep.subr.mxu0 0.0
  %289 = vmatpush1.msra.mxu0 0.0
  %290 = vmatprep.subr.mxu0 0.0
  %291 = vmatpush1.msra.mxu0 0.0
  %292 = vmatprep.subr.mxu0 0.0
  %293 = vmatpush1.msra.mxu0 0.0
  %294 = vmatprep.subr.mxu0 0.0
  %295 = vmatpush1.msra.mxu0 0.0
  %296 = vmatprep.subr.mxu0 0.0
  %297 = vmatpush1.msra.mxu0 0.0
  %298 = vmatprep.subr.mxu0 0.0
  %299 = vmatpush1.msra.mxu0 0.0
  %300 = vmatprep.subr.mxu0 0.0
  %301 = vmatpush1.msra.mxu0 0.0
  %302 = vmatprep.subr.mxu0 0.0
  %303 = vmatpush1.msra.mxu0 0.0
  %304 = vmatprep.subr.mxu0 0.0
  %305 = vmatpush1.msra.mxu0 0.0
  %306 = vmatprep.subr.mxu0 0.0
  %307 = vmatpush1.msra.mxu0 0.0
  %308 = vmatprep.subr.mxu0 0.0
  %309 = vmatpush1.msra.mxu0 0.0
  %310 = vmatprep.subr.mxu0 0.0
  %311 = vmatpush1.msra.mxu0 0.0
  %312 = vmatprep.subr.mxu0 0.0
  %313 = vmatpush1.msra.mxu0 0.0
  %314 = vmatprep.subr.mxu0 0.0
  %315 = vmatpush1.msra.mxu0 0.0
  %316 = vmatprep.subr.mxu0 0.0
  %317 = vmatpush1.msra.mxu0 0.0
  %318 = vmatprep.subr.mxu0 0.0
  %319 = vmatpush1.msra.mxu0 0.0
  %320 = vmatprep.subr.mxu0 0.0
  %321 = vmatpush1.msra.mxu0 0.0
  %322 = vmatprep.subr.mxu0 0.0
  %323 = vmatpush1.msra.mxu0 0.0
  %324 = vmatprep.subr.mxu0 0.0
  %325 = vmatpush1.msra.mxu0 0.0
  %326 = vmatprep.subr.mxu0 0.0
  %327 = vmatpush1.msra.mxu0 0.0
  %328 = vmatprep.subr.mxu0 0.0
  %329 = vmatpush1.msra.mxu0 0.0
  %330 = vmatprep.subr.mxu0 0.0
  %331 = vmatpush1.msra.mxu0 0.0
  %332 = vmatprep.mubr.f32.mxu0 0.0
  %333 = vmatmul.mubr.f32.gmra.mrb[0].mxu0 %v266
  %v334 = vpop.f32.mrb[0].mxu0
  %v335 = vadd.f32 %v264, %v334
  %v336 = vpop.f32.mrb[0].mxu0
  %337 = vdwg.mxu0
  %v338 = vld [vmem:[#allocation3] sm:$0xff]
  %v339 = vmul.f32 %v335, 0.5
  %v340 = vtanh.pop %v339
  %v341 = vadd.f32 %v340, 1.0
  %v342 = vmul.f32 %v341, 0.5
  %v343 = vtanh.pop %v335
  %345 = vrot.lane.b32.xlu0 %v338, 32
  %v346 = vpop.permute.xlu0 %345
  %v348 = vmul.f32 %v342, %v346
  %350 = vrot.lane.b32.xlu0 %v343, 64
  %v351 = vpop.permute.xlu0 %350
  %v353 = vmul.f32 %v342, %v351
  %355 = vrot.lane.b32.xlu0 %v353, 32
  %v356 = vpop.permute.xlu0 %355
  %v358 = vadd.f32 %v348, %v356
  %v359 = vtanh.pop %v358
  %361 = vrot.lane.b32.xlu0 %v359, 64
  %v362 = vpop.permute.xlu0 %361
  %v364 = vmul.f32 %v342, %v362
  %366 = vrot.lane.b32.xlu0 %v364, 32
  %v367 = vpop.permute.xlu0 %366
  %369 = vst.msk [vmem:[#allocation2] sm:$0xff] %vm17, %v367
  %371 = vrot.lane.b32.xlu0 %v358, 96
  %v372 = vpop.permute.xlu0 %371
  %374 = vst.msk [vmem:[#allocation3] sm:$0xff] %vm17, %v372
  %s375 = scalar_lea.vmem %s4, 8
  %376 = vst.msk [vmem:[%s375] sm:$0xff] %vm17, %v367
  %v377 = vld [vmem:[#allocation4] sm:$0xff]
  %s378 = scalar_lea.vmem %s1, 48
  %v379 = vld [vmem:[%s378] sm:$0xff]
  %v381 = vsel %vm17, %v377, 0
  %383 = vmatprep.subr.mxu0 0.0
  %384 = vmatpush1.msra.mxu0 %v26
  %385 = vmatprep.subr.mxu0 0.0
  %386 = vmatpush1.msra.mxu0 %v27
  %387 = vmatprep.subr.mxu0 0.0
  %388 = vmatpush1.msra.mxu0 %v28
  %389 = vmatprep.subr.mxu0 0.0
  %390 = vmatpush1.msra.mxu0 %v29
  %391 = vmatprep.subr.mxu0 0.0
  %392 = vmatpush1.msra.mxu0 0.0
  %393 = vmatprep.subr.mxu0 0.0
  %394 = vmatpush1.msra.mxu0 0.0
  %395 = vmatprep.subr.mxu0 0.0
  %396 = vmatpush1.msra.mxu0 0.0
  %397 = vmatprep.subr.mxu0 0.0
  %398 = vmatpush1.msra.mxu0 0.0
  %399 = vmatprep.subr.mxu0 0.0
  %400 = vmatpush1.msra.mxu0 0.0
  %401 = vmatprep.subr.mxu0 0.0
  %402 = vmatpush1.msra.mxu0 0.0
  %403 = vmatprep.subr.mxu0 0.0
  %404 = vmatpush1.msra.mxu0 0.0
  %405 = vmatprep.subr.mxu0 0.0
  %406 = vmatpush1.msra.mxu0 0.0
  %407 = vmatprep.subr.mxu0 0.0
  %408 = vmatpush1.msra.mxu0 0.0
  %409 = vmatprep.subr.mxu0 0.0
  %410 = vmatpush1.msra.mxu0 0.0
  %411 = vmatprep.subr.mxu0 0.0
  %412 = vmatpush1.msra.mxu0 0.0
  %413 = vmatprep.subr.mxu0 0.0
  %414 = vmatpush1.msra.mxu0 0.0
  %415 = vmatprep.subr.mxu0 0.0
  %416 = vmatpush1.msra.mxu0 0.0
  %417 = vmatprep.subr.mxu0 0.0
  %418 = vmatpush1.msra.mxu0 0.0
  %419 = vmatprep.subr.mxu0 0.0
  %420 = vmatpush1.msra.mxu0 0.0
  %421 = vmatprep.subr.mxu0 0.0
  %422 = vmatpush1.msra.mxu0 0.0
  %423 = vmatprep.subr.mxu0 0.0
  %424 = vmatpush1.msra.mxu0 0.0
  %425 = vmatprep.subr.mxu0 0.0
  %426 = vmatpush1.msra.mxu0 0.0
  %427 = vmatprep.subr.mxu0 0.0
  %428 = vmatpush1.msra.mxu0 0.0
  %429 = vmatprep.subr.mxu0 0.0
  %430 = vmatpush1.msra.mxu0 0.0
  %431 = vmatprep.subr.mxu0 0.0
  %432 = vmatpush1.msra.mxu0 0.0
  %433 = vmatprep.subr.mxu0 0.0
  %434 = vmatpush1.msra.mxu0 0.0
  %435 = vmatprep.subr.mxu0 0.0
  %436 = vmatpush1.msra.mxu0 0.0
  %437 = vmatprep.subr.mxu0 0.0
  %438 = vmatpush1.msra.mxu0 0.0
  %439 = vmatprep.subr.mxu0 0.0
  %440 = vmatpush1.msra.mxu0 0.0
  %441 = vmatprep.subr.mxu0 0.0
  %442 = vmatpush1.msra.mxu0 0.0
  %443 = vmatprep.subr.mxu0 0.0
  %444 = vmatpush1.msra.mxu0 0.0
  %445 = vmatprep.subr.mxu0 0.0
  %446 = vmatpush1.msra.mxu0 0.0
  %447 = vmatprep.mubr.f32.mxu0 0.0
  %448 = vmatmul.mubr.f32.gmra.mrb[0].mxu0 %v381
  %v449 = vpop.f32.mrb[0].mxu0
  %v450 = vadd.f32 %v379, %v449
  %v451 = vpop.f32.mrb[0].mxu0
  %452 = vdwg.mxu0
  %v453 = vld [vmem:[#allocation5] sm:$0xff]
  %v454 = vmul.f32 %v450, 0.5
  %v455 = vtanh.pop %v454
  %v456 = vadd.f32 %v455, 1.0
  %v457 = vmul.f32 %v456, 0.5
  %v458 = vtanh.pop %v450
  %460 = vrot.lane.b32.xlu0 %v453, 32
  %v461 = vpop.permute.xlu0 %460
  %v463 = vmul.f32 %v457, %v461
  %465 = vrot.lane.b32.xlu0 %v458, 64
  %v466 = vpop.permute.xlu0 %465
  %v468 = vmul.f32 %v457, %v466
  %470 = vrot.lane.b32.xlu0 %v468, 32
  %v471 = vpop.permute.xlu0 %470
  %v473 = vadd.f32 %v463, %v471
  %v474 = vtanh.pop %v473
  %476 = vrot.lane.b32.xlu0 %v474, 64
  %v477 = vpop.permute.xlu0 %476
  %v479 = vmul.f32 %v457, %v477
  %481 = vrot.lane.b32.xlu0 %v479, 32
  %v482 = vpop.permute.xlu0 %481
  %484 = vst.msk [vmem:[#allocation4] sm:$0xff] %vm17, %v482
  %486 = vrot.lane.b32.xlu0 %v473, 96
  %v487 = vpop.permute.xlu0 %486
  %489 = vst.msk [vmem:[#allocation5] sm:$0xff] %vm17, %v487
  %490 = vrot.lane.b32.xlu0 %v479, 64
  %v491 = vpop.permute.xlu0 %490
  %s493 = scalar_lea.vmem %s4, 48
  %494 = vst.msk [vmem:[%s493] sm:$0xff] %vm260, %v491
  %v495 = vld [vmem:[#allocation2] sm:$0xff]
  %s496 = scalar_lea.vmem %s0, 16
  %v497 = vld [vmem:[%s496] sm:$0xff]
  %v499 = vsel %vm17, %v495, 0
  %501 = vmatprep.subr.mxu0 0.0
  %502 = vmatpush1.msra.mxu0 %v22
  %503 = vmatprep.subr.mxu0 0.0
  %504 = vmatpush1.msra.mxu0 %v23
  %505 = vmatprep.subr.mxu0 0.0
  %506 = vmatpush1.msra.mxu0 %v24
  %507 = vmatprep.subr.mxu0 0.0
  %508 = vmatpush1.msra.mxu0 %v25
  %509 = vmatprep.subr.mxu0 0.0
  %510 = vmatpush1.msra.mxu0 0.0
  %511 = vmatprep.subr.mxu0 0.0
  %512 = vmatpush1.msra.mxu0 0.0
  %513 = vmatprep.subr.mxu0 0.0
  %514 = vmatpush1.msra.mxu0 0.0
  %515 = vmatprep.subr.mxu0 0.0
  %516 = vmatpush1.msra.mxu0 0.0
  %517 = vmatprep.subr.mxu0 0.0
  %518 = vmatpush1.msra.mxu0 0.0
  %519 = vmatprep.subr.mxu0 0.0
  %520 = vmatpush1.msra.mxu0 0.0
  %521 = vmatprep.subr.mxu0 0.0
  %522 = vmatpush1.msra.mxu0 0.0
  %523 = vmatprep.subr.mxu0 0.0
  %524 = vmatpush1.msra.mxu0 0.0
  %525 = vmatprep.subr.mxu0 0.0
  %526 = vmatpush1.msra.mxu0 0.0
  %527 = vmatprep.subr.mxu0 0.0
  %528 = vmatpush1.msra.mxu0 0.0
  %529 = vmatprep.subr.mxu0 0.0
  %530 = vmatpush1.msra.mxu0 0.0
  %531 = vmatprep.subr.mxu0 0.0
  %532 = vmatpush1.msra.mxu0 0.0
  %533 = vmatprep.subr.mxu0 0.0
  %534 = vmatpush1.msra.mxu0 0.0
  %535 = vmatprep.subr.mxu0 0.0
  %536 = vmatpush1.msra.mxu0 0.0
  %537 = vmatprep.subr.mxu0 0.0
  %538 = vmatpush1.msra.mxu0 0.0
  %539 = vmatprep.subr.mxu0 0.0
  %540 = vmatpush1.msra.mxu0 0.0
  %541 = vmatprep.subr.mxu0 0.0
  %542 = vmatpush1.msra.mxu0 0.0
  %543 = vmatprep.subr.mxu0 0.0
  %544 = vmatpush1.msra.mxu0 0.0
  %545 = vmatprep.subr.mxu0 0.0
  %546 = vmatpush1.msra.mxu0 0.0
  %547 = vmatprep.subr.mxu0 0.0
  %548 = vmatpush1.msra.mxu0 0.0
  %549 = vmatprep.subr.mxu0 0.0
  %550 = vmatpush1.msra.mxu0 0.0
  %551 = vmatprep.subr.mxu0 0.0
  %552 = vmatpush1.msra.mxu0 0.0
  %553 = vmatprep.subr.mxu0 0.0
  %554 = vmatpush1.msra.mxu0 0.0
  %555 = vmatprep.subr.mxu0 0.0
  %556 = vmatpush1.msra.mxu0 0.0
  %557 = vmatprep.subr.mxu0 0.0
  %558 = vmatpush1.msra.mxu0 0.0
  %559 = vmatprep.subr.mxu0 0.0
  %560 = vmatpush1.msra.mxu0 0.0
  %561 = vmatprep.subr.mxu0 0.0
  %562 = vmatpush1.msra.mxu0 0.0
  %563 = vmatprep.subr.mxu0 0.0
  %564 = vmatpush1.msra.mxu0 0.0
  %565 = vmatprep.mubr.f32.mxu0 0.0
  %566 = vmatmul.mubr.f32.gmra.mrb[0].mxu0 %v499
  %v567 = vpop.f32.mrb[0].mxu0
  %v568 = vadd.f32 %v497, %v567
  %v569 = vpop.f32.mrb[0].mxu0
  %570 = vdwg.mxu0
  %v571 = vld [vmem:[#allocation3] sm:$0xff]
  %v572 = vmul.f32 %v568, 0.5
  %v573 = vtanh.pop %v572
  %v574 = vadd.f32 %v573, 1.0
  %v575 = vmul.f32 %v574, 0.5
  %v576 = vtanh.pop %v568
  %578 = vrot.lane.b32.xlu0 %v571, 32
  %v579 = vpop.permute.xlu0 %578
  %v581 = vmul.f32 %v575, %v579
  %583 = vrot.lane.b32.xlu0 %v576, 64
  %v584 = vpop.permute.xlu0 %583
  %v586 = vmul.f32 %v575, %v584
  %588 = vrot.lane.b32.xlu0 %v586, 32
  %v589 = vpop.permute.xlu0 %588
  %v591 = vadd.f32 %v581, %v589
  %v592 = vtanh.pop %v591
  %594 = vrot.lane.b32.xlu0 %v592, 64
  %v595 = vpop.permute.xlu0 %594
  %v597 = vmul.f32 %v575, %v595
  %599 = vrot.lane.b32.xlu0 %v597, 32
  %v600 = vpop.permute.xlu0 %599
  %602 = vst.msk [vmem:[#allocation2] sm:$0xff] %vm17, %v600
  %604 = vrot.lane.b32.xlu0 %v591, 96
  %v605 = vpop.permute.xlu0 %604
  %607 = vst.msk [vmem:[#allocation3] sm:$0xff] %vm17, %v605
  %s608 = scalar_lea.vmem %s4, 16
  %609 = vst.msk [vmem:[%s608] sm:$0xff] %vm17, %v600
  %v610 = vld [vmem:[#allocation4] sm:$0xff]
  %s611 = scalar_lea.vmem %s1, 40
  %v612 = vld [vmem:[%s611] sm:$0xff]
  %v614 = vsel %vm17, %v610, 0
  %616 = vmatprep.subr.mxu0 0.0
  %617 = vmatpush1.msra.mxu0 %v26
  %618 = vmatprep.subr.mxu0 0.0
  %619 = vmatpush1.msra.mxu0 %v27
  %620 = vmatprep.subr.mxu0 0.0
  %621 = vmatpush1.msra.mxu0 %v28
  %622 = vmatprep.subr.mxu0 0.0
  %623 = vmatpush1.msra.mxu0 %v29
  %624 = vmatprep.subr.mxu0 0.0
  %625 = vmatpush1.msra.mxu0 0.0
  %626 = vmatprep.subr.mxu0 0.0
  %627 = vmatpush1.msra.mxu0 0.0
  %628 = vmatprep.subr.mxu0 0.0
  %629 = vmatpush1.msra.mxu0 0.0
  %630 = vmatprep.subr.mxu0 0.0
  %631 = vmatpush1.msra.mxu0 0.0
  %632 = vmatprep.subr.mxu0 0.0
  %633 = vmatpush1.msra.mxu0 0.0
  %634 = vmatprep.subr.mxu0 0.0
  %635 = vmatpush1.msra.mxu0 0.0
  %636 = vmatprep.subr.mxu0 0.0
  %637 = vmatpush1.msra.mxu0 0.0
  %638 = vmatprep.subr.mxu0 0.0
  %639 = vmatpush1.msra.mxu0 0.0
  %640 = vmatprep.subr.mxu0 0.0
  %641 = vmatpush1.msra.mxu0 0.0
  %642 = vmatprep.subr.mxu0 0.0
  %643 = vmatpush1.msra.mxu0 0.0
  %644 = vmatprep.subr.mxu0 0.0
  %645 = vmatpush1.msra.mxu0 0.0
  %646 = vmatprep.subr.mxu0 0.0
  %647 = vmatpush1.msra.mxu0 0.0
  %648 = vmatprep.subr.mxu0 0.0
  %649 = vmatpush1.msra.mxu0 0.0
  %650 = vmatprep.subr.mxu0 0.0
  %651 = vmatpush1.msra.mxu0 0.0
  %652 = vmatprep.subr.mxu0 0.0
  %653 = vmatpush1.msra.mxu0 0.0
  %654 = vmatprep.subr.mxu0 0.0
  %655 = vmatpush1.msra.mxu0 0.0
  %656 = vmatprep.subr.mxu0 0.0
  %657 = vmatpush1.msra.mxu0 0.0
  %658 = vmatprep.subr.mxu0 0.0
  %659 = vmatpush1.msra.mxu0 0.0
  %660 = vmatprep.subr.mxu0 0.0
  %661 = vmatpush1.msra.mxu0 0.0
  %662 = vmatprep.subr.mxu0 0.0
  %663 = vmatpush1.msra.mxu0 0.0
  %664 = vmatprep.subr.mxu0 0.0
  %665 = vmatpush1.msra.mxu0 0.0
  %666 = vmatprep.subr.mxu0 0.0
  %667 = vmatpush1.msra.mxu0 0.0
  %668 = vmatprep.subr.mxu0 0.0
  %669 = vmatpush1.msra.mxu0 0.0
  %670 = vmatprep.subr.mxu0 0.0
  %671 = vmatpush1.msra.mxu0 0.0
  %672 = vmatprep.subr.mxu0 0.0
  %673 = vmatpush1.msra.mxu0 0.0
  %674 = vmatprep.subr.mxu0 0.0
  %675 = vmatpush1.msra.mxu0 0.0
  %676 = vmatprep.subr.mxu0 0.0
  %677 = vmatpush1.msra.mxu0 0.0
  %678 = vmatprep.subr.mxu0 0.0
  %679 = vmatpush1.msra.mxu0 0.0
  %680 = vmatprep.mubr.f32.mxu0 0.0
  %681 = vmatmul.mubr.f32.gmra.mrb[0].mxu0 %v614
  %v682 = vpop.f32.mrb[0].mxu0
  %v683 = vadd.f32 %v612, %v682
  %v684 = vpop.f32.mrb[0].mxu0
  %685 = vdwg.mxu0
  %v686 = vld [vmem:[#allocation5] sm:$0xff]
  %v687 = vmul.f32 %v683, 0.5
  %v688 = vtanh.pop %v687
  %v689 = vadd.f32 %v688, 1.0
  %v690 = vmul.f32 %v689, 0.5
  %v691 = vtanh.pop %v683
  %693 = vrot.lane.b32.xlu0 %v686, 32
  %v694 = vpop.permute.xlu0 %693
  %v696 = vmul.f32 %v690, %v694
  %698 = vrot.lane.b32.xlu0 %v691, 64
  %v699 = vpop.permute.xlu0 %698
  %v701 = vmul.f32 %v690, %v699
  %703 = vrot.lane.b32.xlu0 %v701, 32
  %v704 = vpop.permute.xlu0 %703
  %v706 = vadd.f32 %v696, %v704
  %v707 = vtanh.pop %v706
  %709 = vrot.lane.b32.xlu0 %v707, 64
  %v710 = vpop.permute.xlu0 %709
  %v712 = vmul.f32 %v690, %v710
  %714 = vrot.lane.b32.xlu0 %v712, 32
  %v715 = vpop.permute.xlu0 %714
  %717 = vst.msk [vmem:[#allocation4] sm:$0xff] %vm17, %v715
  %719 = vrot.lane.b32.xlu0 %v706, 96
  %v720 = vpop.permute.xlu0 %719
  %722 = vst.msk [vmem:[#allocation5] sm:$0xff] %vm17, %v720
  %723 = vrot.lane.b32.xlu0 %v712, 64
  %v724 = vpop.permute.xlu0 %723
  %s726 = scalar_lea.vmem %s4, 40
  %727 = vst.msk [vmem:[%s726] sm:$0xff] %vm260, %v724
  %v728 = vld [vmem:[#allocation2] sm:$0xff]
  %s729 = scalar_lea.vmem %s0, 24
  %v730 = vld [vmem:[%s729] sm:$0xff]
  %v732 = vsel %vm17, %v728, 0
  %734 = vmatprep.subr.mxu0 0.0
  %735 = vmatpush1.msra.mxu0 %v22
  %736 = vmatprep.subr.mxu0 0.0
  %737 = vmatpush1.msra.mxu0 %v23
  %738 = vmatprep.subr.mxu0 0.0
  %739 = vmatpush1.msra.mxu0 %v24
  %740 = vmatprep.subr.mxu0 0.0
  %741 = vmatpush1.msra.mxu0 %v25
  %742 = vmatprep.subr.mxu0 0.0
  %743 = vmatpush1.msra.mxu0 0.0
  %744 = vmatprep.subr.mxu0 0.0
  %745 = vmatpush1.msra.mxu0 0.0
  %746 = vmatprep.subr.mxu0 0.0
  %747 = vmatpush1.msra.mxu0 0.0
  %748 = vmatprep.subr.mxu0 0.0
  %749 = vmatpush1.msra.mxu0 0.0
  %750 = vmatprep.subr.mxu0 0.0
  %751 = vmatpush1.msra.mxu0 0.0
  %752 = vmatprep.subr.mxu0 0.0
  %753 = vmatpush1.msra.mxu0 0.0
  %754 = vmatprep.subr.mxu0 0.0
  %755 = vmatpush1.msra.mxu0 0.0
  %756 = vmatprep.subr.mxu0 0.0
  %757 = vmatpush1.msra.mxu0 0.0
  %758 = vmatprep.subr.mxu0 0.0
  %759 = vmatpush1.msra.mxu0 0.0
  %760 = vmatprep.subr.mxu0 0.0
  %761 = vmatpush1.msra.mxu0 0.0
  %762 = vmatprep.subr.mxu0 0.0
  %763 = vmatpush1.msra.mxu0 0.0
  %764 = vmatprep.subr.mxu0 0.0
  %765 = vmatpush1.msra.mxu0 0.0
  %766 = vmatprep.subr.mxu0 0.0
  %767 = vmatpush1.msra.mxu0 0.0
  %768 = vmatprep.subr.mxu0 0.0
  %769 = vmatpush1.msra.mxu0 0.0
  %770 = vmatprep.subr.mxu0 0.0
  %771 = vmatpush1.msra.mxu0 0.0
  %772 = vmatprep.subr.mxu0 0.0
  %773 = vmatpush1.msra.mxu0 0.0
  %774 = vmatprep.subr.mxu0 0.0
  %775 = vmatpush1.msra.mxu0 0.0
  %776 = vmatprep.subr.mxu0 0.0
  %777 = vmatpush1.msra.mxu0 0.0
  %778 = vmatprep.subr.mxu0 0.0
  %779 = vmatpush1.msra.mxu0 0.0
  %780 = vmatprep.subr.mxu0 0.0
  %781 = vmatpush1.msra.mxu0 0.0
  %782 = vmatprep.subr.mxu0 0.0
  %783 = vmatpush1.msra.mxu0 0.0
  %784 = vmatprep.subr.mxu0 0.0
  %785 = vmatpush1.msra.mxu0 0.0
  %786 = vmatprep.subr.mxu0 0.0
  %787 = vmatpush1.msra.mxu0 0.0
  %788 = vmatprep.subr.mxu0 0.0
  %789 = vmatpush1.msra.mxu0 0.0
  %790 = vmatprep.subr.mxu0 0.0
  %791 = vmatpush1.msra.mxu0 0.0
  %792 = vmatprep.subr.mxu0 0.0
  %793 = vmatpush1.msra.mxu0 0.0
  %794 = vmatprep.subr.mxu0 0.0
  %795 = vmatpush1.msra.mxu0 0.0
  %796 = vmatprep.subr.mxu0 0.0
  %797 = vmatpush1.msra.mxu0 0.0
  %798 = vmatprep.mubr.f32.mxu0 0.0
  %799 = vmatmul.mubr.f32.gmra.mrb[0].mxu0 %v732
  %v800 = vpop.f32.mrb[0].mxu0
  %v801 = vadd.f32 %v730, %v800
  %v802 = vpop.f32.mrb[0].mxu0
  %803 = vdwg.mxu0
  %v804 = vld [vmem:[#allocation3] sm:$0xff]
  %v805 = vmul.f32 %v801, 0.5
  %v806 = vtanh.pop %v805
  %v807 = vadd.f32 %v806, 1.0
  %v808 = vmul.f32 %v807, 0.5
  %v809 = vtanh.pop %v801
  %811 = vrot.lane.b32.xlu0 %v804, 32
  %v812 = vpop.permute.xlu0 %811
  %v814 = vmul.f32 %v808, %v812
  %816 = vrot.lane.b32.xlu0 %v809, 64
  %v817 = vpop.permute.xlu0 %816
  %v819 = vmul.f32 %v808, %v817
  %821 = vrot.lane.b32.xlu0 %v819, 32
  %v822 = vpop.permute.xlu0 %821
  %v824 = vadd.f32 %v814, %v822
  %v825 = vtanh.pop %v824
  %827 = vrot.lane.b32.xlu0 %v825, 64
  %v828 = vpop.permute.xlu0 %827
  %v830 = vmul.f32 %v808, %v828
  %832 = vrot.lane.b32.xlu0 %v830, 32
  %v833 = vpop.permute.xlu0 %832
  %835 = vst.msk [vmem:[#allocation2] sm:$0xff] %vm17, %v833
  %837 = vrot.lane.b32.xlu0 %v824, 96
  %v838 = vpop.permute.xlu0 %837
  %840 = vst.msk [vmem:[#allocation3] sm:$0xff] %vm17, %v838
  %s841 = scalar_lea.vmem %s4, 24
  %842 = vst.msk [vmem:[%s841] sm:$0xff] %vm17, %v833
  %v843 = vld [vmem:[#allocation4] sm:$0xff]
  %s844 = scalar_lea.vmem %s1, 32
  %v845 = vld [vmem:[%s844] sm:$0xff]
  %v847 = vsel %vm17, %v843, 0
  %849 = vmatprep.subr.mxu0 0.0
  %850 = vmatpush1.msra.mxu0 %v26
  %851 = vmatprep.subr.mxu0 0.0
  %852 = vmatpush1.msra.mxu0 %v27
  %853 = vmatprep.subr.mxu0 0.0
  %854 = vmatpush1.msra.mxu0 %v28
  %855 = vmatprep.subr.mxu0 0.0
  %856 = vmatpush1.msra.mxu0 %v29
  %857 = vmatprep.subr.mxu0 0.0
  %858 = vmatpush1.msra.mxu0 0.0
  %859 = vmatprep.subr.mxu0 0.0
  %860 = vmatpush1.msra.mxu0 0.0
  %861 = vmatprep.subr.mxu0 0.0
  %862 = vmatpush1.msra.mxu0 0.0
  %863 = vmatprep.subr.mxu0 0.0
  %864 = vmatpush1.msra.mxu0 0.0
  %865 = vmatprep.subr.mxu0 0.0
  %866 = vmatpush1.msra.mxu0 0.0
  %867 = vmatprep.subr.mxu0 0.0
  %868 = vmatpush1.msra.mxu0 0.0
  %869 = vmatprep.subr.mxu0 0.0
  %870 = vmatpush1.msra.mxu0 0.0
  %871 = vmatprep.subr.mxu0 0.0
  %872 = vmatpush1.msra.mxu0 0.0
  %873 = vmatprep.subr.mxu0 0.0
  %874 = vmatpush1.msra.mxu0 0.0
  %875 = vmatprep.subr.mxu0 0.0
  %876 = vmatpush1.msra.mxu0 0.0
  %877 = vmatprep.subr.mxu0 0.0
  %878 = vmatpush1.msra.mxu0 0.0
  %879 = vmatprep.subr.mxu0 0.0
  %880 = vmatpush1.msra.mxu0 0.0
  %881 = vmatprep.subr.mxu0 0.0
  %882 = vmatpush1.msra.mxu0 0.0
  %883 = vmatprep.subr.mxu0 0.0
  %884 = vmatpush1.msra.mxu0 0.0
  %885 = vmatprep.subr.mxu0 0.0
  %886 = vmatpush1.msra.mxu0 0.0
  %887 = vmatprep.subr.mxu0 0.0
  %888 = vmatpush1.msra.mxu0 0.0
  %889 = vmatprep.subr.mxu0 0.0
  %890 = vmatpush1.msra.mxu0 0.0
  %891 = vmatprep.subr.mxu0 0.0
  %892 = vmatpush1.msra.mxu0 0.0
  %893 = vmatprep.subr.mxu0 0.0
  %894 = vmatpush1.msra.mxu0 0.0
  %895 = vmatprep.subr.mxu0 0.0
  %896 = vmatpush1.msra.mxu0 0.0
  %897 = vmatprep.subr.mxu0 0.0
  %898 = vmatpush1.msra.mxu0 0.0
  %899 = vmatprep.subr.mxu0 0.0
  %900 = vmatpush1.msra.mxu0 0.0
  %901 = vmatprep.subr.mxu0 0.0
  %902 = vmatpush1.msra.mxu0 0.0
  %903 = vmatprep.subr.mxu0 0.0
  %904 = vmatpush1.msra.mxu0 0.0
  %905 = vmatprep.subr.mxu0 0.0
  %906 = vmatpush1.msra.mxu0 0.0
  %907 = vmatprep.subr.mxu0 0.0
  %908 = vmatpush1.msra.mxu0 0.0
  %909 = vmatprep.subr.mxu0 0.0
  %910 = vmatpush1.msra.mxu0 0.0
  %911 = vmatprep.subr.mxu0 0.0
  %912 = vmatpush1.msra.mxu0 0.0
  %913 = vmatprep.mubr.f32.mxu0 0.0
  %914 = vmatmul.mubr.f32.gmra.mrb[0].mxu0 %v847
  %v915 = vpop.f32.mrb[0].mxu0
  %v916 = vadd.f32 %v845, %v915
  %v917 = vpop.f32.mrb[0].mxu0
  %918 = vdwg.mxu0
  %v919 = vld [vmem:[#allocation5] sm:$0xff]
  %v920 = vmul.f32 %v916, 0.5
  %v921 = vtanh.pop %v920
  %v922 = vadd.f32 %v921, 1.0
  %v923 = vmul.f32 %v922, 0.5
  %v924 = vtanh.pop %v916
  %926 = vrot.lane.b32.xlu0 %v919, 32
  %v927 = vpop.permute.xlu0 %926
  %v929 = vmul.f32 %v923, %v927
  %931 = vrot.lane.b32.xlu0 %v924, 64
  %v932 = vpop.permute.xlu0 %931
  %v934 = vmul.f32 %v923, %v932
  %936 = vrot.lane.b32.xlu0 %v934, 32
  %v937 = vpop.permute.xlu0 %936
  %v939 = vadd.f32 %v929, %v937
  %v940 = vtanh.pop %v939
  %942 = vrot.lane.b32.xlu0 %v940, 64
  %v943 = vpop.permute.xlu0 %942
  %v945 = vmul.f32 %v923, %v943
  %947 = vrot.lane.b32.xlu0 %v945, 32
  %v948 = vpop.permute.xlu0 %947
  %950 = vst.msk [vmem:[#allocation4] sm:$0xff] %vm17, %v948
  %952 = vrot.lane.b32.xlu0 %v939, 96
  %v953 = vpop.permute.xlu0 %952
  %955 = vst.msk [vmem:[#allocation5] sm:$0xff] %vm17, %v953
  %956 = vrot.lane.b32.xlu0 %v945, 64
  %v957 = vpop.permute.xlu0 %956
  %s959 = scalar_lea.vmem %s4, 32
  %960 = vst.msk [vmem:[%s959] sm:$0xff] %vm260, %v957
  %v961 = vld [vmem:[#allocation2] sm:$0xff]
  %s962 = scalar_lea.vmem %s0, 32
  %v963 = vld [vmem:[%s962] sm:$0xff]
  %v965 = vsel %vm17, %v961, 0
  %967 = vmatprep.subr.mxu0 0.0
  %968 = vmatpush1.msra.mxu0 %v22
  %969 = vmatprep.subr.mxu0 0.0
  %970 = vmatpush1.msra.mxu0 %v23
  %971 = vmatprep.subr.mxu0 0.0
  %972 = vmatpush1.msra.mxu0 %v24
  %973 = vmatprep.subr.mxu0 0.0
  %974 = vmatpush1.msra.mxu0 %v25
  %975 = vmatprep.subr.mxu0 0.0
  %976 = vmatpush1.msra.mxu0 0.0
  %977 = vmatprep.subr.mxu0 0.0
  %978 = vmatpush1.msra.mxu0 0.0
  %979 = vmatprep.subr.mxu0 0.0
  %980 = vmatpush1.msra.mxu0 0.0
  %981 = vmatprep.subr.mxu0 0.0
  %982 = vmatpush1.msra.mxu0 0.0
  %983 = vmatprep.subr.mxu0 0.0
  %984 = vmatpush1.msra.mxu0 0.0
  %985 = vmatprep.subr.mxu0 0.0
  %986 = vmatpush1.msra.mxu0 0.0
  %987 = vmatprep.subr.mxu0 0.0
  %988 = vmatpush1.msra.mxu0 0.0
  %989 = vmatprep.subr.mxu0 0.0
  %990 = vmatpush1.msra.mxu0 0.0
  %991 = vmatprep.subr.mxu0 0.0
  %992 = vmatpush1.msra.mxu0 0.0
  %993 = vmatprep.subr.mxu0 0.0
  %994 = vmatpush1.msra.mxu0 0.0
  %995 = vmatprep.subr.mxu0 0.0
  %996 = vmatpush1.msra.mxu0 0.0
  %997 = vmatprep.subr.mxu0 0.0
  %998 = vmatpush1.msra.mxu0 0.0
  %999 = vmatprep.subr.mxu0 0.0
  %1000 = vmatpush1.msra.mxu0 0.0
  %1001 = vmatprep.subr.mxu0 0.0
  %1002 = vmatpush1.msra.mxu0 0.0
  %1003 = vmatprep.subr.mxu0 0.0
  %1004 = vmatpush1.msra.mxu0 0.0
  %1005 = vmatprep.subr.mxu0 0.0
  %1006 = vmatpush1.msra.mxu0 0.0
  %1007 = vmatprep.subr.mxu0 0.0
  %1008 = vmatpush1.msra.mxu0 0.0
  %1009 = vmatprep.subr.mxu0 0.0
  %1010 = vmatpush1.msra.mxu0 0.0
  %1011 = vmatprep.subr.mxu0 0.0
  %1012 = vmatpush1.msra.mxu0 0.0
  %1013 = vmatprep.subr.mxu0 0.0
  %1014 = vmatpush1.msra.mxu0 0.0
  %1015 = vmatprep.subr.mxu0 0.0
  %1016 = vmatpush1.msra.mxu0 0.0
  %1017 = vmatprep.subr.mxu0 0.0
  %1018 = vmatpush1.msra.mxu0 0.0
  %1019 = vmatprep.subr.mxu0 0.0
  %1020 = vmatpush1.msra.mxu0 0.0
  %1021 = vmatprep.subr.mxu0 0.0
  %1022 = vmatpush1.msra.mxu0 0.0
  %1023 = vmatprep.subr.mxu0 0.0
  %1024 = vmatpush1.msra.mxu0 0.0
  %1025 = vmatprep.subr.mxu0 0.0
  %1026 = vmatpush1.msra.mxu0 0.0
  %1027 = vmatprep.subr.mxu0 0.0
  %1028 = vmatpush1.msra.mxu0 0.0
  %1029 = vmatprep.subr.mxu0 0.0
  %1030 = vmatpush1.msra.mxu0 0.0
  %1031 = vmatprep.mubr.f32.mxu0 0.0
  %1032 = vmatmul.mubr.f32.gmra.mrb[0].mxu0 %v965
  %v1033 = vpop.f32.mrb[0].mxu0
  %v1034 = vadd.f32 %v963, %v1033
  %v1035 = vpop.f32.mrb[0].mxu0
  %1036 = vdwg.mxu0
  %v1037 = vld [vmem:[#allocation3] sm:$0xff]
  %v1038 = vmul.f32 %v1034, 0.5
  %v1039 = vtanh.pop %v1038
  %v1040 = vadd.f32 %v1039, 1.0
  %v1041 = vmul.f32 %v1040, 0.5
  %v1042 = vtanh.pop %v1034
  %1044 = vrot.lane.b32.xlu0 %v1037, 32
  %v1045 = vpop.permute.xlu0 %1044
  %v1047 = vmul.f32 %v1041, %v1045
  %1049 = vrot.lane.b32.xlu0 %v1042, 64
  %v1050 = vpop.permute.xlu0 %1049
  %v1052 = vmul.f32 %v1041, %v1050
  %1054 = vrot.lane.b32.xlu0 %v1052, 32
  %v1055 = vpop.permute.xlu0 %1054
  %v1057 = vadd.f32 %v1047, %v1055
  %v1058 = vtanh.pop %v1057
  %1060 = vrot.lane.b32.xlu0 %v1058, 64
  %v1061 = vpop.permute.xlu0 %1060
  %v1063 = vmul.f32 %v1041, %v1061
  %1065 = vrot.lane.b32.xlu0 %v1063, 32
  %v1066 = vpop.permute.xlu0 %1065
  %1068 = vst.msk [vmem:[#allocation2] sm:$0xff] %vm17, %v1066
  %1070 = vrot.lane.b32.xlu0 %v1057, 96
  %v1071 = vpop.permute.xlu0 %1070
  %1073 = vst.msk [vmem:[#allocation3] sm:$0xff] %vm17, %v1071
  %1074 = vst.msk [vmem:[%s959] sm:$0xff] %vm17, %v1066
  %v1075 = vld [vmem:[#allocation4] sm:$0xff]
  %s1076 = scalar_lea.vmem %s1, 24
  %v1077 = vld [vmem:[%s1076] sm:$0xff]
  %v1079 = vsel %vm17, %v1075, 0
  %1081 = vmatprep.subr.mxu0 0.0
  %1082 = vmatpush1.msra.mxu0 %v26
  %1083 = vmatprep.subr.mxu0 0.0
  %1084 = vmatpush1.msra.mxu0 %v27
  %1085 = vmatprep.subr.mxu0 0.0
  %1086 = vmatpush1.msra.mxu0 %v28
  %1087 = vmatprep.subr.mxu0 0.0
  %1088 = vmatpush1.msra.mxu0 %v29
  %1089 = vmatprep.subr.mxu0 0.0
  %1090 = vmatpush1.msra.mxu0 0.0
  %1091 = vmatprep.subr.mxu0 0.0
  %1092 = vmatpush1.msra.mxu0 0.0
  %1093 = vmatprep.subr.mxu0 0.0
  %1094 = vmatpush1.msra.mxu0 0.0
  %1095 = vmatprep.subr.mxu0 0.0
  %1096 = vmatpush1.msra.mxu0 0.0
  %1097 = vmatprep.subr.mxu0 0.0
  %1098 = vmatpush1.msra.mxu0 0.0
  %1099 = vmatprep.subr.mxu0 0.0
  %1100 = vmatpush1.msra.mxu0 0.0
  %1101 = vmatprep.subr.mxu0 0.0
  %1102 = vmatpush1.msra.mxu0 0.0
  %1103 = vmatprep.subr.mxu0 0.0
  %1104 = vmatpush1.msra.mxu0 0.0
  %1105 = vmatprep.subr.mxu0 0.0
  %1106 = vmatpush1.msra.mxu0 0.0
  %1107 = vmatprep.subr.mxu0 0.0
  %1108 = vmatpush1.msra.mxu0 0.0
  %1109 = vmatprep.subr.mxu0 0.0
  %1110 = vmatpush1.msra.mxu0 0.0
  %1111 = vmatprep.subr.mxu0 0.0
  %1112 = vmatpush1.msra.mxu0 0.0
  %1113 = vmatprep.subr.mxu0 0.0
  %1114 = vmatpush1.msra.mxu0 0.0
  %1115 = vmatprep.subr.mxu0 0.0
  %1116 = vmatpush1.msra.mxu0 0.0
  %1117 = vmatprep.subr.mxu0 0.0
  %1118 = vmatpush1.msra.mxu0 0.0
  %1119 = vmatprep.subr.mxu0 0.0
  %1120 = vmatpush1.msra.mxu0 0.0
  %1121 = vmatprep.subr.mxu0 0.0
  %1122 = vmatpush1.msra.mxu0 0.0
  %1123 = vmatprep.subr.mxu0 0.0
  %1124 = vmatpush1.msra.mxu0 0.0
  %1125 = vmatprep.subr.mxu0 0.0
  %1126 = vmatpush1.msra.mxu0 0.0
  %1127 = vmatprep.subr.mxu0 0.0
  %1128 = vmatpush1.msra.mxu0 0.0
  %1129 = vmatprep.subr.mxu0 0.0
  %1130 = vmatpush1.msra.mxu0 0.0
  %1131 = vmatprep.subr.mxu0 0.0
  %1132 = vmatpush1.msra.mxu0 0.0
  %1133 = vmatprep.subr.mxu0 0.0
  %1134 = vmatpush1.msra.mxu0 0.0
  %1135 = vmatprep.subr.mxu0 0.0
  %1136 = vmatpush1.msra.mxu0 0.0
  %1137 = vmatprep.subr.mxu0 0.0
  %1138 = vmatpush1.msra.mxu0 0.0
  %1139 = vmatprep.subr.mxu0 0.0
  %1140 = vmatpush1.msra.mxu0 0.0
  %1141 = vmatprep.subr.mxu0 0.0
  %1142 = vmatpush1.msra.mxu0 0.0
  %1143 = vmatprep.subr.mxu0 0.0
  %1144 = vmatpush1.msra.mxu0 0.0
  %1145 = vmatprep.mubr.f32.mxu0 0.0
  %1146 = vmatmul.mubr.f32.gmra.mrb[0].mxu0 %v1079
  %v1147 = vpop.f32.mrb[0].mxu0
  %v1148 = vadd.f32 %v1077, %v1147
  %v1149 = vpop.f32.mrb[0].mxu0
  %1150 = vdwg.mxu0
  %v1151 = vld [vmem:[#allocation5] sm:$0xff]
  %v1152 = vmul.f32 %v1148, 0.5
  %v1153 = vtanh.pop %v1152
  %v1154 = vadd.f32 %v1153, 1.0
  %v1155 = vmul.f32 %v1154, 0.5
  %v1156 = vtanh.pop %v1148
  %1158 = vrot.lane.b32.xlu0 %v1151, 32
  %v1159 = vpop.permute.xlu0 %1158
  %v1161 = vmul.f32 %v1155, %v1159
  %1163 = vrot.lane.b32.xlu0 %v1156, 64
  %v1164 = vpop.permute.xlu0 %1163
  %v1166 = vmul.f32 %v1155, %v1164
  %1168 = vrot.lane.b32.xlu0 %v1166, 32
  %v1169 = vpop.permute.xlu0 %1168
  %v1171 = vadd.f32 %v1161, %v1169
  %v1172 = vtanh.pop %v1171
  %1174 = vrot.lane.b32.xlu0 %v1172, 64
  %v1175 = vpop.permute.xlu0 %1174
  %v1177 = vmul.f32 %v1155, %v1175
  %1179 = vrot.lane.b32.xlu0 %v1177, 32
  %v1180 = vpop.permute.xlu0 %1179
  %1182 = vst.msk [vmem:[#allocation4] sm:$0xff] %vm17, %v1180
  %1184 = vrot.lane.b32.xlu0 %v1171, 96
  %v1185 = vpop.permute.xlu0 %1184
  %1187 = vst.msk [vmem:[#allocation5] sm:$0xff] %vm17, %v1185
  %1188 = vrot.lane.b32.xlu0 %v1177, 64
  %v1189 = vpop.permute.xlu0 %1188
  %1191 = vst.msk [vmem:[%s841] sm:$0xff] %vm260, %v1189
  %v1192 = vld [vmem:[#allocation2] sm:$0xff]
  %s1193 = scalar_lea.vmem %s0, 40
  %v1194 = vld [vmem:[%s1193] sm:$0xff]
  %v1196 = vsel %vm17, %v1192, 0
  %1198 = vmatprep.subr.mxu0 0.0
  %1199 = vmatpush1.msra.mxu0 %v22
  %1200 = vmatprep.subr.mxu0 0.0
  %1201 = vmatpush1.msra.mxu0 %v23
  %1202 = vmatprep.subr.mxu0 0.0
  %1203 = vmatpush1.msra.mxu0 %v24
  %1204 = vmatprep.subr.mxu0 0.0
  %1205 = vmatpush1.msra.mxu0 %v25
  %1206 = vmatprep.subr.mxu0 0.0
  %1207 = vmatpush1.msra.mxu0 0.0
  %1208 = vmatprep.subr.mxu0 0.0
  %1209 = vmatpush1.msra.mxu0 0.0
  %1210 = vmatprep.subr.mxu0 0.0
  %1211 = vmatpush1.msra.mxu0 0.0
  %1212 = vmatprep.subr.mxu0 0.0
  %1213 = vmatpush1.msra.mxu0 0.0
  %1214 = vmatprep.subr.mxu0 0.0
  %1215 = vmatpush1.msra.mxu0 0.0
  %1216 = vmatprep.subr.mxu0 0.0
  %1217 = vmatpush1.msra.mxu0 0.0
  %1218 = vmatprep.subr.mxu0 0.0
  %1219 = vmatpush1.msra.mxu0 0.0
  %1220 = vmatprep.subr.mxu0 0.0
  %1221 = vmatpush1.msra.mxu0 0.0
  %1222 = vmatprep.subr.mxu0 0.0
  %1223 = vmatpush1.msra.mxu0 0.0
  %1224 = vmatprep.subr.mxu0 0.0
  %1225 = vmatpush1.msra.mxu0 0.0
  %1226 = vmatprep.subr.mxu0 0.0
  %1227 = vmatpush1.msra.mxu0 0.0
  %1228 = vmatprep.subr.mxu0 0.0
  %1229 = vmatpush1.msra.mxu0 0.0
  %1230 = vmatprep.subr.mxu0 0.0
  %1231 = vmatpush1.msra.mxu0 0.0
  %1232 = vmatprep.subr.mxu0 0.0
  %1233 = vmatpush1.msra.mxu0 0.0
  %1234 = vmatprep.subr.mxu0 0.0
  %1235 = vmatpush1.msra.mxu0 0.0
  %1236 = vmatprep.subr.mxu0 0.0
  %1237 = vmatpush1.msra.mxu0 0.0
  %1238 = vmatprep.subr.mxu0 0.0
  %1239 = vmatpush1.msra.mxu0 0.0
  %1240 = vmatprep.subr.mxu0 0.0
  %1241 = vmatpush1.msra.mxu0 0.0
  %1242 = vmatprep.subr.mxu0 0.0
  %1243 = vmatpush1.msra.mxu0 0.0
  %1244 = vmatprep.subr.mxu0 0.0
  %1245 = vmatpush1.msra.mxu0 0.0
  %1246 = vmatprep.subr.mxu0 0.0
  %1247 = vmatpush1.msra.mxu0 0.0
  %1248 = vmatprep.subr.mxu0 0.0
  %1249 = vmatpush1.msra.mxu0 0.0
  %1250 = vmatprep.subr.mxu0 0.0
  %1251 = vmatpush1.msra.mxu0 0.0
  %1252 = vmatprep.subr.mxu0 0.0
  %1253 = vmatpush1.msra.mxu0 0.0
  %1254 = vmatprep.subr.mxu0 0.0
  %1255 = vmatpush1.msra.mxu0 0.0
  %1256 = vmatprep.subr.mxu0 0.0
  %1257 = vmatpush1.msra.mxu0 0.0
  %1258 = vmatprep.subr.mxu0 0.0
  %1259 = vmatpush1.msra.mxu0 0.0
  %1260 = vmatprep.subr.mxu0 0.0
  %1261 = vmatpush1.msra.mxu0 0.0
  %1262 = vmatprep.mubr.f32.mxu0 0.0
  %1263 = vmatmul.mubr.f32.gmra.mrb[0].mxu0 %v1196
  %v1264 = vpop.f32.mrb[0].mxu0
  %v1265 = vadd.f32 %v1194, %v1264
  %v1266 = vpop.f32.mrb[0].mxu0
  %1267 = vdwg.mxu0
  %v1268 = vld [vmem:[#allocation3] sm:$0xff]
  %v1269 = vmul.f32 %v1265, 0.5
  %v1270 = vtanh.pop %v1269
  %v1271 = vadd.f32 %v1270, 1.0
  %v1272 = vmul.f32 %v1271, 0.5
  %v1273 = vtanh.pop %v1265
  %1275 = vrot.lane.b32.xlu0 %v1268, 32
  %v1276 = vpop.permute.xlu0 %1275
  %v1278 = vmul.f32 %v1272, %v1276
  %1280 = vrot.lane.b32.xlu0 %v1273, 64
  %v1281 = vpop.permute.xlu0 %1280
  %v1283 = vmul.f32 %v1272, %v1281
  %1285 = vrot.lane.b32.xlu0 %v1283, 32
  %v1286 = vpop.permute.xlu0 %1285
  %v1288 = vadd.f32 %v1278, %v1286
  %v1289 = vtanh.pop %v1288
  %1291 = vrot.lane.b32.xlu0 %v1289, 64
  %v1292 = vpop.permute.xlu0 %1291
  %v1294 = vmul.f32 %v1272, %v1292
  %1296 = vrot.lane.b32.xlu0 %v1294, 32
  %v1297 = vpop.permute.xlu0 %1296
  %1299 = vst.msk [vmem:[#allocation2] sm:$0xff] %vm17, %v1297
  %1301 = vrot.lane.b32.xlu0 %v1288, 96
  %v1302 = vpop.permute.xlu0 %1301
  %1304 = vst.msk [vmem:[#allocation3] sm:$0xff] %vm17, %v1302
  %1305 = vst.msk [vmem:[%s726] sm:$0xff] %vm17, %v1297
  %v1306 = vld [vmem:[#allocation4] sm:$0xff]
  %s1307 = scalar_lea.vmem %s1, 16
  %v1308 = vld [vmem:[%s1307] sm:$0xff]
  %v1310 = vsel %vm17, %v1306, 0
  %1312 = vmatprep.subr.mxu0 0.0
  %1313 = vmatpush1.msra.mxu0 %v26
  %1314 = vmatprep.subr.mxu0 0.0
  %1315 = vmatpush1.msra.mxu0 %v27
  %1316 = vmatprep.subr.mxu0 0.0
  %1317 = vmatpush1.msra.mxu0 %v28
  %1318 = vmatprep.subr.mxu0 0.0
  %1319 = vmatpush1.msra.mxu0 %v29
  %1320 = vmatprep.subr.mxu0 0.0
  %1321 = vmatpush1.msra.mxu0 0.0
  %1322 = vmatprep.subr.mxu0 0.0
  %1323 = vmatpush1.msra.mxu0 0.0
  %1324 = vmatprep.subr.mxu0 0.0
  %1325 = vmatpush1.msra.mxu0 0.0
  %1326 = vmatprep.subr.mxu0 0.0
  %1327 = vmatpush1.msra.mxu0 0.0
  %1328 = vmatprep.subr.mxu0 0.0
  %1329 = vmatpush1.msra.mxu0 0.0
  %1330 = vmatprep.subr.mxu0 0.0
  %1331 = vmatpush1.msra.mxu0 0.0
  %1332 = vmatprep.subr.mxu0 0.0
  %1333 = vmatpush1.msra.mxu0 0.0
  %1334 = vmatprep.subr.mxu0 0.0
  %1335 = vmatpush1.msra.mxu0 0.0
  %1336 = vmatprep.subr.mxu0 0.0
  %1337 = vmatpush1.msra.mxu0 0.0
  %1338 = vmatprep.subr.mxu0 0.0
  %1339 = vmatpush1.msra.mxu0 0.0
  %1340 = vmatprep.subr.mxu0 0.0
  %1341 = vmatpush1.msra.mxu0 0.0
  %1342 = vmatprep.subr.mxu0 0.0
  %1343 = vmatpush1.msra.mxu0 0.0
  %1344 = vmatprep.subr.mxu0 0.0
  %1345 = vmatpush1.msra.mxu0 0.0
  %1346 = vmatprep.subr.mxu0 0.0
  %1347 = vmatpush1.msra.mxu0 0.0
  %1348 = vmatprep.subr.mxu0 0.0
  %1349 = vmatpush1.msra.mxu0 0.0
  %1350 = vmatprep.subr.mxu0 0.0
  %1351 = vmatpush1.msra.mxu0 0.0
  %1352 = vmatprep.subr.mxu0 0.0
  %1353 = vmatpush1.msra.mxu0 0.0
  %1354 = vmatprep.subr.mxu0 0.0
  %1355 = vmatpush1.msra.mxu0 0.0
  %1356 = vmatprep.subr.mxu0 0.0
  %1357 = vmatpush1.msra.mxu0 0.0
  %1358 = vmatprep.subr.mxu0 0.0
  %1359 = vmatpush1.msra.mxu0 0.0
  %1360 = vmatprep.subr.mxu0 0.0
  %1361 = vmatpush1.msra.mxu0 0.0
  %1362 = vmatprep.subr.mxu0 0.0
  %1363 = vmatpush1.msra.mxu0 0.0
  %1364 = vmatprep.subr.mxu0 0.0
  %1365 = vmatpush1.msra.mxu0 0.0
  %1366 = vmatprep.subr.mxu0 0.0
  %1367 = vmatpush1.msra.mxu0 0.0
  %1368 = vmatprep.subr.mxu0 0.0
  %1369 = vmatpush1.msra.mxu0 0.0
  %1370 = vmatprep.subr.mxu0 0.0
  %1371 = vmatpush1.msra.mxu0 0.0
  %1372 = vmatprep.subr.mxu0 0.0
  %1373 = vmatpush1.msra.mxu0 0.0
  %1374 = vmatprep.subr.mxu0 0.0
  %1375 = vmatpush1.msra.mxu0 0.0
  %1376 = vmatprep.mubr.f32.mxu0 0.0
  %1377 = vmatmul.mubr.f32.gmra.mrb[0].mxu0 %v1310
  %v1378 = vpop.f32.mrb[0].mxu0
  %v1379 = vadd.f32 %v1308, %v1378
  %v1380 = vpop.f32.mrb[0].mxu0
  %1381 = vdwg.mxu0
  %v1382 = vld [vmem:[#allocation5] sm:$0xff]
  %v1383 = vmul.f32 %v1379, 0.5
  %v1384 = vtanh.pop %v1383
  %v1385 = vadd.f32 %v1384, 1.0
  %v1386 = vmul.f32 %v1385, 0.5
  %v1387 = vtanh.pop %v1379
  %1389 = vrot.lane.b32.xlu0 %v1382, 32
  %v1390 = vpop.permute.xlu0 %1389
  %v1392 = vmul.f32 %v1386, %v1390
  %1394 = vrot.lane.b32.xlu0 %v1387, 64
  %v1395 = vpop.permute.xlu0 %1394
  %v1397 = vmul.f32 %v1386, %v1395
  %1399 = vrot.lane.b32.xlu0 %v1397, 32
  %v1400 = vpop.permute.xlu0 %1399
  %v1402 = vadd.f32 %v1392, %v1400
  %v1403 = vtanh.pop %v1402
  %1405 = vrot.lane.b32.xlu0 %v1403, 64
  %v1406 = vpop.permute.xlu0 %1405
  %v1408 = vmul.f32 %v1386, %v1406
  %1410 = vrot.lane.b32.xlu0 %v1408, 32
  %v1411 = vpop.permute.xlu0 %1410
  %1413 = vst.msk [vmem:[#allocation4] sm:$0xff] %vm17, %v1411
  %1415 = vrot.lane.b32.xlu0 %v1402, 96
  %v1416 = vpop.permute.xlu0 %1415
  %1418 = vst.msk [vmem:[#allocation5] sm:$0xff] %vm17, %v1416
  %1419 = vrot.lane.b32.xlu0 %v1408, 64
  %v1420 = vpop.permute.xlu0 %1419
  %1422 = vst.msk [vmem:[%s608] sm:$0xff] %vm260, %v1420
  %v1423 = vld [vmem:[#allocation2] sm:$0xff]
  %s1424 = scalar_lea.vmem %s0, 48
  %v1425 = vld [vmem:[%s1424] sm:$0xff]
  %v1427 = vsel %vm17, %v1423, 0
  %1429 = vmatprep.subr.mxu0 0.0
  %1430 = vmatpush1.msra.mxu0 %v22
  %1431 = vmatprep.subr.mxu0 0.0
  %1432 = vmatpush1.msra.mxu0 %v23
  %1433 = vmatprep.subr.mxu0 0.0
  %1434 = vmatpush1.msra.mxu0 %v24
  %1435 = vmatprep.subr.mxu0 0.0
  %1436 = vmatpush1.msra.mxu0 %v25
  %1437 = vmatprep.subr.mxu0 0.0
  %1438 = vmatpush1.msra.mxu0 0.0
  %1439 = vmatprep.subr.mxu0 0.0
  %1440 = vmatpush1.msra.mxu0 0.0
  %1441 = vmatprep.subr.mxu0 0.0
  %1442 = vmatpush1.msra.mxu0 0.0
  %1443 = vmatprep.subr.mxu0 0.0
  %1444 = vmatpush1.msra.mxu0 0.0
  %1445 = vmatprep.subr.mxu0 0.0
  %1446 = vmatpush1.msra.mxu0 0.0
  %1447 = vmatprep.subr.mxu0 0.0
  %1448 = vmatpush1.msra.mxu0 0.0
  %1449 = vmatprep.subr.mxu0 0.0
  %1450 = vmatpush1.msra.mxu0 0.0
  %1451 = vmatprep.subr.mxu0 0.0
  %1452 = vmatpush1.msra.mxu0 0.0
  %1453 = vmatprep.subr.mxu0 0.0
  %1454 = vmatpush1.msra.mxu0 0.0
  %1455 = vmatprep.subr.mxu0 0.0
  %1456 = vmatpush1.msra.mxu0 0.0
  %1457 = vmatprep.subr.mxu0 0.0
  %1458 = vmatpush1.msra.mxu0 0.0
  %1459 = vmatprep.subr.mxu0 0.0
  %1460 = vmatpush1.msra.mxu0 0.0
  %1461 = vmatprep.subr.mxu0 0.0
  %1462 = vmatpush1.msra.mxu0 0.0
  %1463 = vmatprep.subr.mxu0 0.0
  %1464 = vmatpush1.msra.mxu0 0.0
  %1465 = vmatprep.subr.mxu0 0.0
  %1466 = vmatpush1.msra.mxu0 0.0
  %1467 = vmatprep.subr.mxu0 0.0
  %1468 = vmatpush1.msra.mxu0 0.0
  %1469 = vmatprep.subr.mxu0 0.0
  %1470 = vmatpush1.msra.mxu0 0.0
  %1471 = vmatprep.subr.mxu0 0.0
  %1472 = vmatpush1.msra.mxu0 0.0
  %1473 = vmatprep.subr.mxu0 0.0
  %1474 = vmatpush1.msra.mxu0 0.0
  %1475 = vmatprep.subr.mxu0 0.0
  %1476 = vmatpush1.msra.mxu0 0.0
  %1477 = vmatprep.subr.mxu0 0.0
  %1478 = vmatpush1.msra.mxu0 0.0
  %1479 = vmatprep.subr.mxu0 0.0
  %1480 = vmatpush1.msra.mxu0 0.0
  %1481 = vmatprep.subr.mxu0 0.0
  %1482 = vmatpush1.msra.mxu0 0.0
  %1483 = vmatprep.subr.mxu0 0.0
  %1484 = vmatpush1.msra.mxu0 0.0
  %1485 = vmatprep.subr.mxu0 0.0
  %1486 = vmatpush1.msra.mxu0 0.0
  %1487 = vmatprep.subr.mxu0 0.0
  %1488 = vmatpush1.msra.mxu0 0.0
  %1489 = vmatprep.subr.mxu0 0.0
  %1490 = vmatpush1.msra.mxu0 0.0
  %1491 = vmatprep.subr.mxu0 0.0
  %1492 = vmatpush1.msra.mxu0 0.0
  %1493 = vmatprep.mubr.f32.mxu0 0.0
  %1494 = vmatmul.mubr.f32.gmra.mrb[0].mxu0 %v1427
  %v1495 = vpop.f32.mrb[0].mxu0
  %v1496 = vadd.f32 %v1425, %v1495
  %v1497 = vpop.f32.mrb[0].mxu0
  %1498 = vdwg.mxu0
  %v1499 = vld [vmem:[#allocation3] sm:$0xff]
  %v1500 = vmul.f32 %v1496, 0.5
  %v1501 = vtanh.pop %v1500
  %v1502 = vadd.f32 %v1501, 1.0
  %v1503 = vmul.f32 %v1502, 0.5
  %v1504 = vtanh.pop %v1496
  %1506 = vrot.lane.b32.xlu0 %v1499, 32
  %v1507 = vpop.permute.xlu0 %1506
  %v1509 = vmul.f32 %v1503, %v1507
  %1511 = vrot.lane.b32.xlu0 %v1504, 64
  %v1512 = vpop.permute.xlu0 %1511
  %v1514 = vmul.f32 %v1503, %v1512
  %1516 = vrot.lane.b32.xlu0 %v1514, 32
  %v1517 = vpop.permute.xlu0 %1516
  %v1519 = vadd.f32 %v1509, %v1517
  %v1520 = vtanh.pop %v1519
  %1522 = vrot.lane.b32.xlu0 %v1520, 64
  %v1523 = vpop.permute.xlu0 %1522
  %v1525 = vmul.f32 %v1503, %v1523
  %1527 = vrot.lane.b32.xlu0 %v1525, 32
  %v1528 = vpop.permute.xlu0 %1527
  %1530 = vst.msk [vmem:[#allocation2] sm:$0xff] %vm17, %v1528
  %1532 = vrot.lane.b32.xlu0 %v1519, 96
  %v1533 = vpop.permute.xlu0 %1532
  %1535 = vst.msk [vmem:[#allocation3] sm:$0xff] %vm17, %v1533
  %1536 = vst.msk [vmem:[%s493] sm:$0xff] %vm17, %v1528
  %v1537 = vld [vmem:[#allocation4] sm:$0xff]
  %s1538 = scalar_lea.vmem %s1, 8
  %v1539 = vld [vmem:[%s1538] sm:$0xff]
  %v1541 = vsel %vm17, %v1537, 0
  %1543 = vmatprep.subr.mxu0 0.0
  %1544 = vmatpush1.msra.mxu0 %v26
  %1545 = vmatprep.subr.mxu0 0.0
  %1546 = vmatpush1.msra.mxu0 %v27
  %1547 = vmatprep.subr.mxu0 0.0
  %1548 = vmatpush1.msra.mxu0 %v28
  %1549 = vmatprep.subr.mxu0 0.0
  %1550 = vmatpush1.msra.mxu0 %v29
  %1551 = vmatprep.subr.mxu0 0.0
  %1552 = vmatpush1.msra.mxu0 0.0
  %1553 = vmatprep.subr.mxu0 0.0
  %1554 = vmatpush1.msra.mxu0 0.0
  %1555 = vmatprep.subr.mxu0 0.0
  %1556 = vmatpush1.msra.mxu0 0.0
  %1557 = vmatprep.subr.mxu0 0.0
  %1558 = vmatpush1.msra.mxu0 0.0
  %1559 = vmatprep.subr.mxu0 0.0
  %1560 = vmatpush1.msra.mxu0 0.0
  %1561 = vmatprep.subr.mxu0 0.0
  %1562 = vmatpush1.msra.mxu0 0.0
  %1563 = vmatprep.subr.mxu0 0.0
  %1564 = vmatpush1.msra.mxu0 0.0
  %1565 = vmatprep.subr.mxu0 0.0
  %1566 = vmatpush1.msra.mxu0 0.0
  %1567 = vmatprep.subr.mxu0 0.0
  %1568 = vmatpush1.msra.mxu0 0.0
  %1569 = vmatprep.subr.mxu0 0.0
  %1570 = vmatpush1.msra.mxu0 0.0
  %1571 = vmatprep.subr.mxu0 0.0
  %1572 = vmatpush1.msra.mxu0 0.0
  %1573 = vmatprep.subr.mxu0 0.0
  %1574 = vmatpush1.msra.mxu0 0.0
  %1575 = vmatprep.subr.mxu0 0.0
  %1576 = vmatpush1.msra.mxu0 0.0
  %1577 = vmatprep.subr.mxu0 0.0
  %1578 = vmatpush1.msra.mxu0 0.0
  %1579 = vmatprep.subr.mxu0 0.0
  %1580 = vmatpush1.msra.mxu0 0.0
  %1581 = vmatprep.subr.mxu0 0.0
  %1582 = vmatpush1.msra.mxu0 0.0
  %1583 = vmatprep.subr.mxu0 0.0
  %1584 = vmatpush1.msra.mxu0 0.0
  %1585 = vmatprep.subr.mxu0 0.0
  %1586 = vmatpush1.msra.mxu0 0.0
  %1587 = vmatprep.subr.mxu0 0.0
  %1588 = vmatpush1.msra.mxu0 0.0
  %1589 = vmatprep.subr.mxu0 0.0
  %1590 = vmatpush1.msra.mxu0 0.0
  %1591 = vmatprep.subr.mxu0 0.0
  %1592 = vmatpush1.msra.mxu0 0.0
  %1593 = vmatprep.subr.mxu0 0.0
  %1594 = vmatpush1.msra.mxu0 0.0
  %1595 = vmatprep.subr.mxu0 0.0
  %1596 = vmatpush1.msra.mxu0 0.0
  %1597 = vmatprep.subr.mxu0 0.0
  %1598 = vmatpush1.msra.mxu0 0.0
  %1599 = vmatprep.subr.mxu0 0.0
  %1600 = vmatpush1.msra.mxu0 0.0
  %1601 = vmatprep.subr.mxu0 0.0
  %1602 = vmatpush1.msra.mxu0 0.0
  %1603 = vmatprep.subr.mxu0 0.0
  %1604 = vmatpush1.msra.mxu0 0.0
  %1605 = vmatprep.subr.mxu0 0.0
  %1606 = vmatpush1.msra.mxu0 0.0
  %1607 = vmatprep.mubr.f32.mxu0 0.0
  %1608 = vmatmul.mubr.f32.gmra.mrb[0].mxu0 %v1541
  %v1609 = vpop.f32.mrb[0].mxu0
  %v1610 = vadd.f32 %v1539, %v1609
  %v1611 = vpop.f32.mrb[0].mxu0
  %1612 = vdwg.mxu0
  %v1613 = vld [vmem:[#allocation5] sm:$0xff]
  %v1614 = vmul.f32 %v1610, 0.5
  %v1615 = vtanh.pop %v1614
  %v1616 = vadd.f32 %v1615, 1.0
  %v1617 = vmul.f32 %v1616, 0.5
  %v1618 = vtanh.pop %v1610
  %1620 = vrot.lane.b32.xlu0 %v1613, 32
  %v1621 = vpop.permute.xlu0 %1620
  %v1623 = vmul.f32 %v1617, %v1621
  %1625 = vrot.lane.b32.xlu0 %v1618, 64
  %v1626 = vpop.permute.xlu0 %1625
  %v1628 = vmul.f32 %v1617, %v1626
  %1630 = vrot.lane.b32.xlu0 %v1628, 32
  %v1631 = vpop.permute.xlu0 %1630
  %v1633 = vadd.f32 %v1623, %v1631
  %v1634 = vtanh.pop %v1633
  %1636 = vrot.lane.b32.xlu0 %v1634, 64
  %v1637 = vpop.permute.xlu0 %1636
  %v1639 = vmul.f32 %v1617, %v1637
  %1641 = vrot.lane.b32.xlu0 %v1639, 32
  %v1642 = vpop.permute.xlu0 %1641
  %1644 = vst.msk [vmem:[#allocation4] sm:$0xff] %vm17, %v1642
  %1646 = vrot.lane.b32.xlu0 %v1633, 96
  %v1647 = vpop.permute.xlu0 %1646
  %1649 = vst.msk [vmem:[#allocation5] sm:$0xff] %vm17, %v1647
  %1650 = vrot.lane.b32.xlu0 %v1639, 64
  %v1651 = vpop.permute.xlu0 %1650
  %1653 = vst.msk [vmem:[%s375] sm:$0xff] %vm260, %v1651
  %v1654 = vld [vmem:[#allocation2] sm:$0xff]
  %s1655 = scalar_lea.vmem %s0, 56
  %v1656 = vld [vmem:[%s1655] sm:$0xff]
  %v1658 = vsel %vm17, %v1654, 0
  %1660 = vmatprep.subr.mxu0 0.0
  %1661 = vmatpush1.msra.mxu0 %v22
  %1662 = vmatprep.subr.mxu0 0.0
  %1663 = vmatpush1.msra.mxu0 %v23
  %1664 = vmatprep.subr.mxu0 0.0
  %1665 = vmatpush1.msra.mxu0 %v24
  %1666 = vmatprep.subr.mxu0 0.0
  %1667 = vmatpush1.msra.mxu0 %v25
  %1668 = vmatprep.subr.mxu0 0.0
  %1669 = vmatpush1.msra.mxu0 0.0
  %1670 = vmatprep.subr.mxu0 0.0
  %1671 = vmatpush1.msra.mxu0 0.0
  %1672 = vmatprep.subr.mxu0 0.0
  %1673 = vmatpush1.msra.mxu0 0.0
  %1674 = vmatprep.subr.mxu0 0.0
  %1675 = vmatpush1.msra.mxu0 0.0
  %1676 = vmatprep.subr.mxu0 0.0
  %1677 = vmatpush1.msra.mxu0 0.0
  %1678 = vmatprep.subr.mxu0 0.0
  %1679 = vmatpush1.msra.mxu0 0.0
  %1680 = vmatprep.subr.mxu0 0.0
  %1681 = vmatpush1.msra.mxu0 0.0
  %1682 = vmatprep.subr.mxu0 0.0
  %1683 = vmatpush1.msra.mxu0 0.0
  %1684 = vmatprep.subr.mxu0 0.0
  %1685 = vmatpush1.msra.mxu0 0.0
  %1686 = vmatprep.subr.mxu0 0.0
  %1687 = vmatpush1.msra.mxu0 0.0
  %1688 = vmatprep.subr.mxu0 0.0
  %1689 = vmatpush1.msra.mxu0 0.0
  %1690 = vmatprep.subr.mxu0 0.0
  %1691 = vmatpush1.msra.mxu0 0.0
  %1692 = vmatprep.subr.mxu0 0.0
  %1693 = vmatpush1.msra.mxu0 0.0
  %1694 = vmatprep.subr.mxu0 0.0
  %1695 = vmatpush1.msra.mxu0 0.0
  %1696 = vmatprep.subr.mxu0 0.0
  %1697 = vmatpush1.msra.mxu0 0.0
  %1698 = vmatprep.subr.mxu0 0.0
  %1699 = vmatpush1.msra.mxu0 0.0
  %1700 = vmatprep.subr.mxu0 0.0
  %1701 = vmatpush1.msra.mxu0 0.0
  %1702 = vmatprep.subr.mxu0 0.0
  %1703 = vmatpush1.msra.mxu0 0.0
  %1704 = vmatprep.subr.mxu0 0.0
  %1705 = vmatpush1.msra.mxu0 0.0
  %1706 = vmatprep.subr.mxu0 0.0
  %1707 = vmatpush1.msra.mxu0 0.0
  %1708 = vmatprep.subr.mxu0 0.0
  %1709 = vmatpush1.msra.mxu0 0.0
  %1710 = vmatprep.subr.mxu0 0.0
  %1711 = vmatpush1.msra.mxu0 0.0
  %1712 = vmatprep.subr.mxu0 0.0
  %1713 = vmatpush1.msra.mxu0 0.0
  %1714 = vmatprep.subr.mxu0 0.0
  %1715 = vmatpush1.msra.mxu0 0.0
  %1716 = vmatprep.subr.mxu0 0.0
  %1717 = vmatpush1.msra.mxu0 0.0
  %1718 = vmatprep.subr.mxu0 0.0
  %1719 = vmatpush1.msra.mxu0 0.0
  %1720 = vmatprep.subr.mxu0 0.0
  %1721 = vmatpush1.msra.mxu0 0.0
  %1722 = vmatprep.subr.mxu0 0.0
  %1723 = vmatpush1.msra.mxu0 0.0
  %1724 = vmatprep.mubr.f32.mxu0 0.0
  %1725 = vmatmul.mubr.f32.gmra.mrb[0].mxu0 %v1658
  %v1726 = vpop.f32.mrb[0].mxu0
  %v1727 = vadd.f32 %v1656, %v1726
  %v1728 = vpop.f32.mrb[0].mxu0
  %1729 = vdwg.mxu0
  %v1730 = vld [vmem:[#allocation3] sm:$0xff]
  %v1731 = vmul.f32 %v1727, 0.5
  %v1732 = vtanh.pop %v1731
  %v1733 = vadd.f32 %v1732, 1.0
  %v1734 = vmul.f32 %v1733, 0.5
  %v1735 = vtanh.pop %v1727
  %1737 = vrot.lane.b32.xlu0 %v1730, 32
  %v1738 = vpop.permute.xlu0 %1737
  %v1740 = vmul.f32 %v1734, %v1738
  %1742 = vrot.lane.b32.xlu0 %v1735, 64
  %v1743 = vpop.permute.xlu0 %1742
  %v1745 = vmul.f32 %v1734, %v1743
  %1747 = vrot.lane.b32.xlu0 %v1745, 32
  %v1748 = vpop.permute.xlu0 %1747
  %v1750 = vadd.f32 %v1740, %v1748
  %v1751 = vtanh.pop %v1750
  %1753 = vrot.lane.b32.xlu0 %v1751, 64
  %v1754 = vpop.permute.xlu0 %1753
  %v1756 = vmul.f32 %v1734, %v1754
  %1758 = vrot.lane.b32.xlu0 %v1756, 32
  %v1759 = vpop.permute.xlu0 %1758
  %1761 = vst.msk [vmem:[#allocation2] sm:$0xff] %vm17, %v1759
  %1763 = vrot.lane.b32.xlu0 %v1750, 96
  %v1764 = vpop.permute.xlu0 %1763
  %1766 = vst.msk [vmem:[#allocation3] sm:$0xff] %vm17, %v1764
  %1767 = vst.msk [vmem:[%s259] sm:$0xff] %vm17, %v1759
  %v1768 = vld [vmem:[#allocation4] sm:$0xff]
  %v1769 = vld [vmem:[%s1] sm:$0xff]
  %v1771 = vsel %vm17, %v1768, 0
  %1773 = vmatprep.subr.mxu0 0.0
  %1774 = vmatpush1.msra.mxu0 %v26
  %1775 = vmatprep.subr.mxu0 0.0
  %1776 = vmatpush1.msra.mxu0 %v27
  %1777 = vmatprep.subr.mxu0 0.0
  %1778 = vmatpush1.msra.mxu0 %v28
  %1779 = vmatprep.subr.mxu0 0.0
  %1780 = vmatpush1.msra.mxu0 %v29
  %1781 = vmatprep.subr.mxu0 0.0
  %1782 = vmatpush1.msra.mxu0 0.0
  %1783 = vmatprep.subr.mxu0 0.0
  %1784 = vmatpush1.msra.mxu0 0.0
  %1785 = vmatprep.subr.mxu0 0.0
  %1786 = vmatpush1.msra.mxu0 0.0
  %1787 = vmatprep.subr.mxu0 0.0
  %1788 = vmatpush1.msra.mxu0 0.0
  %1789 = vmatprep.subr.mxu0 0.0
  %1790 = vmatpush1.msra.mxu0 0.0
  %1791 = vmatprep.subr.mxu0 0.0
  %1792 = vmatpush1.msra.mxu0 0.0
  %1793 = vmatprep.subr.mxu0 0.0
  %1794 = vmatpush1.msra.mxu0 0.0
  %1795 = vmatprep.subr.mxu0 0.0
  %1796 = vmatpush1.msra.mxu0 0.0
  %1797 = vmatprep.subr.mxu0 0.0
  %1798 = vmatpush1.msra.mxu0 0.0
  %1799 = vmatprep.subr.mxu0 0.0
  %1800 = vmatpush1.msra.mxu0 0.0
  %1801 = vmatprep.subr.mxu0 0.0
  %1802 = vmatpush1.msra.mxu0 0.0
  %1803 = vmatprep.subr.mxu0 0.0
  %1804 = vmatpush1.msra.mxu0 0.0
  %1805 = vmatprep.subr.mxu0 0.0
  %1806 = vmatpush1.msra.mxu0 0.0
  %1807 = vmatprep.subr.mxu0 0.0
  %1808 = vmatpush1.msra.mxu0 0.0
  %1809 = vmatprep.subr.mxu0 0.0
  %1810 = vmatpush1.msra.mxu0 0.0
  %1811 = vmatprep.subr.mxu0 0.0
  %1812 = vmatpush1.msra.mxu0 0.0
  %1813 = vmatprep.subr.mxu0 0.0
  %1814 = vmatpush1.msra.mxu0 0.0
  %1815 = vmatprep.subr.mxu0 0.0
  %1816 = vmatpush1.msra.mxu0 0.0
  %1817 = vmatprep.subr.mxu0 0.0
  %1818 = vmatpush1.msra.mxu0 0.0
  %1819 = vmatprep.subr.mxu0 0.0
  %1820 = vmatpush1.msra.mxu0 0.0
  %1821 = vmatprep.subr.mxu0 0.0
  %1822 = vmatpush1.msra.mxu0 0.0
  %1823 = vmatprep.subr.mxu0 0.0
  %1824 = vmatpush1.msra.mxu0 0.0
  %1825 = vmatprep.subr.mxu0 0.0
  %1826 = vmatpush1.msra.mxu0 0.0
  %1827 = vmatprep.subr.mxu0 0.0
  %1828 = vmatpush1.msra.mxu0 0.0
  %1829 = vmatprep.subr.mxu0 0.0
  %1830 = vmatpush1.msra.mxu0 0.0
  %1831 = vmatprep.subr.mxu0 0.0
  %1832 = vmatpush1.msra.mxu0 0.0
  %1833 = vmatprep.subr.mxu0 0.0
  %1834 = vmatpush1.msra.mxu0 0.0
  %1835 = vmatprep.subr.mxu0 0.0
  %1836 = vmatpush1.msra.mxu0 0.0
  %1837 = vmatprep.mubr.f32.mxu0 0.0
  %1838 = vmatmul.mubr.f32.gmra.mrb[0].mxu0 %v1771
  %v1839 = vpop.f32.mrb[0].mxu0
  %v1840 = vadd.f32 %v1769, %v1839
  %v1841 = vpop.f32.mrb[0].mxu0
  %1842 = vdwg.mxu0
  %v1843 = vld [vmem:[#allocation5] sm:$0xff]
  %v1844 = vmul.f32 %v1840, 0.5
  %v1845 = vtanh.pop %v1844
  %v1846 = vadd.f32 %v1845, 1.0
  %v1847 = vmul.f32 %v1846, 0.5
  %v1848 = vtanh.pop %v1840
  %1850 = vrot.lane.b32.xlu0 %v1843, 32
  %v1851 = vpop.permute.xlu0 %1850
  %v1853 = vmul.f32 %v1847, %v1851
  %1855 = vrot.lane.b32.xlu0 %v1848, 64
  %v1856 = vpop.permute.xlu0 %1855
  %v1858 = vmul.f32 %v1847, %v1856
  %1860 = vrot.lane.b32.xlu0 %v1858, 32
  %v1861 = vpop.permute.xlu0 %1860
  %v1863 = vadd.f32 %v1853, %v1861
  %v1864 = vtanh.pop %v1863
  %1866 = vrot.lane.b32.xlu0 %v1864, 64
  %v1867 = vpop.permute.xlu0 %1866
  %v1869 = vmul.f32 %v1847, %v1867
  %1871 = vrot.lane.b32.xlu0 %v1869, 32
  %v1872 = vpop.permute.xlu0 %1871
  %1874 = vst.msk [vmem:[#allocation4] sm:$0xff] %vm17, %v1872
  %1876 = vrot.lane.b32.xlu0 %v1863, 96
  %v1877 = vpop.permute.xlu0 %1876
  %1879 = vst.msk [vmem:[#allocation5] sm:$0xff] %vm17, %v1877
  %1880 = vrot.lane.b32.xlu0 %v1869, 64
  %v1881 = vpop.permute.xlu0 %1880
  %1883 = vst.msk [vmem:[%s4] sm:$0xff] %vm260, %v1881
  // Predicated region
  $region18: #{birnn_forward.6} parent=0 // pred_check
    _
  $region19: #{birnn_forward.6} parent=0 // pred_check_branch
    %1885 = sbr.rel (0) target = $region21
  $region20: #{birnn_forward.6} parent=0 // pred_region
    _
  $region21: #{birnn_forward.6} parent=0 // pred_fallthru
    _
  // Predicated region
  $region22: #{birnn_forward.6} parent=0 // pred_check
    _
  $region23: #{birnn_forward.6} parent=0 // pred_check_branch
    %1887 = sbr.rel (0) target = $region25
  $region24: #{birnn_forward.6} parent=0 // pred_region
    _
  $region25: #{birnn_forward.6} parent=0 // pred_fallthru
    _

</llo_original>
